<compile_context>
chip_gen: v5e
topology: v5e:2x2
jax: 0.10.0
libtpu: 0.0.40
codegen_flags: <defaults>
</compile_context>

<pallas_src>
import functools
import math

import jax
import jax.numpy as jnp
from jax.experimental import pallas as pl
from jax.experimental.pallas import tpu as pltpu

LN_EPS = 1e-12
VMEM_LIMIT = 48 * 1024 * 1024  # fits v7x (64 MiB phys), lifts v5e/v6e defaults


# ---------------------------------------------------------------------------
# small helpers
# ---------------------------------------------------------------------------
def _pick_tile(dim, target, align):
    """Largest tile <= target that divides `dim` and is a multiple of `align`.
    Falls back to the full dim (always a legal BlockSpec block)."""
    if dim <= target:
        return dim
    t = (min(target, dim) // align) * align
    while t >= align:
        if dim % t == 0:
            return t
        t -= align
    return dim


def _apply_activation(y, activation):
    if activation == "relu":
        return jnp.maximum(y, 0.0)
    if activation == "tanh":
        return jnp.tanh(y)
    if activation == "gelu":  # exact (erf) GELU, matching torch.nn.GELU()
        return 0.5 * y * (1.0 + jax.lax.erf(y * (1.0 / math.sqrt(2.0))))
    return y


def _layer_norm(x, gamma, beta, eps=LN_EPS):
    x = x.astype(jnp.float32)
    mean = jnp.mean(x, axis=-1, keepdims=True)
    var = jnp.mean(jnp.square(x - mean), axis=-1, keepdims=True)
    return (x - mean) * jax.lax.rsqrt(var + eps) * gamma + beta


# ---------------------------------------------------------------------------
# Tiled dense:  o = act(x @ w + b),   grid (M//tm, N//tn, K//tk)
# ---------------------------------------------------------------------------
def _matmul_kernel(x_ref, w_ref, b_ref, o_ref, acc_ref, *, activation):
    @pl.when(pl.program_id(2) == 0)
    def _():
        acc_ref[...] = jnp.zeros_like(acc_ref)

    acc_ref[...] += jnp.dot(x_ref[...], w_ref[...],
                            preferred_element_type=jnp.float32)

    @pl.when(pl.program_id(2) == pl.num_programs(2) - 1)
    def _():
        y = acc_ref[...] + b_ref[...]
        y = _apply_activation(y, activation)
        o_ref[...] = y.astype(o_ref.dtype)


def dense(x, w, b, activation="none", out_dtype=jnp.bfloat16,
          tm_target=256, tn_target=256, tk_target=512):
    M, K = x.shape
    _, N = w.shape
    tm = _pick_tile(M, tm_target, 8)
    tn = _pick_tile(N, tn_target, 128)
    tk = _pick_tile(K, tk_target, 128)
    grid = (M // tm, N // tn, K // tk)
    kern = functools.partial(_matmul_kernel, activation=activation)
    return pl.pallas_call(
        kern,
        out_shape=jax.ShapeDtypeStruct((M, N), out_dtype),
        grid_spec=pltpu.PrefetchScalarGridSpec(
            num_scalar_prefetch=0, grid=grid,
            in_specs=[
                pl.BlockSpec((tm, tk), lambda i, j, k: (i, k)),
                pl.BlockSpec((tk, tn), lambda i, j, k: (k, j)),
                pl.BlockSpec((1, tn), lambda i, j, k: (0, j)),
            ],
            out_specs=pl.BlockSpec((tm, tn), lambda i, j, k: (i, j)),
            scratch_shapes=[pltpu.VMEM((tm, tn), jnp.float32)],
        ),
        compiler_params=pltpu.CompilerParams(
            dimension_semantics=("parallel", "parallel", "arbitrary"),
            vmem_limit_bytes=VMEM_LIMIT),
    )(x.astype(jnp.bfloat16), w.astype(jnp.bfloat16),
      b.reshape(1, N).astype(jnp.float32))


# ---------------------------------------------------------------------------
# Tiled dense with the weight in its NATIVE (N, K) layout (tied MLM decoder):
#   o = x @ w.T + b   (contraction done in-kernel, no .T materialization)
# ---------------------------------------------------------------------------
def _matmul_wt_kernel(x_ref, w_ref, b_ref, o_ref, acc_ref):
    @pl.when(pl.program_id(2) == 0)
    def _():
        acc_ref[...] = jnp.zeros_like(acc_ref)

    acc_ref[...] += jax.lax.dot_general(
        x_ref[...], w_ref[...], (((1,), (1,)), ((), ())),
        preferred_element_type=jnp.float32)

    @pl.when(pl.program_id(2) == pl.num_programs(2) - 1)
    def _():
        o_ref[...] = (acc_ref[...] + b_ref[...]).astype(o_ref.dtype)


def dense_wt(x, w_nk, b, out_dtype=jnp.float32,
             tm_target=256, tn_target=256, tk_target=512):
    M, K = x.shape
    N, _ = w_nk.shape
    tm = _pick_tile(M, tm_target, 8)
    tn = _pick_tile(N, tn_target, 128)
    tk = _pick_tile(K, tk_target, 128)
    grid = (M // tm, N // tn, K // tk)
    return pl.pallas_call(
        _matmul_wt_kernel,
        out_shape=jax.ShapeDtypeStruct((M, N), out_dtype),
        grid_spec=pltpu.PrefetchScalarGridSpec(
            num_scalar_prefetch=0, grid=grid,
            in_specs=[
                pl.BlockSpec((tm, tk), lambda i, j, k: (i, k)),
                pl.BlockSpec((tn, tk), lambda i, j, k: (j, k)),
                pl.BlockSpec((1, tn), lambda i, j, k: (0, j)),
            ],
            out_specs=pl.BlockSpec((tm, tn), lambda i, j, k: (i, j)),
            scratch_shapes=[pltpu.VMEM((tm, tn), jnp.float32)],
        ),
        compiler_params=pltpu.CompilerParams(
            dimension_semantics=("parallel", "parallel", "arbitrary"),
            vmem_limit_bytes=VMEM_LIMIT),
    )(x.astype(jnp.bfloat16), w_nk.astype(jnp.bfloat16),
      b.reshape(1, N).astype(jnp.float32))


# ---------------------------------------------------------------------------
# Tiled dense with fused (optional activation) + (optional residual) + LN:
#   o = LayerNorm(act(x @ w + b) [+ residual]) ,  grid (M//tm, K//tk), full N
# ---------------------------------------------------------------------------
def _matmul_ln_kernel(*refs, activation, has_residual):
    if has_residual:
        x_ref, w_ref, b_ref, res_ref, g_ref, be_ref, o_ref, acc_ref = refs
    else:
        x_ref, w_ref, b_ref, g_ref, be_ref, o_ref, acc_ref = refs
        res_ref = None

    k = pl.program_id(1)

    @pl.when(k == 0)
    def _():
        acc_ref[...] = jnp.zeros_like(acc_ref)

    acc_ref[...] += jnp.dot(x_ref[...], w_ref[...],
                            preferred_element_type=jnp.float32)

    @pl.when(k == pl.num_programs(1) - 1)
    def _():
        y = acc_ref[...] + b_ref[...]
        y = _apply_activation(y, activation)
        if res_ref is not None:
            y = y + res_ref[...].astype(jnp.float32)
        o_ref[...] = _layer_norm(y, g_ref[...], be_ref[...]).astype(o_ref.dtype)


def dense_add_ln(x, w, b, gamma, beta, residual=None, activation="none",
                 out_dtype=jnp.bfloat16, tm_target=256, tk_target=512):
    M, K = x.shape
    _, N = w.shape
    tm = _pick_tile(M, tm_target, 8)
    tk = _pick_tile(K, tk_target, 128)
    grid = (M // tm, K // tk)
    has_res = residual is not None

    in_specs = [
        pl.BlockSpec((tm, tk), lambda i, k: (i, k)),
        pl.BlockSpec((tk, N), lambda i, k: (k, 0)),
        pl.BlockSpec((1, N), lambda i, k: (0, 0)),
    ]
    args = [x.astype(jnp.bfloat16), w.astype(jnp.bfloat16),
            b.reshape(1, N).astype(jnp.float32)]
    if has_res:
        in_specs.append(pl.BlockSpec((tm, N), lambda i, k: (i, 0)))
        args.append(residual)
    in_specs += [pl.BlockSpec((1, N), lambda i, k: (0, 0))] * 2
    args += [gamma.reshape(1, N).astype(jnp.float32),
             beta.reshape(1, N).astype(jnp.float32)]

    kern = functools.partial(_matmul_ln_kernel, activation=activation,
                             has_residual=has_res)
    return pl.pallas_call(
        kern,
        out_shape=jax.ShapeDtypeStruct((M, N), out_dtype),
        grid_spec=pltpu.PrefetchScalarGridSpec(
            num_scalar_prefetch=0, grid=grid,
            in_specs=in_specs,
            out_specs=pl.BlockSpec((tm, N), lambda i, k: (i, 0)),
            scratch_shapes=[pltpu.VMEM((tm, N), jnp.float32)],
        ),
        compiler_params=pltpu.CompilerParams(
            dimension_semantics=("parallel", "arbitrary"),
            vmem_limit_bytes=VMEM_LIMIT),
    )(*args)


# ---------------------------------------------------------------------------
# Row-tiled add + LayerNorm (used for the embedding sum)
# ---------------------------------------------------------------------------
def _add_ln_kernel(*refs, num_inputs):
    out_ref = refs[-1]
    gamma = refs[num_inputs][...]
    beta = refs[num_inputs + 1][...]
    s = refs[0][...].astype(jnp.float32)
    for i in range(1, num_inputs):
        s = s + refs[i][...].astype(jnp.float32)
    out_ref[...] = _layer_norm(s, gamma, beta).astype(out_ref.dtype)


def add_layernorm(xs, gamma, beta, out_dtype=jnp.bfloat16, tm_target=512):
    M, D = xs[0].shape
    tm = _pick_tile(M, tm_target, 8)
    grid = (M // tm,)
    kern = functools.partial(_add_ln_kernel, num_inputs=len(xs))
    in_specs = ([pl.BlockSpec((tm, D), lambda i: (i, 0))] * len(xs)
                + [pl.BlockSpec((1, D), lambda i: (0, 0))] * 2)
    return pl.pallas_call(
        kern,
        out_shape=jax.ShapeDtypeStruct((M, D), out_dtype),
        grid_spec=pltpu.PrefetchScalarGridSpec(
            num_scalar_prefetch=0, grid=grid,
            in_specs=in_specs,
            out_specs=pl.BlockSpec((tm, D), lambda i: (i, 0)),
        ),
        compiler_params=pltpu.CompilerParams(
            dimension_semantics=("parallel",),
            vmem_limit_bytes=VMEM_LIMIT),
    )(*xs, gamma.reshape(1, D).astype(jnp.float32),
      beta.reshape(1, D).astype(jnp.float32))


# ---------------------------------------------------------------------------
# Flash-style masked attention over (B*H, S, Dh) slabs
#   grid = (B*H, S//tq, S//tk) with online softmax; valid_lens via SMEM prefetch
# ---------------------------------------------------------------------------
def _flash_attn_kernel(vl_ref, q_ref, k_ref, v_ref, o_ref,
                       m_sc, l_sc, acc_sc, *, scale, tk):
    bh = pl.program_id(0)
    kv = pl.program_id(2)

    @pl.when(kv == 0)
    def _():
        m_sc[...] = jnp.full_like(m_sc, -jnp.inf)
        l_sc[...] = jnp.zeros_like(l_sc)
        acc_sc[...] = jnp.zeros_like(acc_sc)

    q = q_ref[0]                       # (tq, Dh) bf16
    k = k_ref[0]                       # (tk, Dh) bf16
    s = jax.lax.dot_general(q, k, (((1,), (1,)), ((), ())),
                            preferred_element_type=jnp.float32) * scale
    # d2l masked_softmax semantics: key positions >= valid_len filled with -1e6
    kidx = kv * tk + jax.lax.broadcasted_iota(jnp.int32, s.shape, 1)
    valid = vl_ref[bh]
    s = jnp.where(kidx < valid, s, jnp.float32(-1e6))

    m_prev = m_sc[...]
    m_new = jnp.maximum(m_prev, jnp.max(s, axis=-1, keepdims=True))
    alpha = jnp.exp(m_prev - m_new)
    p = jnp.exp(s - m_new)
    l_sc[...] = alpha * l_sc[...] + jnp.sum(p, axis=-1, keepdims=True)
    acc_sc[...] = alpha * acc_sc[...] + jnp.dot(
        p.astype(v_ref.dtype), v_ref[0], preferred_element_type=jnp.float32)
    m_sc[...] = m_new

    @pl.when(kv == pl.num_programs(2) - 1)
    def _():
        o_ref[0] = (acc_sc[...] * pl.reciprocal(l_sc[...], approx=True)
                    ).astype(o_ref.dtype)


def masked_attention(q, k, v, valid_lens, tq_target=256, tk_target=256):
    BH, S, Dh = q.shape
    tq = _pick_tile(S, tq_target, 8)
    tk = _pick_tile(S, tk_target, 8)
    grid = (BH, S // tq, S // tk)
    kern = functools.partial(_flash_attn_kernel,
                             scale=1.0 / math.sqrt(Dh), tk=tk)
    return pl.pallas_call(
        kern,
        out_shape=jax.ShapeDtypeStruct((BH, S, Dh), jnp.bfloat16),
        grid_spec=pltpu.PrefetchScalarGridSpec(
            num_scalar_prefetch=1, grid=grid,
            in_specs=[
                pl.BlockSpec((1, tq, Dh), lambda bh, qi, kv, vl: (bh, qi, 0)),
                pl.BlockSpec((1, tk, Dh), lambda bh, qi, kv, vl: (bh, kv, 0)),
                pl.BlockSpec((1, tk, Dh), lambda bh, qi, kv, vl: (bh, kv, 0)),
            ],
            out_specs=pl.BlockSpec((1, tq, Dh), lambda bh, qi, kv, vl: (bh, qi, 0)),
            scratch_shapes=[
                pltpu.VMEM((tq, 1), jnp.float32),    # running max
                pltpu.VMEM((tq, 1), jnp.float32),    # running denom
                pltpu.VMEM((tq, Dh), jnp.float32),   # running numerator
            ],
        ),
        compiler_params=pltpu.CompilerParams(
            dimension_semantics=("parallel", "parallel", "arbitrary"),
            vmem_limit_bytes=VMEM_LIMIT),
    )(valid_lens.astype(jnp.int32),
      q.astype(jnp.bfloat16), k.astype(jnp.bfloat16), v.astype(jnp.bfloat16))


# ---------------------------------------------------------------------------
# Parameter init (deterministic, synthetic) — matrices bf16, biases/LN f32
# ---------------------------------------------------------------------------
def init_params(key, vocab_size, num_encoder, d_model, ffn_hidden, num_heads,
                max_len, num_segments):
    keys = iter(jax.random.split(key, 64))

    def norm(shape, scale=0.02):
        return (scale * jax.random.normal(next(keys), shape)).astype(jnp.bfloat16)

    p = {
        "token_emb": norm((vocab_size, d_model)),
        "seg_emb": norm((num_segments, d_model)),
        "pos_emb": norm((max_len, d_model)),
        "emb_ln_g": jnp.ones((d_model,), jnp.float32),
        "emb_ln_b": jnp.zeros((d_model,), jnp.float32),
        "layers": [],
        "pooler_w": norm((d_model, d_model)),
        "pooler_b": jnp.zeros((d_model,), jnp.float32),
        "mlm_w": norm((d_model, d_model)),
        "mlm_b": jnp.zeros((d_model,), jnp.float32),
        "mlm_ln_g": jnp.ones((d_model,), jnp.float32),
        "mlm_ln_b": jnp.zeros((d_model,), jnp.float32),
        "mlm_decoder_bias": jnp.zeros((vocab_size,), jnp.float32),
        "nsp_w": norm((d_model, 2)),
        "nsp_b": jnp.zeros((2,), jnp.float32),
    }
    for _ in range(num_encoder):
        p["layers"].append({
            # fused Q/K/V projection weight (D, 3D) = [Wq | Wk | Wv]
            "w_qkv": norm((d_model, 3 * d_model)),
            "b_qkv": jnp.zeros((3 * d_model,), jnp.float32),
            "wo": norm((d_model, d_model)),
            "bo": jnp.zeros((d_model,), jnp.float32),
            "ln1_g": jnp.ones((d_model,), jnp.float32),
            "ln1_b": jnp.zeros((d_model,), jnp.float32),
            "w1": norm((d_model, ffn_hidden)),
            "b1": jnp.zeros((ffn_hidden,), jnp.float32),
            "w2": norm((ffn_hidden, d_model)),
            "b2": jnp.zeros((d_model,), jnp.float32),
            "ln2_g": jnp.ones((d_model,), jnp.float32),
            "ln2_b": jnp.zeros((d_model,), jnp.float32),
        })
    return p


# ---------------------------------------------------------------------------
# Forward pass (BERTForPreTraining, eval mode)
# ---------------------------------------------------------------------------
def bert_forward(params, token_ids, seg_ids, attention_mask, *, num_heads):
    B, S = token_ids.shape
    D = params["token_emb"].shape[1]
    H = num_heads
    Dh = D // H
    M = B * S

    # valid lengths per sequence (keys >= valid_len masked out)
    # TODO(synk): assumes right-padded contiguous attention_mask (d2l semantics).
    valid_lens = attention_mask.sum(axis=1).astype(jnp.int32)      # (B,)

    # --- BERTEmbedding: token + segment + position embeddings, then LN ------
    tok = jnp.take(params["token_emb"], token_ids, axis=0)          # (B,S,D)
    seg = jnp.take(params["seg_emb"], seg_ids, axis=0)              # (B,S,D)
    pos = jnp.broadcast_to(params["pos_emb"][:S], (B, S, D))        # (B,S,D)
    x = add_layernorm(
        [pos.reshape(M, D), tok.reshape(M, D), seg.reshape(M, D)],
        params["emb_ln_g"], params["emb_ln_b"])
    # TODO(synk): nn.Dropout layers are identity here (inference mode).

    vl_heads = jnp.repeat(valid_lens, H)                            # (B*H,)

    # --- Transformer encoder stack ------------------------------------------
    for lyr in params["layers"]:
        qkv = dense(x, lyr["w_qkv"], lyr["b_qkv"])                  # (M, 3D)
        # TODO(synk): head split/merge reshape+transpose left to XLA glue.
        qkv = qkv.reshape(B, S, 3, H, Dh).transpose(2, 0, 3, 1, 4)  # (3,B,H,S,Dh)
        q = qkv[0].reshape(B * H, S, Dh)
        k = qkv[1].reshape(B * H, S, Dh)
        v = qkv[2].reshape(B * H, S, Dh)
        attn = masked_attention(q, k, v, vl_heads)                  # (BH,S,Dh)
        attn = attn.reshape(B, H, S, Dh).transpose(0, 2, 1, 3).reshape(M, D)
        # output projection fused with residual add + LayerNorm 1
        y = dense_add_ln(attn, lyr["wo"], lyr["bo"],
                         lyr["ln1_g"], lyr["ln1_b"], residual=x)
        # FFN: relu dense, then second dense fused with residual + LayerNorm 2
        ff = dense(y, lyr["w1"], lyr["b1"], activation="relu")
        x = dense_add_ln(ff, lyr["w2"], lyr["b2"],
                         lyr["ln2_g"], lyr["ln2_b"], residual=y)

    # --- Pooler: tanh(dense(cls)) --------------------------------------------
    cls_token = x.reshape(B, S, D)[:, 0, :]                         # (B, D)
    pooled = dense(cls_token, params["pooler_w"], params["pooler_b"],
                   activation="tanh")

    # --- MLM head (weight tied to token embedding, kept in (vocab, D)) -------
    t = dense_add_ln(x, params["mlm_w"], params["mlm_b"],
                     params["mlm_ln_g"], params["mlm_ln_b"],
                     activation="gelu")                              # GELU -> LN fused
    mlm_logits = dense_wt(t, params["token_emb"], params["mlm_decoder_bias"],
                          out_dtype=jnp.float32)
    mlm_logits = mlm_logits.reshape(B, S, -1)                       # (B,S,vocab)

    # --- NSP head -------------------------------------------------------------
    nsp_logits = dense(pooled, params["nsp_w"], params["nsp_b"],
                       out_dtype=jnp.float32)                       # (B,2)

    # TODO(synk): CrossEntropyLoss branch (masked_lm_labels / next_sentence_label)
    # not implemented; only the logits path of forward() is reproduced.
    return mlm_logits, nsp_logits


# ---------------------------------------------------------------------------
if __name__ == "__main__":
    vocab_size = 128
    num_encoder = 2
    d_model = 32
    ffn_hidden = 64
    num_heads = 2
    max_len = 16
    num_segments = 2
    B, S = 2, 8

    root = jax.random.PRNGKey(0)
    pkey, dkey = jax.random.split(root)
    params = init_params(pkey, vocab_size, num_encoder, d_model, ffn_hidden,
                         num_heads, max_len, num_segments)

    token_ids = jax.random.randint(dkey, (B, S), 0, vocab_size, dtype=jnp.int32)
    seg_ids = jnp.concatenate(
        [jnp.zeros((B, S // 2), jnp.int32), jnp.ones((B, S // 2), jnp.int32)],
        axis=1)
    lengths = jnp.array([S, S - 3], jnp.int32)       # second sequence has padding
    attention_mask = (jnp.arange(S)[None, :] < lengths[:, None]).astype(jnp.int32)

    fwd = jax.jit(functools.partial(bert_forward, num_heads=num_heads))
    mlm_logits, nsp_logits = fwd(params, token_ids, seg_ids, attention_mask)
    jax.block_until_ready((mlm_logits, nsp_logits))

    assert mlm_logits.shape == (B, S, vocab_size)
    assert nsp_logits.shape == (B, 2)
    assert bool(jnp.all(jnp.isfinite(mlm_logits))) and bool(jnp.all(jnp.isfinite(nsp_logits)))
    print("KERNEL_OK")
</pallas_src>

<mosaic_0001>
module attributes {stable_mosaic.version = 11 : i64} {
  func.func @_matmul_kernel(%arg0: i32, %arg1: i32, %arg2: i32, %arg3: memref<16x32xbf16, #tpu.memory_space<vmem>>, %arg4: memref<32x96xbf16, #tpu.memory_space<vmem>>, %arg5: memref<1x96xf32, #tpu.memory_space<vmem>>, %arg6: memref<16x96xbf16, #tpu.memory_space<vmem>>, %arg7: memref<16x96xf32, #tpu.memory_space<vmem>>) attributes {dimension_semantics = [#tpu.dimension_semantics<parallel>, #tpu.dimension_semantics<parallel>, #tpu.dimension_semantics<arbitrary>], iteration_bounds = array<i64: 1, 1, 1>, scalar_prefetch = 0 : i64, scratch_operands = 1 : i64, tpu.core_type = #tpu.core_type<tc>, window_params = [{transform_indices = @transform_0, window_bounds = array<i64: 16, 32>}, {transform_indices = @transform_1, window_bounds = array<i64: 32, 96>}, {transform_indices = @transform_2, window_bounds = array<i64: 1, 96>}, {transform_indices = @transform_3, window_bounds = array<i64: 16, 96>}]} {
    %c0_i32 = arith.constant 0 : i32
    %0 = arith.cmpi eq, %arg2, %c0_i32 : i32
    %1 = arith.extui %0 : i1 to i32
    %c0_i32_0 = arith.constant 0 : i32
    %2 = arith.cmpi ne, %1, %c0_i32_0 : i32
    scf.if %2 {
      %cst_10 = arith.constant 0.000000e+00 : f32
      %12 = vector.broadcast %cst_10 : f32 to vector<16x96xf32>
      %c0_11 = arith.constant 0 : index
      %c0_12 = arith.constant 0 : index
      %13 = vector.load %arg7[%c0_11, %c0_12] : memref<16x96xf32, #tpu.memory_space<vmem>>, vector<16x96xf32>
      tpu.vector_store %arg7[%c0_11, %c0_12], %12 {strides = array<i32>} : memref<16x96xf32, #tpu.memory_space<vmem>>, vector<16x96xf32>,
    } else {
    }
    %c0 = arith.constant 0 : index
    %c0_1 = arith.constant 0 : index
    %3 = vector.load %arg7[%c0, %c0_1] : memref<16x96xf32, #tpu.memory_space<vmem>>, vector<16x96xf32>
    %c0_2 = arith.constant 0 : index
    %c0_3 = arith.constant 0 : index
    %4 = vector.load %arg3[%c0_2, %c0_3] : memref<16x32xbf16, #tpu.memory_space<vmem>>, vector<16x32xbf16>
    %c0_4 = arith.constant 0 : index
    %c0_5 = arith.constant 0 : index
    %5 = vector.load %arg4[%c0_4, %c0_5] : memref<32x96xbf16, #tpu.memory_space<vmem>>, vector<32x96xbf16>
    %cst = arith.constant dense<0.000000e+00> : vector<16x96xf32>
    %6 = tpu.matmul %4, %5, %cst {dimension_numbers = #tpu.dot_dimension_numbers<[1], [0], [0], [1], [0, 0, 1, 1], [], []>} : vector<16x32xbf16>, vector<32x96xbf16>, vector<16x96xf32> -> vector<16x96xf32>
    %7 = arith.addf %3, %6 : vector<16x96xf32>
    %c0_6 = arith.constant 0 : index
    %c0_7 = arith.constant 0 : index
    %8 = vector.load %arg7[%c0_6, %c0_7] : memref<16x96xf32, #tpu.memory_space<vmem>>, vector<16x96xf32>
    tpu.vector_store %arg7[%c0_6, %c0_7], %7 {strides = array<i32>} : memref<16x96xf32, #tpu.memory_space<vmem>>, vector<16x96xf32>,
    %c0_i32_8 = arith.constant 0 : i32
    %9 = arith.cmpi eq, %arg2, %c0_i32_8 : i32
    %10 = arith.extui %9 : i1 to i32
    %c0_i32_9 = arith.constant 0 : i32
    %11 = arith.cmpi ne, %10, %c0_i32_9 : i32
    scf.if %11 {
      %c0_10 = arith.constant 0 : index
      %c0_11 = arith.constant 0 : index
      %12 = vector.load %arg7[%c0_10, %c0_11] : memref<16x96xf32, #tpu.memory_space<vmem>>, vector<16x96xf32>
      %c0_12 = arith.constant 0 : index
      %c0_13 = arith.constant 0 : index
      %13 = vector.load %arg5[%c0_12, %c0_13] : memref<1x96xf32, #tpu.memory_space<vmem>>, vector<1x96xf32>
      %14 = vector.broadcast %13 : vector<1x96xf32> to vector<16x96xf32>
      %15 = arith.addf %12, %14 : vector<16x96xf32>
      %16 = arith.truncf %15 : vector<16x96xf32> to vector<16x96xbf16>
      %c0_14 = arith.constant 0 : index
      %c0_15 = arith.constant 0 : index
      %17 = vector.load %arg6[%c0_14, %c0_15] : memref<16x96xbf16, #tpu.memory_space<vmem>>, vector<16x96xbf16>
      tpu.vector_store %arg6[%c0_14, %c0_15], %16 {strides = array<i32>} : memref<16x96xbf16, #tpu.memory_space<vmem>>, vector<16x96xbf16>,
    } else {
    }
    return
  }
  func.func @transform_0(%arg0: i32, %arg1: i32, %arg2: i32) -> (i32, i32) {
    %c0_i32 = arith.constant 0 : i32
    return %arg0, %arg2 : i32, i32
  }
  func.func @transform_1(%arg0: i32, %arg1: i32, %arg2: i32) -> (i32, i32) {
    %c0_i32 = arith.constant 0 : i32
    return %arg2, %arg1 : i32, i32
  }
  func.func @transform_2(%arg0: i32, %arg1: i32, %arg2: i32) -> (i32, i32) {
    %c0_i32 = arith.constant 0 : i32
    %c0_i32_0 = arith.constant 0 : i32
    return %c0_i32, %arg1 : i32, i32
  }
  func.func @transform_3(%arg0: i32, %arg1: i32, %arg2: i32) -> (i32, i32) {
    %c0_i32 = arith.constant 0 : i32
    return %arg0, %arg1 : i32, i32
  }
}

module attributes {stable_mosaic.version = 11 : i64} {
  func.func @_add_ln_kernel(%arg0: i32, %arg1: memref<16x32xbf16, #tpu.memory_space<vmem>>, %arg2: memref<16x32xbf16, #tpu.memory_space<vmem>>, %arg3: memref<16x32xbf16, #tpu.memory_space<vmem>>, %arg4: memref<1x32xf32, #tpu.memory_space<vmem>>, %arg5: memref<1x32xf32, #tpu.memory_space<vmem>>, %arg6: memref<16x32xbf16, #tpu.memory_space<vmem>>) attributes {dimension_semantics = [#tpu.dimension_semantics<parallel>], iteration_bounds = array<i64: 1>, scalar_prefetch = 0 : i64, scratch_operands = 0 : i64, tpu.core_type = #tpu.core_type<tc>, window_params = [{transform_indices = @transform_0, window_bounds = array<i64: 16, 32>}, {transform_indices = @transform_1, window_bounds = array<i64: 16, 32>}, {transform_indices = @transform_2, window_bounds = array<i64: 16, 32>}, {pipeline_mode = #tpu.pipeline_mode<synchronous>, transform_indices = @transform_3, window_bounds = array<i64: 1, 32>}, {pipeline_mode = #tpu.pipeline_mode<synchronous>, transform_indices = @transform_4, window_bounds = array<i64: 1, 32>}, {transform_indices = @transform_5, window_bounds = array<i64: 16, 32>}]} {
    %c0 = arith.constant 0 : index
    %c0_0 = arith.constant 0 : index
    %0 = vector.load %arg4[%c0, %c0_0] : memref<1x32xf32, #tpu.memory_space<vmem>>, vector<1x32xf32>
    %c0_1 = arith.constant 0 : index
    %c0_2 = arith.constant 0 : index
    %1 = vector.load %arg5[%c0_1, %c0_2] : memref<1x32xf32, #tpu.memory_space<vmem>>, vector<1x32xf32>
    %c0_3 = arith.constant 0 : index
    %c0_4 = arith.constant 0 : index
    %2 = vector.load %arg1[%c0_3, %c0_4] : memref<16x32xbf16, #tpu.memory_space<vmem>>, vector<16x32xbf16>
    %3 = arith.extf %2 : vector<16x32xbf16> to vector<16x32xf32>
    %c0_5 = arith.constant 0 : index
    %c0_6 = arith.constant 0 : index
    %4 = vector.load %arg2[%c0_5, %c0_6] : memref<16x32xbf16, #tpu.memory_space<vmem>>, vector<16x32xbf16>
    %5 = arith.extf %4 : vector<16x32xbf16> to vector<16x32xf32>
    %6 = arith.addf %3, %5 : vector<16x32xf32>
    %c0_7 = arith.constant 0 : index
    %c0_8 = arith.constant 0 : index
    %7 = vector.load %arg3[%c0_7, %c0_8] : memref<16x32xbf16, #tpu.memory_space<vmem>>, vector<16x32xbf16>
    %8 = arith.extf %7 : vector<16x32xbf16> to vector<16x32xf32>
    %9 = arith.addf %6, %8 : vector<16x32xf32>
    %cst = arith.constant dense<0.000000e+00> : vector<16xf32>
    %10 = vector.multi_reduction <add>, %9, %cst [1] : vector<16x32xf32> to vector<16xf32>
    %11 = vector.shape_cast %10 : vector<16xf32> to vector<16x1xf32>
    %cst_9 = arith.constant 3.200000e+01 : f32
    %12 = vector.broadcast %cst_9 : f32 to vector<16x1xf32>
    %13 = arith.divf %11, %12 : vector<16x1xf32>
    %14 = vector.broadcast %13 : vector<16x1xf32> to vector<16x32xf32>
    %15 = arith.subf %9, %14 : vector<16x32xf32>
    %16 = arith.mulf %15, %15 : vector<16x32xf32>
    %cst_10 = arith.constant dense<0.000000e+00> : vector<16xf32>
    %17 = vector.multi_reduction <add>, %16, %cst_10 [1] : vector<16x32xf32> to vector<16xf32>
    %18 = vector.shape_cast %17 : vector<16xf32> to vector<16x1xf32>
    %cst_11 = arith.constant 3.200000e+01 : f32
    %19 = vector.broadcast %cst_11 : f32 to vector<16x1xf32>
    %20 = arith.divf %18, %19 : vector<16x1xf32>
    %21 = vector.broadcast %13 : vector<16x1xf32> to vector<16x32xf32>
    %22 = arith.subf %9, %21 : vector<16x32xf32>
    %cst_12 = arith.constant 9.99999996E-13 : f32
    %23 = vector.broadcast %cst_12 : f32 to vector<16x1xf32>
    %24 = arith.addf %20, %23 : vector<16x1xf32>
    %25 = math.rsqrt %24 : vector<16x1xf32>
    %26 = vector.broadcast %25 : vector<16x1xf32> to vector<16x32xf32>
    %27 = arith.mulf %22, %26 : vector<16x32xf32>
    %28 = vector.broadcast %0 : vector<1x32xf32> to vector<16x32xf32>
    %29 = arith.mulf %27, %28 : vector<16x32xf32>
    %30 = vector.broadcast %1 : vector<1x32xf32> to vector<16x32xf32>
    %31 = arith.addf %29, %30 : vector<16x32xf32>
    %32 = arith.truncf %31 : vector<16x32xf32> to vector<16x32xbf16>
    %c0_13 = arith.constant 0 : index
    %c0_14 = arith.constant 0 : index
    %33 = vector.load %arg6[%c0_13, %c0_14] : memref<16x32xbf16, #tpu.memory_space<vmem>>, vector<16x32xbf16>
    tpu.vector_store %arg6[%c0_13, %c0_14], %32 {strides = array<i32>} : memref<16x32xbf16, #tpu.memory_space<vmem>>, vector<16x32xbf16>,
    return
  }
  func.func @transform_0(%arg0: i32) -> (i32, i32) {
    %c0_i32 = arith.constant 0 : i32
    %c0_i32_0 = arith.constant 0 : i32
    return %arg0, %c0_i32 : i32, i32
  }
  func.func @transform_1(%arg0: i32) -> (i32, i32) {
    %c0_i32 = arith.constant 0 : i32
    %c0_i32_0 = arith.constant 0 : i32
    return %arg0, %c0_i32 : i32, i32
  }
  func.func @transform_2(%arg0: i32) -> (i32, i32) {
    %c0_i32 = arith.constant 0 : i32
    %c0_i32_0 = arith.constant 0 : i32
    return %arg0, %c0_i32 : i32, i32
  }
  func.func @transform_3(%arg0: i32) -> (i32, i32) {
    %c0_i32 = arith.constant 0 : i32
    %c0_i32_0 = arith.constant 0 : i32
    %c0_i32_1 = arith.constant 0 : i32
    return %c0_i32, %c0_i32_0 : i32, i32
  }
  func.func @transform_4(%arg0: i32) -> (i32, i32) {
    %c0_i32 = arith.constant 0 : i32
    %c0_i32_0 = arith.constant 0 : i32
    %c0_i32_1 = arith.constant 0 : i32
    return %c0_i32, %c0_i32_0 : i32, i32
  }
  func.func @transform_5(%arg0: i32) -> (i32, i32) {
    %c0_i32 = arith.constant 0 : i32
    %c0_i32_0 = arith.constant 0 : i32
    return %arg0, %c0_i32 : i32, i32
  }
}

module attributes {stable_mosaic.version = 11 : i64} {
  func.func @_flash_attn_kernel(%arg0: i32, %arg1: i32, %arg2: i32, %arg3: memref<4xi32, #tpu.memory_space<smem>>, %arg4: memref<1x8x16xbf16, #tpu.memory_space<vmem>>, %arg5: memref<1x8x16xbf16, #tpu.memory_space<vmem>>, %arg6: memref<1x8x16xbf16, #tpu.memory_space<vmem>>, %arg7: memref<1x8x16xbf16, #tpu.memory_space<vmem>>, %arg8: memref<8x1xf32, #tpu.memory_space<vmem>>, %arg9: memref<8x1xf32, #tpu.memory_space<vmem>>, %arg10: memref<8x16xf32, #tpu.memory_space<vmem>>) attributes {dimension_semantics = [#tpu.dimension_semantics<parallel>, #tpu.dimension_semantics<parallel>, #tpu.dimension_semantics<arbitrary>], iteration_bounds = array<i64: 4, 1, 1>, scalar_prefetch = 1 : i64, scratch_operands = 3 : i64, tpu.core_type = #tpu.core_type<tc>, window_params = [{transform_indices = @transform_0, window_bounds = array<i64: 1, 8, 16>}, {transform_indices = @transform_1, window_bounds = array<i64: 1, 8, 16>}, {transform_indices = @transform_2, window_bounds = array<i64: 1, 8, 16>}, {transform_indices = @transform_3, window_bounds = array<i64: 1, 8, 16>}]} {
    %c0_i32 = arith.constant 0 : i32
    %0 = arith.cmpi eq, %arg2, %c0_i32 : i32
    %1 = arith.extui %0 : i1 to i32
    %c0_i32_0 = arith.constant 0 : i32
    %2 = arith.cmpi ne, %1, %c0_i32_0 : i32
    scf.if %2 {
      %cst_28 = arith.constant 0xFF800000 : f32
      %48 = vector.broadcast %cst_28 : f32 to vector<8x1xf32>
      %c0_29 = arith.constant 0 : index
      %c0_30 = arith.constant 0 : index
      %49 = vector.load %arg8[%c0_29, %c0_30] : memref<8x1xf32, #tpu.memory_space<vmem>>, vector<8x1xf32>
      tpu.vector_store %arg8[%c0_29, %c0_30], %48 {strides = array<i32>} : memref<8x1xf32, #tpu.memory_space<vmem>>, vector<8x1xf32>,
      %cst_31 = arith.constant 0.000000e+00 : f32
      %50 = vector.broadcast %cst_31 : f32 to vector<8x1xf32>
      %c0_32 = arith.constant 0 : index
      %c0_33 = arith.constant 0 : index
      %51 = vector.load %arg9[%c0_32, %c0_33] : memref<8x1xf32, #tpu.memory_space<vmem>>, vector<8x1xf32>
      tpu.vector_store %arg9[%c0_32, %c0_33], %50 {strides = array<i32>} : memref<8x1xf32, #tpu.memory_space<vmem>>, vector<8x1xf32>,
      %cst_34 = arith.constant 0.000000e+00 : f32
      %52 = vector.broadcast %cst_34 : f32 to vector<8x16xf32>
      %c0_35 = arith.constant 0 : index
      %c0_36 = arith.constant 0 : index
      %53 = vector.load %arg10[%c0_35, %c0_36] : memref<8x16xf32, #tpu.memory_space<vmem>>, vector<8x16xf32>
      tpu.vector_store %arg10[%c0_35, %c0_36], %52 {strides = array<i32>} : memref<8x16xf32, #tpu.memory_space<vmem>>, vector<8x16xf32>,
    } else {
    }
    %c0 = arith.constant 0 : index
    %c0_1 = arith.constant 0 : index
    %c0_2 = arith.constant 0 : index
    %3 = vector.load %arg4[%c0, %c0_1, %c0_2] : memref<1x8x16xbf16, #tpu.memory_space<vmem>>, vector<1x8x16xbf16>
    %4 = vector.shape_cast %3 : vector<1x8x16xbf16> to vector<8x16xbf16>
    %c0_3 = arith.constant 0 : index
    %c0_4 = arith.constant 0 : index
    %c0_5 = arith.constant 0 : index
    %5 = vector.load %arg5[%c0_3, %c0_4, %c0_5] : memref<1x8x16xbf16, #tpu.memory_space<vmem>>, vector<1x8x16xbf16>
    %6 = vector.shape_cast %5 : vector<1x8x16xbf16> to vector<8x16xbf16>
    %cst = arith.constant dense<0.000000e+00> : vector<8x8xf32>
    %7 = tpu.matmul %4, %6, %cst {dimension_numbers = #tpu.dot_dimension_numbers<[1], [1], [0], [0], [0, 0, 1, 0], [], []>} : vector<8x16xbf16>, vector<8x16xbf16>, vector<8x8xf32> -> vector<8x8xf32>
    %cst_6 = arith.constant 2.500000e-01 : f32
    %8 = vector.broadcast %cst_6 : f32 to vector<8x8xf32>
    %9 = arith.mulf %7, %8 : vector<8x8xf32>
    %c8_i32 = arith.constant 8 : i32
    %10 = arith.muli %arg2, %c8_i32 : i32
    %11 = tpu.iota {dimensions = array<i32: 1>} : vector<8x8xi32>
    %12 = vector.broadcast %10 : i32 to vector<8x8xi32>
    %13 = arith.addi %12, %11 : vector<8x8xi32>
    %14 = arith.index_cast %arg0 : i32 to index
    %15 = memref.load %arg3[%14] : memref<4xi32, #tpu.memory_space<smem>>
    %16 = vector.broadcast %15 : i32 to vector<8x8xi32>
    %17 = arith.cmpi slt, %13, %16 : vector<8x8xi32>
    %cst_7 = arith.constant -1.000000e+06 : f32
    %18 = vector.broadcast %cst_7 : f32 to vector<8x8xf32>
    %19 = arith.select %17, %9, %18 : vector<8x8xi1>, vector<8x8xf32>
    %c0_8 = arith.constant 0 : index
    %c0_9 = arith.constant 0 : index
    %20 = vector.load %arg8[%c0_8, %c0_9] : memref<8x1xf32, #tpu.memory_space<vmem>>, vector<8x1xf32>
    %cst_10 = arith.constant dense<0xFF800000> : vector<8xf32>
    %21 = vector.multi_reduction <maximumf>, %19, %cst_10 [1] : vector<8x8xf32> to vector<8xf32>
    %22 = vector.shape_cast %21 : vector<8xf32> to vector<8x1xf32>
    %23 = arith.maximumf %20, %22 : vector<8x1xf32>
    %24 = arith.subf %20, %23 : vector<8x1xf32>
    %25 = math.exp %24 : vector<8x1xf32>
    %26 = vector.broadcast %23 : vector<8x1xf32> to vector<8x8xf32>
    %27 = arith.subf %19, %26 : vector<8x8xf32>
    %28 = math.exp %27 : vector<8x8xf32>
    %c0_11 = arith.constant 0 : index
    %c0_12 = arith.constant 0 : index
    %29 = vector.load %arg9[%c0_11, %c0_12] : memref<8x1xf32, #tpu.memory_space<vmem>>, vector<8x1xf32>
    %30 = arith.mulf %25, %29 : vector<8x1xf32>
    %cst_13 = arith.constant dense<0.000000e+00> : vector<8xf32>
    %31 = vector.multi_reduction <add>, %28, %cst_13 [1] : vector<8x8xf32> to vector<8xf32>
    %32 = vector.shape_cast %31 : vector<8xf32> to vector<8x1xf32>
    %33 = arith.addf %30, %32 : vector<8x1xf32>
    %c0_14 = arith.constant 0 : index
    %c0_15 = arith.constant 0 : index
    %34 = vector.load %arg9[%c0_14, %c0_15] : memref<8x1xf32, #tpu.memory_space<vmem>>, vector<8x1xf32>
    tpu.vector_store %arg9[%c0_14, %c0_15], %33 {strides = array<i32>} : memref<8x1xf32, #tpu.memory_space<vmem>>, vector<8x1xf32>,
    %c0_16 = arith.constant 0 : index
    %c0_17 = arith.constant 0 : index
    %35 = vector.load %arg10[%c0_16, %c0_17] : memref<8x16xf32, #tpu.memory_space<vmem>>, vector<8x16xf32>
    %36 = vector.broadcast %25 : vector<8x1xf32> to vector<8x16xf32>
    %37 = arith.mulf %36, %35 : vector<8x16xf32>
    %38 = arith.truncf %28 : vector<8x8xf32> to vector<8x8xbf16>
    %c0_18 = arith.constant 0 : index
    %c0_19 = arith.constant 0 : index
    %c0_20 = arith.constant 0 : index
    %39 = vector.load %arg6[%c0_18, %c0_19, %c0_20] : memref<1x8x16xbf16, #tpu.memory_space<vmem>>, vector<1x8x16xbf16>
    %40 = vector.shape_cast %39 : vector<1x8x16xbf16> to vector<8x16xbf16>
    %cst_21 = arith.constant dense<0.000000e+00> : vector<8x16xf32>
    %41 = tpu.matmul %38, %40, %cst_21 {dimension_numbers = #tpu.dot_dimension_numbers<[1], [0], [0], [1], [0, 0, 1, 1], [], []>} : vector<8x8xbf16>, vector<8x16xbf16>, vector<8x16xf32> -> vector<8x16xf32>
    %42 = arith.addf %37, %41 : vector<8x16xf32>
    %c0_22 = arith.constant 0 : index
    %c0_23 = arith.constant 0 : index
    %43 = vector.load %arg10[%c0_22, %c0_23] : memref<8x16xf32, #tpu.memory_space<vmem>>, vector<8x16xf32>
    tpu.vector_store %arg10[%c0_22, %c0_23], %42 {strides = array<i32>} : memref<8x16xf32, #tpu.memory_space<vmem>>, vector<8x16xf32>,
    %c0_24 = arith.constant 0 : index
    %c0_25 = arith.constant 0 : index
    %44 = vector.load %arg8[%c0_24, %c0_25] : memref<8x1xf32, #tpu.memory_space<vmem>>, vector<8x1xf32>
    tpu.vector_store %arg8[%c0_24, %c0_25], %23 {strides = array<i32>} : memref<8x1xf32, #tpu.memory_space<vmem>>, vector<8x1xf32>,
    %c0_i32_26 = arith.constant 0 : i32
    %45 = arith.cmpi eq, %arg2, %c0_i32_26 : i32
    %46 = arith.extui %45 : i1 to i32
    %c0_i32_27 = arith.constant 0 : i32
    %47 = arith.cmpi ne, %46, %c0_i32_27 : i32
    scf.if %47 {
      %c0_28 = arith.constant 0 : index
      %c0_29 = arith.constant 0 : index
      %48 = vector.load %arg10[%c0_28, %c0_29] : memref<8x16xf32, #tpu.memory_space<vmem>>, vector<8x16xf32>
      %c0_30 = arith.constant 0 : index
      %c0_31 = arith.constant 0 : index
      %49 = vector.load %arg9[%c0_30, %c0_31] : memref<8x1xf32, #tpu.memory_space<vmem>>, vector<8x1xf32>
      %50 = tpu.reciprocal %49 {approx = true} : vector<8x1xf32> -> vector<8x1xf32>
      %51 = vector.broadcast %50 : vector<8x1xf32> to vector<8x16xf32>
      %52 = arith.mulf %48, %51 : vector<8x16xf32>
      %53 = arith.truncf %52 : vector<8x16xf32> to vector<8x16xbf16>
      %c0_32 = arith.constant 0 : index
      %c0_33 = arith.constant 0 : index
      %c0_34 = arith.constant 0 : index
      %54 = vector.load %arg7[%c0_32, %c0_33, %c0_34] : memref<1x8x16xbf16, #tpu.memory_space<vmem>>, vector<1x8x16xbf16>
      %55 = vector.shape_cast %54 : vector<1x8x16xbf16> to vector<8x16xbf16>
      %56 = vector.shape_cast %53 : vector<8x16xbf16> to vector<1x8x16xbf16>
      tpu.vector_store %arg7[%c0_32, %c0_33, %c0_34], %56 {strides = array<i32>} : memref<1x8x16xbf16, #tpu.memory_space<vmem>>, vector<1x8x16xbf16>,
    } else {
    }
    return
  }
  func.func @transform_0(%arg0: i32, %arg1: i32, %arg2: i32, %arg3: memref<4xi32, #tpu.memory_space<smem>>) -> (i32, i32, i32) {
    %c0_i32 = arith.constant 0 : i32
    %c0_i32_0 = arith.constant 0 : i32
    return %arg0, %arg1, %c0_i32 : i32, i32, i32
  }
  func.func @transform_1(%arg0: i32, %arg1: i32, %arg2: i32, %arg3: memref<4xi32, #tpu.memory_space<smem>>) -> (i32, i32, i32) {
    %c0_i32 = arith.constant 0 : i32
    %c0_i32_0 = arith.constant 0 : i32
    return %arg0, %arg2, %c0_i32 : i32, i32, i32
  }
  func.func @transform_2(%arg0: i32, %arg1: i32, %arg2: i32, %arg3: memref<4xi32, #tpu.memory_space<smem>>) -> (i32, i32, i32) {
    %c0_i32 = arith.constant 0 : i32
    %c0_i32_0 = arith.constant 0 : i32
    return %arg0, %arg2, %c0_i32 : i32, i32, i32
  }
  func.func @transform_3(%arg0: i32, %arg1: i32, %arg2: i32, %arg3: memref<4xi32, #tpu.memory_space<smem>>) -> (i32, i32, i32) {
    %c0_i32 = arith.constant 0 : i32
    %c0_i32_0 = arith.constant 0 : i32
    return %arg0, %arg1, %c0_i32 : i32, i32, i32
  }
}

module attributes {stable_mosaic.version = 11 : i64} {
  func.func @_matmul_ln_kernel(%arg0: i32, %arg1: i32, %arg2: memref<16x32xbf16, #tpu.memory_space<vmem>>, %arg3: memref<32x32xbf16, #tpu.memory_space<vmem>>, %arg4: memref<1x32xf32, #tpu.memory_space<vmem>>, %arg5: memref<16x32xbf16, #tpu.memory_space<vmem>>, %arg6: memref<1x32xf32, #tpu.memory_space<vmem>>, %arg7: memref<1x32xf32, #tpu.memory_space<vmem>>, %arg8: memref<16x32xbf16, #tpu.memory_space<vmem>>, %arg9: memref<16x32xf32, #tpu.memory_space<vmem>>) attributes {dimension_semantics = [#tpu.dimension_semantics<parallel>, #tpu.dimension_semantics<arbitrary>], iteration_bounds = array<i64: 1, 1>, scalar_prefetch = 0 : i64, scratch_operands = 1 : i64, tpu.core_type = #tpu.core_type<tc>, window_params = [{transform_indices = @transform_0, window_bounds = array<i64: 16, 32>}, {transform_indices = @transform_1, window_bounds = array<i64: 32, 32>}, {pipeline_mode = #tpu.pipeline_mode<synchronous>, transform_indices = @transform_2, window_bounds = array<i64: 1, 32>}, {transform_indices = @transform_3, window_bounds = array<i64: 16, 32>}, {pipeline_mode = #tpu.pipeline_mode<synchronous>, transform_indices = @transform_4, window_bounds = array<i64: 1, 32>}, {pipeline_mode = #tpu.pipeline_mode<synchronous>, transform_indices = @transform_5, window_bounds = array<i64: 1, 32>}, {transform_indices = @transform_6, window_bounds = array<i64: 16, 32>}]} {
    %c0_i32 = arith.constant 0 : i32
    %0 = arith.cmpi eq, %arg1, %c0_i32 : i32
    %1 = arith.extui %0 : i1 to i32
    %c0_i32_0 = arith.constant 0 : i32
    %2 = arith.cmpi ne, %1, %c0_i32_0 : i32
    scf.if %2 {
      %cst_10 = arith.constant 0.000000e+00 : f32
      %12 = vector.broadcast %cst_10 : f32 to vector<16x32xf32>
      %c0_11 = arith.constant 0 : index
      %c0_12 = arith.constant 0 : index
      %13 = vector.load %arg9[%c0_11, %c0_12] : memref<16x32xf32, #tpu.memory_space<vmem>>, vector<16x32xf32>
      tpu.vector_store %arg9[%c0_11, %c0_12], %12 {strides = array<i32>} : memref<16x32xf32, #tpu.memory_space<vmem>>, vector<16x32xf32>,
    } else {
    }
    %c0 = arith.constant 0 : index
    %c0_1 = arith.constant 0 : index
    %3 = vector.load %arg9[%c0, %c0_1] : memref<16x32xf32, #tpu.memory_space<vmem>>, vector<16x32xf32>
    %c0_2 = arith.constant 0 : index
    %c0_3 = arith.constant 0 : index
    %4 = vector.load %arg2[%c0_2, %c0_3] : memref<16x32xbf16, #tpu.memory_space<vmem>>, vector<16x32xbf16>
    %c0_4 = arith.constant 0 : index
    %c0_5 = arith.constant 0 : index
    %5 = vector.load %arg3[%c0_4, %c0_5] : memref<32x32xbf16, #tpu.memory_space<vmem>>, vector<32x32xbf16>
    %cst = arith.constant dense<0.000000e+00> : vector<16x32xf32>
    %6 = tpu.matmul %4, %5, %cst {dimension_numbers = #tpu.dot_dimension_numbers<[1], [0], [0], [1], [0, 0, 1, 1], [], []>} : vector<16x32xbf16>, vector<32x32xbf16>, vector<16x32xf32> -> vector<16x32xf32>
    %7 = arith.addf %3, %6 : vector<16x32xf32>
    %c0_6 = arith.constant 0 : index
    %c0_7 = arith.constant 0 : index
    %8 = vector.load %arg9[%c0_6, %c0_7] : memref<16x32xf32, #tpu.memory_space<vmem>>, vector<16x32xf32>
    tpu.vector_store %arg9[%c0_6, %c0_7], %7 {strides = array<i32>} : memref<16x32xf32, #tpu.memory_space<vmem>>, vector<16x32xf32>,
    %c0_i32_8 = arith.constant 0 : i32
    %9 = arith.cmpi eq, %arg1, %c0_i32_8 : i32
    %10 = arith.extui %9 : i1 to i32
    %c0_i32_9 = arith.constant 0 : i32
    %11 = arith.cmpi ne, %10, %c0_i32_9 : i32
    scf.if %11 {
      %c0_10 = arith.constant 0 : index
      %c0_11 = arith.constant 0 : index
      %12 = vector.load %arg9[%c0_10, %c0_11] : memref<16x32xf32, #tpu.memory_space<vmem>>, vector<16x32xf32>
      %c0_12 = arith.constant 0 : index
      %c0_13 = arith.constant 0 : index
      %13 = vector.load %arg4[%c0_12, %c0_13] : memref<1x32xf32, #tpu.memory_space<vmem>>, vector<1x32xf32>
      %14 = vector.broadcast %13 : vector<1x32xf32> to vector<16x32xf32>
      %15 = arith.addf %12, %14 : vector<16x32xf32>
      %c0_14 = arith.constant 0 : index
      %c0_15 = arith.constant 0 : index
      %16 = vector.load %arg5[%c0_14, %c0_15] : memref<16x32xbf16, #tpu.memory_space<vmem>>, vector<16x32xbf16>
      %17 = arith.extf %16 : vector<16x32xbf16> to vector<16x32xf32>
      %18 = arith.addf %15, %17 : vector<16x32xf32>
      %c0_16 = arith.constant 0 : index
      %c0_17 = arith.constant 0 : index
      %19 = vector.load %arg6[%c0_16, %c0_17] : memref<1x32xf32, #tpu.memory_space<vmem>>, vector<1x32xf32>
      %c0_18 = arith.constant 0 : index
      %c0_19 = arith.constant 0 : index
      %20 = vector.load %arg7[%c0_18, %c0_19] : memref<1x32xf32, #tpu.memory_space<vmem>>, vector<1x32xf32>
      %cst_20 = arith.constant dense<0.000000e+00> : vector<16xf32>
      %21 = vector.multi_reduction <add>, %18, %cst_20 [1] : vector<16x32xf32> to vector<16xf32>
      %22 = vector.shape_cast %21 : vector<16xf32> to vector<16x1xf32>
      %cst_21 = arith.constant 3.200000e+01 : f32
      %23 = vector.broadcast %cst_21 : f32 to vector<16x1xf32>
      %24 = arith.divf %22, %23 : vector<16x1xf32>
      %25 = vector.broadcast %24 : vector<16x1xf32> to vector<16x32xf32>
      %26 = arith.subf %18, %25 : vector<16x32xf32>
      %27 = arith.mulf %26, %26 : vector<16x32xf32>
      %cst_22 = arith.constant dense<0.000000e+00> : vector<16xf32>
      %28 = vector.multi_reduction <add>, %27, %cst_22 [1] : vector<16x32xf32> to vector<16xf32>
      %29 = vector.shape_cast %28 : vector<16xf32> to vector<16x1xf32>
      %cst_23 = arith.constant 3.200000e+01 : f32
      %30 = vector.broadcast %cst_23 : f32 to vector<16x1xf32>
      %31 = arith.divf %29, %30 : vector<16x1xf32>
      %32 = vector.broadcast %24 : vector<16x1xf32> to vector<16x32xf32>
      %33 = arith.subf %18, %32 : vector<16x32xf32>
      %cst_24 = arith.constant 9.99999996E-13 : f32
      %34 = vector.broadcast %cst_24 : f32 to vector<16x1xf32>
      %35 = arith.addf %31, %34 : vector<16x1xf32>
      %36 = math.rsqrt %35 : vector<16x1xf32>
      %37 = vector.broadcast %36 : vector<16x1xf32> to vector<16x32xf32>
      %38 = arith.mulf %33, %37 : vector<16x32xf32>
      %39 = vector.broadcast %19 : vector<1x32xf32> to vector<16x32xf32>
      %40 = arith.mulf %38, %39 : vector<16x32xf32>
      %41 = vector.broadcast %20 : vector<1x32xf32> to vector<16x32xf32>
      %42 = arith.addf %40, %41 : vector<16x32xf32>
      %43 = arith.truncf %42 : vector<16x32xf32> to vector<16x32xbf16>
      %c0_25 = arith.constant 0 : index
      %c0_26 = arith.constant 0 : index
      %44 = vector.load %arg8[%c0_25, %c0_26] : memref<16x32xbf16, #tpu.memory_space<vmem>>, vector<16x32xbf16>
      tpu.vector_store %arg8[%c0_25, %c0_26], %43 {strides = array<i32>} : memref<16x32xbf16, #tpu.memory_space<vmem>>, vector<16x32xbf16>,
    } else {
    }
    return
  }
  func.func @transform_0(%arg0: i32, %arg1: i32) -> (i32, i32) {
    %c0_i32 = arith.constant 0 : i32
    return %arg0, %arg1 : i32, i32
  }
  func.func @transform_1(%arg0: i32, %arg1: i32) -> (i32, i32) {
    %c0_i32 = arith.constant 0 : i32
    %c0_i32_0 = arith.constant 0 : i32
    return %arg1, %c0_i32 : i32, i32
  }
  func.func @transform_2(%arg0: i32, %arg1: i32) -> (i32, i32) {
    %c0_i32 = arith.constant 0 : i32
    %c0_i32_0 = arith.constant 0 : i32
    %c0_i32_1 = arith.constant 0 : i32
    return %c0_i32, %c0_i32_0 : i32, i32
  }
  func.func @transform_3(%arg0: i32, %arg1: i32) -> (i32, i32) {
    %c0_i32 = arith.constant 0 : i32
    %c0_i32_0 = arith.constant 0 : i32
    return %arg0, %c0_i32 : i32, i32
  }
  func.func @transform_4(%arg0: i32, %arg1: i32) -> (i32, i32) {
    %c0_i32 = arith.constant 0 : i32
    %c0_i32_0 = arith.constant 0 : i32
    %c0_i32_1 = arith.constant 0 : i32
    return %c0_i32, %c0_i32_0 : i32, i32
  }
  func.func @transform_5(%arg0: i32, %arg1: i32) -> (i32, i32) {
    %c0_i32 = arith.constant 0 : i32
    %c0_i32_0 = arith.constant 0 : i32
    %c0_i32_1 = arith.constant 0 : i32
    return %c0_i32, %c0_i32_0 : i32, i32
  }
  func.func @transform_6(%arg0: i32, %arg1: i32) -> (i32, i32) {
    %c0_i32 = arith.constant 0 : i32
    %c0_i32_0 = arith.constant 0 : i32
    return %arg0, %c0_i32 : i32, i32
  }
}

module attributes {stable_mosaic.version = 11 : i64} {
  func.func @_matmul_kernel(%arg0: i32, %arg1: i32, %arg2: i32, %arg3: memref<16x32xbf16, #tpu.memory_space<vmem>>, %arg4: memref<32x64xbf16, #tpu.memory_space<vmem>>, %arg5: memref<1x64xf32, #tpu.memory_space<vmem>>, %arg6: memref<16x64xbf16, #tpu.memory_space<vmem>>, %arg7: memref<16x64xf32, #tpu.memory_space<vmem>>) attributes {dimension_semantics = [#tpu.dimension_semantics<parallel>, #tpu.dimension_semantics<parallel>, #tpu.dimension_semantics<arbitrary>], iteration_bounds = array<i64: 1, 1, 1>, scalar_prefetch = 0 : i64, scratch_operands = 1 : i64, tpu.core_type = #tpu.core_type<tc>, window_params = [{transform_indices = @transform_0, window_bounds = array<i64: 16, 32>}, {transform_indices = @transform_1, window_bounds = array<i64: 32, 64>}, {transform_indices = @transform_2, window_bounds = array<i64: 1, 64>}, {transform_indices = @transform_3, window_bounds = array<i64: 16, 64>}]} {
    %c0_i32 = arith.constant 0 : i32
    %0 = arith.cmpi eq, %arg2, %c0_i32 : i32
    %1 = arith.extui %0 : i1 to i32
    %c0_i32_0 = arith.constant 0 : i32
    %2 = arith.cmpi ne, %1, %c0_i32_0 : i32
    scf.if %2 {
      %cst_10 = arith.constant 0.000000e+00 : f32
      %12 = vector.broadcast %cst_10 : f32 to vector<16x64xf32>
      %c0_11 = arith.constant 0 : index
      %c0_12 = arith.constant 0 : index
      %13 = vector.load %arg7[%c0_11, %c0_12] : memref<16x64xf32, #tpu.memory_space<vmem>>, vector<16x64xf32>
      tpu.vector_store %arg7[%c0_11, %c0_12], %12 {strides = array<i32>} : memref<16x64xf32, #tpu.memory_space<vmem>>, vector<16x64xf32>,
    } else {
    }
    %c0 = arith.constant 0 : index
    %c0_1 = arith.constant 0 : index
    %3 = vector.load %arg7[%c0, %c0_1] : memref<16x64xf32, #tpu.memory_space<vmem>>, vector<16x64xf32>
    %c0_2 = arith.constant 0 : index
    %c0_3 = arith.constant 0 : index
    %4 = vector.load %arg3[%c0_2, %c0_3] : memref<16x32xbf16, #tpu.memory_space<vmem>>, vector<16x32xbf16>
    %c0_4 = arith.constant 0 : index
    %c0_5 = arith.constant 0 : index
    %5 = vector.load %arg4[%c0_4, %c0_5] : memref<32x64xbf16, #tpu.memory_space<vmem>>, vector<32x64xbf16>
    %cst = arith.constant dense<0.000000e+00> : vector<16x64xf32>
    %6 = tpu.matmul %4, %5, %cst {dimension_numbers = #tpu.dot_dimension_numbers<[1], [0], [0], [1], [0, 0, 1, 1], [], []>} : vector<16x32xbf16>, vector<32x64xbf16>, vector<16x64xf32> -> vector<16x64xf32>
    %7 = arith.addf %3, %6 : vector<16x64xf32>
    %c0_6 = arith.constant 0 : index
    %c0_7 = arith.constant 0 : index
    %8 = vector.load %arg7[%c0_6, %c0_7] : memref<16x64xf32, #tpu.memory_space<vmem>>, vector<16x64xf32>
    tpu.vector_store %arg7[%c0_6, %c0_7], %7 {strides = array<i32>} : memref<16x64xf32, #tpu.memory_space<vmem>>, vector<16x64xf32>,
    %c0_i32_8 = arith.constant 0 : i32
    %9 = arith.cmpi eq, %arg2, %c0_i32_8 : i32
    %10 = arith.extui %9 : i1 to i32
    %c0_i32_9 = arith.constant 0 : i32
    %11 = arith.cmpi ne, %10, %c0_i32_9 : i32
    scf.if %11 {
      %c0_10 = arith.constant 0 : index
      %c0_11 = arith.constant 0 : index
      %12 = vector.load %arg7[%c0_10, %c0_11] : memref<16x64xf32, #tpu.memory_space<vmem>>, vector<16x64xf32>
      %c0_12 = arith.constant 0 : index
      %c0_13 = arith.constant 0 : index
      %13 = vector.load %arg5[%c0_12, %c0_13] : memref<1x64xf32, #tpu.memory_space<vmem>>, vector<1x64xf32>
      %14 = vector.broadcast %13 : vector<1x64xf32> to vector<16x64xf32>
      %15 = arith.addf %12, %14 : vector<16x64xf32>
      %cst_14 = arith.constant 0.000000e+00 : f32
      %16 = vector.broadcast %cst_14 : f32 to vector<16x64xf32>
      %17 = arith.maximumf %15, %16 : vector<16x64xf32>
      %18 = arith.truncf %17 : vector<16x64xf32> to vector<16x64xbf16>
      %c0_15 = arith.constant 0 : index
      %c0_16 = arith.constant 0 : index
      %19 = vector.load %arg6[%c0_15, %c0_16] : memref<16x64xbf16, #tpu.memory_space<vmem>>, vector<16x64xbf16>
      tpu.vector_store %arg6[%c0_15, %c0_16], %18 {strides = array<i32>} : memref<16x64xbf16, #tpu.memory_space<vmem>>, vector<16x64xbf16>,
    } else {
    }
    return
  }
  func.func @transform_0(%arg0: i32, %arg1: i32, %arg2: i32) -> (i32, i32) {
    %c0_i32 = arith.constant 0 : i32
    return %arg0, %arg2 : i32, i32
  }
  func.func @transform_1(%arg0: i32, %arg1: i32, %arg2: i32) -> (i32, i32) {
    %c0_i32 = arith.constant 0 : i32
    return %arg2, %arg1 : i32, i32
  }
  func.func @transform_2(%arg0: i32, %arg1: i32, %arg2: i32) -> (i32, i32) {
    %c0_i32 = arith.constant 0 : i32
    %c0_i32_0 = arith.constant 0 : i32
    return %c0_i32, %arg1 : i32, i32
  }
  func.func @transform_3(%arg0: i32, %arg1: i32, %arg2: i32) -> (i32, i32) {
    %c0_i32 = arith.constant 0 : i32
    return %arg0, %arg1 : i32, i32
  }
}

module attributes {stable_mosaic.version = 11 : i64} {
  func.func @_matmul_ln_kernel(%arg0: i32, %arg1: i32, %arg2: memref<16x64xbf16, #tpu.memory_space<vmem>>, %arg3: memref<64x32xbf16, #tpu.memory_space<vmem>>, %arg4: memref<1x32xf32, #tpu.memory_space<vmem>>, %arg5: memref<16x32xbf16, #tpu.memory_space<vmem>>, %arg6: memref<1x32xf32, #tpu.memory_space<vmem>>, %arg7: memref<1x32xf32, #tpu.memory_space<vmem>>, %arg8: memref<16x32xbf16, #tpu.memory_space<vmem>>, %arg9: memref<16x32xf32, #tpu.memory_space<vmem>>) attributes {dimension_semantics = [#tpu.dimension_semantics<parallel>, #tpu.dimension_semantics<arbitrary>], iteration_bounds = array<i64: 1, 1>, scalar_prefetch = 0 : i64, scratch_operands = 1 : i64, tpu.core_type = #tpu.core_type<tc>, window_params = [{transform_indices = @transform_0, window_bounds = array<i64: 16, 64>}, {transform_indices = @transform_1, window_bounds = array<i64: 64, 32>}, {pipeline_mode = #tpu.pipeline_mode<synchronous>, transform_indices = @transform_2, window_bounds = array<i64: 1, 32>}, {transform_indices = @transform_3, window_bounds = array<i64: 16, 32>}, {pipeline_mode = #tpu.pipeline_mode<synchronous>, transform_indices = @transform_4, window_bounds = array<i64: 1, 32>}, {pipeline_mode = #tpu.pipeline_mode<synchronous>, transform_indices = @transform_5, window_bounds = array<i64: 1, 32>}, {transform_indices = @transform_6, window_bounds = array<i64: 16, 32>}]} {
    %c0_i32 = arith.constant 0 : i32
    %0 = arith.cmpi eq, %arg1, %c0_i32 : i32
    %1 = arith.extui %0 : i1 to i32
    %c0_i32_0 = arith.constant 0 : i32
    %2 = arith.cmpi ne, %1, %c0_i32_0 : i32
    scf.if %2 {
      %cst_10 = arith.constant 0.000000e+00 : f32
      %12 = vector.broadcast %cst_10 : f32 to vector<16x32xf32>
      %c0_11 = arith.constant 0 : index
      %c0_12 = arith.constant 0 : index
      %13 = vector.load %arg9[%c0_11, %c0_12] : memref<16x32xf32, #tpu.memory_space<vmem>>, vector<16x32xf32>
      tpu.vector_store %arg9[%c0_11, %c0_12], %12 {strides = array<i32>} : memref<16x32xf32, #tpu.memory_space<vmem>>, vector<16x32xf32>,
    } else {
    }
    %c0 = arith.constant 0 : index
    %c0_1 = arith.constant 0 : index
    %3 = vector.load %arg9[%c0, %c0_1] : memref<16x32xf32, #tpu.memory_space<vmem>>, vector<16x32xf32>
    %c0_2 = arith.constant 0 : index
    %c0_3 = arith.constant 0 : index
    %4 = vector.load %arg2[%c0_2, %c0_3] : memref<16x64xbf16, #tpu.memory_space<vmem>>, vector<16x64xbf16>
    %c0_4 = arith.constant 0 : index
    %c0_5 = arith.constant 0 : index
    %5 = vector.load %arg3[%c0_4, %c0_5] : memref<64x32xbf16, #tpu.memory_space<vmem>>, vector<64x32xbf16>
    %cst = arith.constant dense<0.000000e+00> : vector<16x32xf32>
    %6 = tpu.matmul %4, %5, %cst {dimension_numbers = #tpu.dot_dimension_numbers<[1], [0], [0], [1], [0, 0, 1, 1], [], []>} : vector<16x64xbf16>, vector<64x32xbf16>, vector<16x32xf32> -> vector<16x32xf32>
    %7 = arith.addf %3, %6 : vector<16x32xf32>
    %c0_6 = arith.constant 0 : index
    %c0_7 = arith.constant 0 : index
    %8 = vector.load %arg9[%c0_6, %c0_7] : memref<16x32xf32, #tpu.memory_space<vmem>>, vector<16x32xf32>
    tpu.vector_store %arg9[%c0_6, %c0_7], %7 {strides = array<i32>} : memref<16x32xf32, #tpu.memory_space<vmem>>, vector<16x32xf32>,
    %c0_i32_8 = arith.constant 0 : i32
    %9 = arith.cmpi eq, %arg1, %c0_i32_8 : i32
    %10 = arith.extui %9 : i1 to i32
    %c0_i32_9 = arith.constant 0 : i32
    %11 = arith.cmpi ne, %10, %c0_i32_9 : i32
    scf.if %11 {
      %c0_10 = arith.constant 0 : index
      %c0_11 = arith.constant 0 : index
      %12 = vector.load %arg9[%c0_10, %c0_11] : memref<16x32xf32, #tpu.memory_space<vmem>>, vector<16x32xf32>
      %c0_12 = arith.constant 0 : index
      %c0_13 = arith.constant 0 : index
      %13 = vector.load %arg4[%c0_12, %c0_13] : memref<1x32xf32, #tpu.memory_space<vmem>>, vector<1x32xf32>
      %14 = vector.broadcast %13 : vector<1x32xf32> to vector<16x32xf32>
      %15 = arith.addf %12, %14 : vector<16x32xf32>
      %c0_14 = arith.constant 0 : index
      %c0_15 = arith.constant 0 : index
      %16 = vector.load %arg5[%c0_14, %c0_15] : memref<16x32xbf16, #tpu.memory_space<vmem>>, vector<16x32xbf16>
      %17 = arith.extf %16 : vector<16x32xbf16> to vector<16x32xf32>
      %18 = arith.addf %15, %17 : vector<16x32xf32>
      %c0_16 = arith.constant 0 : index
      %c0_17 = arith.constant 0 : index
      %19 = vector.load %arg6[%c0_16, %c0_17] : memref<1x32xf32, #tpu.memory_space<vmem>>, vector<1x32xf32>
      %c0_18 = arith.constant 0 : index
      %c0_19 = arith.constant 0 : index
      %20 = vector.load %arg7[%c0_18, %c0_19] : memref<1x32xf32, #tpu.memory_space<vmem>>, vector<1x32xf32>
      %cst_20 = arith.constant dense<0.000000e+00> : vector<16xf32>
      %21 = vector.multi_reduction <add>, %18, %cst_20 [1] : vector<16x32xf32> to vector<16xf32>
      %22 = vector.shape_cast %21 : vector<16xf32> to vector<16x1xf32>
      %cst_21 = arith.constant 3.200000e+01 : f32
      %23 = vector.broadcast %cst_21 : f32 to vector<16x1xf32>
      %24 = arith.divf %22, %23 : vector<16x1xf32>
      %25 = vector.broadcast %24 : vector<16x1xf32> to vector<16x32xf32>
      %26 = arith.subf %18, %25 : vector<16x32xf32>
      %27 = arith.mulf %26, %26 : vector<16x32xf32>
      %cst_22 = arith.constant dense<0.000000e+00> : vector<16xf32>
      %28 = vector.multi_reduction <add>, %27, %cst_22 [1] : vector<16x32xf32> to vector<16xf32>
      %29 = vector.shape_cast %28 : vector<16xf32> to vector<16x1xf32>
      %cst_23 = arith.constant 3.200000e+01 : f32
      %30 = vector.broadcast %cst_23 : f32 to vector<16x1xf32>
      %31 = arith.divf %29, %30 : vector<16x1xf32>
      %32 = vector.broadcast %24 : vector<16x1xf32> to vector<16x32xf32>
      %33 = arith.subf %18, %32 : vector<16x32xf32>
      %cst_24 = arith.constant 9.99999996E-13 : f32
      %34 = vector.broadcast %cst_24 : f32 to vector<16x1xf32>
      %35 = arith.addf %31, %34 : vector<16x1xf32>
      %36 = math.rsqrt %35 : vector<16x1xf32>
      %37 = vector.broadcast %36 : vector<16x1xf32> to vector<16x32xf32>
      %38 = arith.mulf %33, %37 : vector<16x32xf32>
      %39 = vector.broadcast %19 : vector<1x32xf32> to vector<16x32xf32>
      %40 = arith.mulf %38, %39 : vector<16x32xf32>
      %41 = vector.broadcast %20 : vector<1x32xf32> to vector<16x32xf32>
      %42 = arith.addf %40, %41 : vector<16x32xf32>
      %43 = arith.truncf %42 : vector<16x32xf32> to vector<16x32xbf16>
      %c0_25 = arith.constant 0 : index
      %c0_26 = arith.constant 0 : index
      %44 = vector.load %arg8[%c0_25, %c0_26] : memref<16x32xbf16, #tpu.memory_space<vmem>>, vector<16x32xbf16>
      tpu.vector_store %arg8[%c0_25, %c0_26], %43 {strides = array<i32>} : memref<16x32xbf16, #tpu.memory_space<vmem>>, vector<16x32xbf16>,
    } else {
    }
    return
  }
  func.func @transform_0(%arg0: i32, %arg1: i32) -> (i32, i32) {
    %c0_i32 = arith.constant 0 : i32
    return %arg0, %arg1 : i32, i32
  }
  func.func @transform_1(%arg0: i32, %arg1: i32) -> (i32, i32) {
    %c0_i32 = arith.constant 0 : i32
    %c0_i32_0 = arith.constant 0 : i32
    return %arg1, %c0_i32 : i32, i32
  }
  func.func @transform_2(%arg0: i32, %arg1: i32) -> (i32, i32) {
    %c0_i32 = arith.constant 0 : i32
    %c0_i32_0 = arith.constant 0 : i32
    %c0_i32_1 = arith.constant 0 : i32
    return %c0_i32, %c0_i32_0 : i32, i32
  }
  func.func @transform_3(%arg0: i32, %arg1: i32) -> (i32, i32) {
    %c0_i32 = arith.constant 0 : i32
    %c0_i32_0 = arith.constant 0 : i32
    return %arg0, %c0_i32 : i32, i32
  }
  func.func @transform_4(%arg0: i32, %arg1: i32) -> (i32, i32) {
    %c0_i32 = arith.constant 0 : i32
    %c0_i32_0 = arith.constant 0 : i32
    %c0_i32_1 = arith.constant 0 : i32
    return %c0_i32, %c0_i32_0 : i32, i32
  }
  func.func @transform_5(%arg0: i32, %arg1: i32) -> (i32, i32) {
    %c0_i32 = arith.constant 0 : i32
    %c0_i32_0 = arith.constant 0 : i32
    %c0_i32_1 = arith.constant 0 : i32
    return %c0_i32, %c0_i32_0 : i32, i32
  }
  func.func @transform_6(%arg0: i32, %arg1: i32) -> (i32, i32) {
    %c0_i32 = arith.constant 0 : i32
    %c0_i32_0 = arith.constant 0 : i32
    return %arg0, %c0_i32 : i32, i32
  }
}

module attributes {stable_mosaic.version = 11 : i64} {
  func.func @_matmul_wt_kernel(%arg0: i32, %arg1: i32, %arg2: i32, %arg3: memref<16x32xbf16, #tpu.memory_space<vmem>>, %arg4: memref<128x32xbf16, #tpu.memory_space<vmem>>, %arg5: memref<1x128xf32, #tpu.memory_space<vmem>>, %arg6: memref<16x128xf32, #tpu.memory_space<vmem>>, %arg7: memref<16x128xf32, #tpu.memory_space<vmem>>) attributes {dimension_semantics = [#tpu.dimension_semantics<parallel>, #tpu.dimension_semantics<parallel>, #tpu.dimension_semantics<arbitrary>], iteration_bounds = array<i64: 1, 1, 1>, scalar_prefetch = 0 : i64, scratch_operands = 1 : i64, tpu.core_type = #tpu.core_type<tc>, window_params = [{transform_indices = @transform_0, window_bounds = array<i64: 16, 32>}, {transform_indices = @transform_1, window_bounds = array<i64: 128, 32>}, {transform_indices = @transform_2, window_bounds = array<i64: 1, 128>}, {transform_indices = @transform_3, window_bounds = array<i64: 16, 128>}]} {
    %c0_i32 = arith.constant 0 : i32
    %0 = arith.cmpi eq, %arg2, %c0_i32 : i32
    %1 = arith.extui %0 : i1 to i32
    %c0_i32_0 = arith.constant 0 : i32
    %2 = arith.cmpi ne, %1, %c0_i32_0 : i32
    scf.if %2 {
      %cst_10 = arith.constant 0.000000e+00 : f32
      %12 = vector.broadcast %cst_10 : f32 to vector<16x128xf32>
      %c0_11 = arith.constant 0 : index
      %c0_12 = arith.constant 0 : index
      %13 = vector.load %arg7[%c0_11, %c0_12] : memref<16x128xf32, #tpu.memory_space<vmem>>, vector<16x128xf32>
      tpu.vector_store %arg7[%c0_11, %c0_12], %12 {strides = array<i32>} : memref<16x128xf32, #tpu.memory_space<vmem>>, vector<16x128xf32>,
    } else {
    }
    %c0 = arith.constant 0 : index
    %c0_1 = arith.constant 0 : index
    %3 = vector.load %arg7[%c0, %c0_1] : memref<16x128xf32, #tpu.memory_space<vmem>>, vector<16x128xf32>
    %c0_2 = arith.constant 0 : index
    %c0_3 = arith.constant 0 : index
    %4 = vector.load %arg3[%c0_2, %c0_3] : memref<16x32xbf16, #tpu.memory_space<vmem>>, vector<16x32xbf16>
    %c0_4 = arith.constant 0 : index
    %c0_5 = arith.constant 0 : index
    %5 = vector.load %arg4[%c0_4, %c0_5] : memref<128x32xbf16, #tpu.memory_space<vmem>>, vector<128x32xbf16>
    %cst = arith.constant dense<0.000000e+00> : vector<16x128xf32>
    %6 = tpu.matmul %4, %5, %cst {dimension_numbers = #tpu.dot_dimension_numbers<[1], [1], [0], [0], [0, 0, 1, 0], [], []>} : vector<16x32xbf16>, vector<128x32xbf16>, vector<16x128xf32> -> vector<16x128xf32>
    %7 = arith.addf %3, %6 : vector<16x128xf32>
    %c0_6 = arith.constant 0 : index
    %c0_7 = arith.constant 0 : index
    %8 = vector.load %arg7[%c0_6, %c0_7] : memref<16x128xf32, #tpu.memory_space<vmem>>, vector<16x128xf32>
    tpu.vector_store %arg7[%c0_6, %c0_7], %7 {strides = array<i32>} : memref<16x128xf32, #tpu.memory_space<vmem>>, vector<16x128xf32>,
    %c0_i32_8 = arith.constant 0 : i32
    %9 = arith.cmpi eq, %arg2, %c0_i32_8 : i32
    %10 = arith.extui %9 : i1 to i32
    %c0_i32_9 = arith.constant 0 : i32
    %11 = arith.cmpi ne, %10, %c0_i32_9 : i32
    scf.if %11 {
      %c0_10 = arith.constant 0 : index
      %c0_11 = arith.constant 0 : index
      %12 = vector.load %arg7[%c0_10, %c0_11] : memref<16x128xf32, #tpu.memory_space<vmem>>, vector<16x128xf32>
      %c0_12 = arith.constant 0 : index
      %c0_13 = arith.constant 0 : index
      %13 = vector.load %arg5[%c0_12, %c0_13] : memref<1x128xf32, #tpu.memory_space<vmem>>, vector<1x128xf32>
      %14 = vector.broadcast %13 : vector<1x128xf32> to vector<16x128xf32>
      %15 = arith.addf %12, %14 : vector<16x128xf32>
      %c0_14 = arith.constant 0 : index
      %c0_15 = arith.constant 0 : index
      %16 = vector.load %arg6[%c0_14, %c0_15] : memref<16x128xf32, #tpu.memory_space<vmem>>, vector<16x128xf32>
      tpu.vector_store %arg6[%c0_14, %c0_15], %15 {strides = array<i32>} : memref<16x128xf32, #tpu.memory_space<vmem>>, vector<16x128xf32>,
    } else {
    }
    return
  }
  func.func @transform_0(%arg0: i32, %arg1: i32, %arg2: i32) -> (i32, i32) {
    %c0_i32 = arith.constant 0 : i32
    return %arg0, %arg2 : i32, i32
  }
  func.func @transform_1(%arg0: i32, %arg1: i32, %arg2: i32) -> (i32, i32) {
    %c0_i32 = arith.constant 0 : i32
    return %arg1, %arg2 : i32, i32
  }
  func.func @transform_2(%arg0: i32, %arg1: i32, %arg2: i32) -> (i32, i32) {
    %c0_i32 = arith.constant 0 : i32
    %c0_i32_0 = arith.constant 0 : i32
    return %c0_i32, %arg1 : i32, i32
  }
  func.func @transform_3(%arg0: i32, %arg1: i32, %arg2: i32) -> (i32, i32) {
    %c0_i32 = arith.constant 0 : i32
    return %arg0, %arg1 : i32, i32
  }
}

module attributes {stable_mosaic.version = 11 : i64} {
  func.func @_matmul_ln_kernel(%arg0: i32, %arg1: i32, %arg2: memref<16x32xbf16, #tpu.memory_space<vmem>>, %arg3: memref<32x32xbf16, #tpu.memory_space<vmem>>, %arg4: memref<1x32xf32, #tpu.memory_space<vmem>>, %arg5: memref<1x32xf32, #tpu.memory_space<vmem>>, %arg6: memref<1x32xf32, #tpu.memory_space<vmem>>, %arg7: memref<16x32xbf16, #tpu.memory_space<vmem>>, %arg8: memref<16x32xf32, #tpu.memory_space<vmem>>) attributes {dimension_semantics = [#tpu.dimension_semantics<parallel>, #tpu.dimension_semantics<arbitrary>], iteration_bounds = array<i64: 1, 1>, scalar_prefetch = 0 : i64, scratch_operands = 1 : i64, tpu.core_type = #tpu.core_type<tc>, window_params = [{transform_indices = @transform_0, window_bounds = array<i64: 16, 32>}, {transform_indices = @transform_1, window_bounds = array<i64: 32, 32>}, {pipeline_mode = #tpu.pipeline_mode<synchronous>, transform_indices = @transform_2, window_bounds = array<i64: 1, 32>}, {pipeline_mode = #tpu.pipeline_mode<synchronous>, transform_indices = @transform_3, window_bounds = array<i64: 1, 32>}, {pipeline_mode = #tpu.pipeline_mode<synchronous>, transform_indices = @transform_4, window_bounds = array<i64: 1, 32>}, {transform_indices = @transform_5, window_bounds = array<i64: 16, 32>}]} {
    %c0_i32 = arith.constant 0 : i32
    %0 = arith.cmpi eq, %arg1, %c0_i32 : i32
    %1 = arith.extui %0 : i1 to i32
    %c0_i32_0 = arith.constant 0 : i32
    %2 = arith.cmpi ne, %1, %c0_i32_0 : i32
    scf.if %2 {
      %cst_10 = arith.constant 0.000000e+00 : f32
      %12 = vector.broadcast %cst_10 : f32 to vector<16x32xf32>
      %c0_11 = arith.constant 0 : index
      %c0_12 = arith.constant 0 : index
      %13 = vector.load %arg8[%c0_11, %c0_12] : memref<16x32xf32, #tpu.memory_space<vmem>>, vector<16x32xf32>
      tpu.vector_store %arg8[%c0_11, %c0_12], %12 {strides = array<i32>} : memref<16x32xf32, #tpu.memory_space<vmem>>, vector<16x32xf32>,
    } else {
    }
    %c0 = arith.constant 0 : index
    %c0_1 = arith.constant 0 : index
    %3 = vector.load %arg8[%c0, %c0_1] : memref<16x32xf32, #tpu.memory_space<vmem>>, vector<16x32xf32>
    %c0_2 = arith.constant 0 : index
    %c0_3 = arith.constant 0 : index
    %4 = vector.load %arg2[%c0_2, %c0_3] : memref<16x32xbf16, #tpu.memory_space<vmem>>, vector<16x32xbf16>
    %c0_4 = arith.constant 0 : index
    %c0_5 = arith.constant 0 : index
    %5 = vector.load %arg3[%c0_4, %c0_5] : memref<32x32xbf16, #tpu.memory_space<vmem>>, vector<32x32xbf16>
    %cst = arith.constant dense<0.000000e+00> : vector<16x32xf32>
    %6 = tpu.matmul %4, %5, %cst {dimension_numbers = #tpu.dot_dimension_numbers<[1], [0], [0], [1], [0, 0, 1, 1], [], []>} : vector<16x32xbf16>, vector<32x32xbf16>, vector<16x32xf32> -> vector<16x32xf32>
    %7 = arith.addf %3, %6 : vector<16x32xf32>
    %c0_6 = arith.constant 0 : index
    %c0_7 = arith.constant 0 : index
    %8 = vector.load %arg8[%c0_6, %c0_7] : memref<16x32xf32, #tpu.memory_space<vmem>>, vector<16x32xf32>
    tpu.vector_store %arg8[%c0_6, %c0_7], %7 {strides = array<i32>} : memref<16x32xf32, #tpu.memory_space<vmem>>, vector<16x32xf32>,
    %c0_i32_8 = arith.constant 0 : i32
    %9 = arith.cmpi eq, %arg1, %c0_i32_8 : i32
    %10 = arith.extui %9 : i1 to i32
    %c0_i32_9 = arith.constant 0 : i32
    %11 = arith.cmpi ne, %10, %c0_i32_9 : i32
    scf.if %11 {
      %c0_10 = arith.constant 0 : index
      %c0_11 = arith.constant 0 : index
      %12 = vector.load %arg8[%c0_10, %c0_11] : memref<16x32xf32, #tpu.memory_space<vmem>>, vector<16x32xf32>
      %c0_12 = arith.constant 0 : index
      %c0_13 = arith.constant 0 : index
      %13 = vector.load %arg4[%c0_12, %c0_13] : memref<1x32xf32, #tpu.memory_space<vmem>>, vector<1x32xf32>
      %14 = vector.broadcast %13 : vector<1x32xf32> to vector<16x32xf32>
      %15 = arith.addf %12, %14 : vector<16x32xf32>
      %cst_14 = arith.constant 5.000000e-01 : f32
      %16 = vector.broadcast %cst_14 : f32 to vector<16x32xf32>
      %17 = arith.mulf %16, %15 : vector<16x32xf32>
      %cst_15 = arith.constant 0.707106769 : f32
      %18 = vector.broadcast %cst_15 : f32 to vector<16x32xf32>
      %19 = arith.mulf %15, %18 : vector<16x32xf32>
      %20 = math.erf %19 : vector<16x32xf32>
      %cst_16 = arith.constant 1.000000e+00 : f32
      %21 = vector.broadcast %cst_16 : f32 to vector<16x32xf32>
      %22 = arith.addf %21, %20 : vector<16x32xf32>
      %23 = arith.mulf %17, %22 : vector<16x32xf32>
      %c0_17 = arith.constant 0 : index
      %c0_18 = arith.constant 0 : index
      %24 = vector.load %arg5[%c0_17, %c0_18] : memref<1x32xf32, #tpu.memory_space<vmem>>, vector<1x32xf32>
      %c0_19 = arith.constant 0 : index
      %c0_20 = arith.constant 0 : index
      %25 = vector.load %arg6[%c0_19, %c0_20] : memref<1x32xf32, #tpu.memory_space<vmem>>, vector<1x32xf32>
      %cst_21 = arith.constant dense<0.000000e+00> : vector<16xf32>
      %26 = vector.multi_reduction <add>, %23, %cst_21 [1] : vector<16x32xf32> to vector<16xf32>
      %27 = vector.shape_cast %26 : vector<16xf32> to vector<16x1xf32>
      %cst_22 = arith.constant 3.200000e+01 : f32
      %28 = vector.broadcast %cst_22 : f32 to vector<16x1xf32>
      %29 = arith.divf %27, %28 : vector<16x1xf32>
      %30 = vector.broadcast %29 : vector<16x1xf32> to vector<16x32xf32>
      %31 = arith.subf %23, %30 : vector<16x32xf32>
      %32 = arith.mulf %31, %31 : vector<16x32xf32>
      %cst_23 = arith.constant dense<0.000000e+00> : vector<16xf32>
      %33 = vector.multi_reduction <add>, %32, %cst_23 [1] : vector<16x32xf32> to vector<16xf32>
      %34 = vector.shape_cast %33 : vector<16xf32> to vector<16x1xf32>
      %cst_24 = arith.constant 3.200000e+01 : f32
      %35 = vector.broadcast %cst_24 : f32 to vector<16x1xf32>
      %36 = arith.divf %34, %35 : vector<16x1xf32>
      %37 = vector.broadcast %29 : vector<16x1xf32> to vector<16x32xf32>
      %38 = arith.subf %23, %37 : vector<16x32xf32>
      %cst_25 = arith.constant 9.99999996E-13 : f32
      %39 = vector.broadcast %cst_25 : f32 to vector<16x1xf32>
      %40 = arith.addf %36, %39 : vector<16x1xf32>
      %41 = math.rsqrt %40 : vector<16x1xf32>
      %42 = vector.broadcast %41 : vector<16x1xf32> to vector<16x32xf32>
      %43 = arith.mulf %38, %42 : vector<16x32xf32>
      %44 = vector.broadcast %24 : vector<1x32xf32> to vector<16x32xf32>
      %45 = arith.mulf %43, %44 : vector<16x32xf32>
      %46 = vector.broadcast %25 : vector<1x32xf32> to vector<16x32xf32>
      %47 = arith.addf %45, %46 : vector<16x32xf32>
      %48 = arith.truncf %47 : vector<16x32xf32> to vector<16x32xbf16>
      %c0_26 = arith.constant 0 : index
      %c0_27 = arith.constant 0 : index
      %49 = vector.load %arg7[%c0_26, %c0_27] : memref<16x32xbf16, #tpu.memory_space<vmem>>, vector<16x32xbf16>
      tpu.vector_store %arg7[%c0_26, %c0_27], %48 {strides = array<i32>} : memref<16x32xbf16, #tpu.memory_space<vmem>>, vector<16x32xbf16>,
    } else {
    }
    return
  }
  func.func @transform_0(%arg0: i32, %arg1: i32) -> (i32, i32) {
    %c0_i32 = arith.constant 0 : i32
    return %arg0, %arg1 : i32, i32
  }
  func.func @transform_1(%arg0: i32, %arg1: i32) -> (i32, i32) {
    %c0_i32 = arith.constant 0 : i32
    %c0_i32_0 = arith.constant 0 : i32
    return %arg1, %c0_i32 : i32, i32
  }
  func.func @transform_2(%arg0: i32, %arg1: i32) -> (i32, i32) {
    %c0_i32 = arith.constant 0 : i32
    %c0_i32_0 = arith.constant 0 : i32
    %c0_i32_1 = arith.constant 0 : i32
    return %c0_i32, %c0_i32_0 : i32, i32
  }
  func.func @transform_3(%arg0: i32, %arg1: i32) -> (i32, i32) {
    %c0_i32 = arith.constant 0 : i32
    %c0_i32_0 = arith.constant 0 : i32
    %c0_i32_1 = arith.constant 0 : i32
    return %c0_i32, %c0_i32_0 : i32, i32
  }
  func.func @transform_4(%arg0: i32, %arg1: i32) -> (i32, i32) {
    %c0_i32 = arith.constant 0 : i32
    %c0_i32_0 = arith.constant 0 : i32
    %c0_i32_1 = arith.constant 0 : i32
    return %c0_i32, %c0_i32_0 : i32, i32
  }
  func.func @transform_5(%arg0: i32, %arg1: i32) -> (i32, i32) {
    %c0_i32 = arith.constant 0 : i32
    %c0_i32_0 = arith.constant 0 : i32
    return %arg0, %c0_i32 : i32, i32
  }
}

module attributes {stable_mosaic.version = 11 : i64} {
  func.func @_matmul_kernel(%arg0: i32, %arg1: i32, %arg2: i32, %arg3: memref<2x32xbf16, #tpu.memory_space<vmem>>, %arg4: memref<32x2xbf16, #tpu.memory_space<vmem>>, %arg5: memref<1x2xf32, #tpu.memory_space<vmem>>, %arg6: memref<2x2xf32, #tpu.memory_space<vmem>>, %arg7: memref<2x2xf32, #tpu.memory_space<vmem>>) attributes {dimension_semantics = [#tpu.dimension_semantics<parallel>, #tpu.dimension_semantics<parallel>, #tpu.dimension_semantics<arbitrary>], iteration_bounds = array<i64: 1, 1, 1>, scalar_prefetch = 0 : i64, scratch_operands = 1 : i64, tpu.core_type = #tpu.core_type<tc>, window_params = [{transform_indices = @transform_0, window_bounds = array<i64: 2, 32>}, {transform_indices = @transform_1, window_bounds = array<i64: 32, 2>}, {transform_indices = @transform_2, window_bounds = array<i64: 1, 2>}, {transform_indices = @transform_3, window_bounds = array<i64: 2, 2>}]} {
    %c0_i32 = arith.constant 0 : i32
    %0 = arith.cmpi eq, %arg2, %c0_i32 : i32
    %1 = arith.extui %0 : i1 to i32
    %c0_i32_0 = arith.constant 0 : i32
    %2 = arith.cmpi ne, %1, %c0_i32_0 : i32
    scf.if %2 {
      %cst_10 = arith.constant 0.000000e+00 : f32
      %12 = vector.broadcast %cst_10 : f32 to vector<2x2xf32>
      %c0_11 = arith.constant 0 : index
      %c0_12 = arith.constant 0 : index
      %13 = vector.load %arg7[%c0_11, %c0_12] : memref<2x2xf32, #tpu.memory_space<vmem>>, vector<2x2xf32>
      tpu.vector_store %arg7[%c0_11, %c0_12], %12 {strides = array<i32>} : memref<2x2xf32, #tpu.memory_space<vmem>>, vector<2x2xf32>,
    } else {
    }
    %c0 = arith.constant 0 : index
    %c0_1 = arith.constant 0 : index
    %3 = vector.load %arg7[%c0, %c0_1] : memref<2x2xf32, #tpu.memory_space<vmem>>, vector<2x2xf32>
    %c0_2 = arith.constant 0 : index
    %c0_3 = arith.constant 0 : index
    %4 = vector.load %arg3[%c0_2, %c0_3] : memref<2x32xbf16, #tpu.memory_space<vmem>>, vector<2x32xbf16>
    %c0_4 = arith.constant 0 : index
    %c0_5 = arith.constant 0 : index
    %5 = vector.load %arg4[%c0_4, %c0_5] : memref<32x2xbf16, #tpu.memory_space<vmem>>, vector<32x2xbf16>
    %cst = arith.constant dense<0.000000e+00> : vector<2x2xf32>
    %6 = tpu.matmul %4, %5, %cst {dimension_numbers = #tpu.dot_dimension_numbers<[1], [0], [0], [1], [0, 0, 1, 1], [], []>} : vector<2x32xbf16>, vector<32x2xbf16>, vector<2x2xf32> -> vector<2x2xf32>
    %7 = arith.addf %3, %6 : vector<2x2xf32>
    %c0_6 = arith.constant 0 : index
    %c0_7 = arith.constant 0 : index
    %8 = vector.load %arg7[%c0_6, %c0_7] : memref<2x2xf32, #tpu.memory_space<vmem>>, vector<2x2xf32>
    tpu.vector_store %arg7[%c0_6, %c0_7], %7 {strides = array<i32>} : memref<2x2xf32, #tpu.memory_space<vmem>>, vector<2x2xf32>,
    %c0_i32_8 = arith.constant 0 : i32
    %9 = arith.cmpi eq, %arg2, %c0_i32_8 : i32
    %10 = arith.extui %9 : i1 to i32
    %c0_i32_9 = arith.constant 0 : i32
    %11 = arith.cmpi ne, %10, %c0_i32_9 : i32
    scf.if %11 {
      %c0_10 = arith.constant 0 : index
      %c0_11 = arith.constant 0 : index
      %12 = vector.load %arg7[%c0_10, %c0_11] : memref<2x2xf32, #tpu.memory_space<vmem>>, vector<2x2xf32>
      %c0_12 = arith.constant 0 : index
      %c0_13 = arith.constant 0 : index
      %13 = vector.load %arg5[%c0_12, %c0_13] : memref<1x2xf32, #tpu.memory_space<vmem>>, vector<1x2xf32>
      %14 = vector.broadcast %13 : vector<1x2xf32> to vector<2x2xf32>
      %15 = arith.addf %12, %14 : vector<2x2xf32>
      %c0_14 = arith.constant 0 : index
      %c0_15 = arith.constant 0 : index
      %16 = vector.load %arg6[%c0_14, %c0_15] : memref<2x2xf32, #tpu.memory_space<vmem>>, vector<2x2xf32>
      tpu.vector_store %arg6[%c0_14, %c0_15], %15 {strides = array<i32>} : memref<2x2xf32, #tpu.memory_space<vmem>>, vector<2x2xf32>,
    } else {
    }
    return
  }
  func.func @transform_0(%arg0: i32, %arg1: i32, %arg2: i32) -> (i32, i32) {
    %c0_i32 = arith.constant 0 : i32
    return %arg0, %arg2 : i32, i32
  }
  func.func @transform_1(%arg0: i32, %arg1: i32, %arg2: i32) -> (i32, i32) {
    %c0_i32 = arith.constant 0 : i32
    return %arg2, %arg1 : i32, i32
  }
  func.func @transform_2(%arg0: i32, %arg1: i32, %arg2: i32) -> (i32, i32) {
    %c0_i32 = arith.constant 0 : i32
    %c0_i32_0 = arith.constant 0 : i32
    return %c0_i32, %arg1 : i32, i32
  }
  func.func @transform_3(%arg0: i32, %arg1: i32, %arg2: i32) -> (i32, i32) {
    %c0_i32 = arith.constant 0 : i32
    return %arg0, %arg1 : i32, i32
  }
}

module attributes {stable_mosaic.version = 11 : i64} {
  func.func @_matmul_kernel(%arg0: i32, %arg1: i32, %arg2: i32, %arg3: memref<2x32xbf16, #tpu.memory_space<vmem>>, %arg4: memref<32x32xbf16, #tpu.memory_space<vmem>>, %arg5: memref<1x32xf32, #tpu.memory_space<vmem>>, %arg6: memref<2x32xbf16, #tpu.memory_space<vmem>>, %arg7: memref<2x32xf32, #tpu.memory_space<vmem>>) attributes {dimension_semantics = [#tpu.dimension_semantics<parallel>, #tpu.dimension_semantics<parallel>, #tpu.dimension_semantics<arbitrary>], iteration_bounds = array<i64: 1, 1, 1>, scalar_prefetch = 0 : i64, scratch_operands = 1 : i64, tpu.core_type = #tpu.core_type<tc>, window_params = [{transform_indices = @transform_0, window_bounds = array<i64: 2, 32>}, {transform_indices = @transform_1, window_bounds = array<i64: 32, 32>}, {transform_indices = @transform_2, window_bounds = array<i64: 1, 32>}, {transform_indices = @transform_3, window_bounds = array<i64: 2, 32>}]} {
    %c0_i32 = arith.constant 0 : i32
    %0 = arith.cmpi eq, %arg2, %c0_i32 : i32
    %1 = arith.extui %0 : i1 to i32
    %c0_i32_0 = arith.constant 0 : i32
    %2 = arith.cmpi ne, %1, %c0_i32_0 : i32
    scf.if %2 {
      %cst_10 = arith.constant 0.000000e+00 : f32
      %12 = vector.broadcast %cst_10 : f32 to vector<2x32xf32>
      %c0_11 = arith.constant 0 : index
      %c0_12 = arith.constant 0 : index
      %13 = vector.load %arg7[%c0_11, %c0_12] : memref<2x32xf32, #tpu.memory_space<vmem>>, vector<2x32xf32>
      tpu.vector_store %arg7[%c0_11, %c0_12], %12 {strides = array<i32>} : memref<2x32xf32, #tpu.memory_space<vmem>>, vector<2x32xf32>,
    } else {
    }
    %c0 = arith.constant 0 : index
    %c0_1 = arith.constant 0 : index
    %3 = vector.load %arg7[%c0, %c0_1] : memref<2x32xf32, #tpu.memory_space<vmem>>, vector<2x32xf32>
    %c0_2 = arith.constant 0 : index
    %c0_3 = arith.constant 0 : index
    %4 = vector.load %arg3[%c0_2, %c0_3] : memref<2x32xbf16, #tpu.memory_space<vmem>>, vector<2x32xbf16>
    %c0_4 = arith.constant 0 : index
    %c0_5 = arith.constant 0 : index
    %5 = vector.load %arg4[%c0_4, %c0_5] : memref<32x32xbf16, #tpu.memory_space<vmem>>, vector<32x32xbf16>
    %cst = arith.constant dense<0.000000e+00> : vector<2x32xf32>
    %6 = tpu.matmul %4, %5, %cst {dimension_numbers = #tpu.dot_dimension_numbers<[1], [0], [0], [1], [0, 0, 1, 1], [], []>} : vector<2x32xbf16>, vector<32x32xbf16>, vector<2x32xf32> -> vector<2x32xf32>
    %7 = arith.addf %3, %6 : vector<2x32xf32>
    %c0_6 = arith.constant 0 : index
    %c0_7 = arith.constant 0 : index
    %8 = vector.load %arg7[%c0_6, %c0_7] : memref<2x32xf32, #tpu.memory_space<vmem>>, vector<2x32xf32>
    tpu.vector_store %arg7[%c0_6, %c0_7], %7 {strides = array<i32>} : memref<2x32xf32, #tpu.memory_space<vmem>>, vector<2x32xf32>,
    %c0_i32_8 = arith.constant 0 : i32
    %9 = arith.cmpi eq, %arg2, %c0_i32_8 : i32
    %10 = arith.extui %9 : i1 to i32
    %c0_i32_9 = arith.constant 0 : i32
    %11 = arith.cmpi ne, %10, %c0_i32_9 : i32
    scf.if %11 {
      %c0_10 = arith.constant 0 : index
      %c0_11 = arith.constant 0 : index
      %12 = vector.load %arg7[%c0_10, %c0_11] : memref<2x32xf32, #tpu.memory_space<vmem>>, vector<2x32xf32>
      %c0_12 = arith.constant 0 : index
      %c0_13 = arith.constant 0 : index
      %13 = vector.load %arg5[%c0_12, %c0_13] : memref<1x32xf32, #tpu.memory_space<vmem>>, vector<1x32xf32>
      %14 = vector.broadcast %13 : vector<1x32xf32> to vector<2x32xf32>
      %15 = arith.addf %12, %14 : vector<2x32xf32>
      %16 = math.tanh %15 : vector<2x32xf32>
      %17 = arith.truncf %16 : vector<2x32xf32> to vector<2x32xbf16>
      %c0_14 = arith.constant 0 : index
      %c0_15 = arith.constant 0 : index
      %18 = vector.load %arg6[%c0_14, %c0_15] : memref<2x32xbf16, #tpu.memory_space<vmem>>, vector<2x32xbf16>
      tpu.vector_store %arg6[%c0_14, %c0_15], %17 {strides = array<i32>} : memref<2x32xbf16, #tpu.memory_space<vmem>>, vector<2x32xbf16>,
    } else {
    }
    return
  }
  func.func @transform_0(%arg0: i32, %arg1: i32, %arg2: i32) -> (i32, i32) {
    %c0_i32 = arith.constant 0 : i32
    return %arg0, %arg2 : i32, i32
  }
  func.func @transform_1(%arg0: i32, %arg1: i32, %arg2: i32) -> (i32, i32) {
    %c0_i32 = arith.constant 0 : i32
    return %arg2, %arg1 : i32, i32
  }
  func.func @transform_2(%arg0: i32, %arg1: i32, %arg2: i32) -> (i32, i32) {
    %c0_i32 = arith.constant 0 : i32
    %c0_i32_0 = arith.constant 0 : i32
    return %c0_i32, %arg1 : i32, i32
  }
  func.func @transform_3(%arg0: i32, %arg1: i32, %arg2: i32) -> (i32, i32) {
    %c0_i32 = arith.constant 0 : i32
    return %arg0, %arg1 : i32, i32
  }
}

</mosaic_0001>

<llo_original>
// kernel: bert_forward.16
$region0: #{bert_forward.16}
  #allocation0 [shape = 'u32[]', space=smem, size = 0x4, offset = 0x4, fixed_abs, tag = 'smem constant byte address 0x4 - core index']
  #allocation1 [shape = 'u32[72,128]{1,0:T(1,128)}', space=vmem, size = 0x9000, scoped, tag = 'internal scratch']
  #allocation2 [shape = 'f32[16,96]{1,0:T(8,128)}', space=vmem, size = 0x2000, scoped, tag = 'scratch operand']
  %s0 = inlined_call_operand.vmem [shape: bf16[16,32], index: 0, kind: input, shape index: {}]
  %s1 = inlined_call_operand.vmem [shape: bf16[32,96], index: 1, kind: input, shape index: {}]
  %s2 = inlined_call_operand.vmem [shape: f32[1,96], index: 2, kind: input, shape index: {}]
  %s3 = inlined_call_operand.vmem [shape: bf16[16,96], index: 3, kind: output, shape index: {}]
  %s4 = sld [smem:[#allocation0]]
  $region30: #{bert_forward.16} parent=0
    _
  %s6 = ssub.s32 1, %s4
  %s7 = scalar_select 0, %s6, %s4
  // Predicated region
  $region2: #{bert_forward.16} parent=0 // pred_check
    _
  $region3: #{bert_forward.16} parent=0 // pred_check_branch
    %9 = sbr.rel (0) target = $region5
  $region4: #{bert_forward.16} parent=0 // pred_region
    _
  $region5: #{bert_forward.16} parent=0 // pred_fallthru
    _
  // Predicated region
  $region6: #{bert_forward.16} parent=0 // pred_check
    _
  $region7: #{bert_forward.16} parent=0 // pred_check_branch
    %11 = sbr.rel (0) target = $region9
  $region8: #{bert_forward.16} parent=0 // pred_region
    _
  $region9: #{bert_forward.16} parent=0 // pred_fallthru
    _
  // Predicated region
  $region10: #{bert_forward.16} parent=0 // pred_check
    _
  $region11: #{bert_forward.16} parent=0 // pred_check_branch
    %13 = sbr.rel (0) target = $region13
  $region12: #{bert_forward.16} parent=0 // pred_region
    _
  $region13: #{bert_forward.16} parent=0 // pred_fallthru
    _
  %p15 = scmp.eq.s32.totalorder 0, 0
  // Predicated region
  $region14: #{bert_forward.16} parent=0 // pred_check
    %p16 = pneg %p15
  $region15: #{bert_forward.16} parent=0 // pred_check_branch
    %18 = sbr.rel (%p16) target = $region17
  $region16: #{bert_forward.16} parent=0 // pred_region
    %vm19 = vcmask 785408
    %20 = vst.msk [vmem:[#allocation2] sm:$0xff] %vm19, 0.0
    %21 = vst.msk [vmem:[#allocation2 + $0x8] sm:$0xff] %vm19, 0.0
  $region17: #{bert_forward.16} parent=0 // pred_fallthru
    _
  %v22 = vld [vmem:[#allocation2] sm:$0xff]
  %v23 = vld [vmem:[#allocation2 + $0x8] sm:$0xff]
  %v24 = vld [vmem:[%s0] sm:$0xf]
  %v25 = vld [vmem:[%s0 + $0x4] sm:$0xf]
  %v26 = vld [vmem:[%s1] sm:$0xf]
  %v27 = vld [vmem:[%s1 + $0x4] sm:$0xf]
  %v28 = vld [vmem:[%s1 + $0x8] sm:$0xf]
  %v29 = vld [vmem:[%s1 + $0xc] sm:$0xf]
  %v32 = vunpack.c.l.b16 %v24
  %v33 = vunpack.c.l.b16 %v25
  %v34 = vpack.c.b16 %v33, %v32
  %v39 = vunpack.c.l.b16 %v26
  %v40 = vunpack.c.l.b16 %v27
  %v41 = vunpack.c.l.b16 %v28
  %v42 = vunpack.c.l.b16 %v29
  %v43 = vpack.c.b16 %v40, %v39
  %v44 = vpack.c.b16 %v42, %v41
  %vm47 = vcmask 261120
  %v49 = vsel %vm47, %v34, 0
  %51 = vmatpush.bf16.msra.mxu0 0
  %52 = vmatpush.bf16.msra.mxu0 0
  %53 = vmatpush.bf16.msra.mxu0 0
  %54 = vmatpush.bf16.msra.mxu0 0
  %55 = vmatpush.bf16.msra.mxu0 0
  %56 = vmatpush.bf16.msra.mxu0 0
  %57 = vmatpush.bf16.msra.mxu0 %v44
  %58 = vmatpush.bf16.msra.mxu0 %v43
  %59 = vmatmul.bf16.gmra.mxu0 %v49
  %v60 = vpop.f32.mrf.mxu0
  %v61 = vadd.f32 0.0, %v60
  %v62 = vpop.f32.mrf.mxu0
  %v63 = vadd.f32 0.0, %v62
  %64 = vdwg.mxu0
  %v65 = vadd.f32 %v22, %v61
  %v66 = vadd.f32 %v23, %v63
  %vm67 = vcmask 785408
  %68 = vst.msk [vmem:[#allocation2] sm:$0xff] %vm67, %v65
  %69 = vst.msk [vmem:[#allocation2 + $0x8] sm:$0xff] %vm67, %v66
  // Predicated region
  $region18: #{bert_forward.16} parent=0 // pred_check
    %p70 = pneg %p15
  $region19: #{bert_forward.16} parent=0 // pred_check_branch
    %72 = sbr.rel (%p70) target = $region21
  $region20: #{bert_forward.16} parent=0 // pred_region
    %v73 = vld [vmem:[#allocation2] sm:$0xff]
    %v74 = vld [vmem:[#allocation2 + $0x8] sm:$0xff]
    %v75 = vld [vmem:[%s2] sm:$0x1]
    %v77 = vperm.slane %v75, 0
    %v79 = vadd.f32 %v73, %v77
    %v80 = vadd.f32 %v74, %v77
    %v81 = vpack.c.bf16 %v79, %v79
    %v82 = vpack.c.bf16 %v80, %v80
    %vm83 = vcmask 781312
    %84 = vst.msk [vmem:[%s3] sm:$0xf] %vm83, %v81
    %85 = vst.msk [vmem:[%s3 + $0x4] sm:$0xf] %vm83, %v82
  $region21: #{bert_forward.16} parent=0 // pred_fallthru
    _
  // Predicated region
  $region22: #{bert_forward.16} parent=0 // pred_check
    _
  $region23: #{bert_forward.16} parent=0 // pred_check_branch
    %87 = sbr.rel (0) target = $region25
  $region24: #{bert_forward.16} parent=0 // pred_region
    _
  $region25: #{bert_forward.16} parent=0 // pred_fallthru
    _
  // Predicated region
  $region26: #{bert_forward.16} parent=0 // pred_check
    _
  $region27: #{bert_forward.16} parent=0 // pred_check_branch
    %89 = sbr.rel (0) target = $region29
  $region28: #{bert_forward.16} parent=0 // pred_region
    _
  $region29: #{bert_forward.16} parent=0 // pred_fallthru
    _

// kernel: bert_forward.17
$region0: #{bert_forward.17}
  #allocation0 [shape = 'u32[]', space=smem, size = 0x4, offset = 0x4, fixed_abs, tag = 'smem constant byte address 0x4 - core index']
  #allocation1 [shape = 'u32[72,128]{1,0:T(1,128)}', space=vmem, size = 0x9000, scoped, tag = 'internal scratch']
  #allocation2 [shape = 'f32[8,1]{1,0:T(8,128)}', space=vmem, size = 0x1000, scoped, tag = 'scratch operand']
  #allocation3 [shape = 'f32[8,1]{1,0:T(8,128)}', space=vmem, size = 0x1000, scoped, tag = 'scratch operand']
  #allocation4 [shape = 'f32[8,16]{1,0:T(8,128)}', space=vmem, size = 0x1000, scoped, tag = 'scratch operand']
  #allocation5 [shape = 's32[1]{0}', space=sflag, size = 0x4, scoped, tag = 'scoped memory for bert_forward.17']
  #allocation6 [shape = 'u8[512]{0}', space=smem, size = 0x200, scoped, tag = 'prefetched SMEM operand 0']
  %s0 = inlined_call_operand.vmem [shape: s32[4], index: 0, kind: input, shape index: {}]
  %s1 = inlined_call_operand.vmem [shape: bf16[4,8,16], index: 1, kind: input, shape index: {}]
  %s2 = inlined_call_operand.vmem [shape: bf16[4,8,16], index: 2, kind: input, shape index: {}]
  %s3 = inlined_call_operand.vmem [shape: bf16[4,8,16], index: 3, kind: input, shape index: {}]
  %s4 = inlined_call_operand.vmem [shape: bf16[4,8,16], index: 4, kind: output, shape index: {}]
  %s5 = sld [smem:[#allocation0]]
  $region53: #{bert_forward.17} parent=0
    _
  %s7 = ssub.s32 1, %s5
  %s8 = scalar_select 0, %s7, %s5
  %s10 = sshll.u32 %s0, 4
  %s11 = int_to_ptr.vmem [resolvable:$true] %s10
  %13 = dma.vmem_to_smem %s11, 16, [#allocation6], [#allocation5]
  %15 = dma.done [#allocation5], 16
  %16 = sfence
  loop: start=0, step=1, limit=6
  $region2: #{bert_forward.17} parent=0 // loop_pre_header
    _
  $region3: #{bert_forward.17} parent=0 // loop_header
    %s18 = sphi 0, %s22
    %p19 = scmp.ge.s32.totalorder %s18, 6
    %s25 = sphi 0, %s44
    %s26 = sphi 0, %s40
    %s27 = sphi 0, %s36
    %s28 = sphi 0, %s25
    %s29 = sphi 0, %s26
    %s30 = sphi 0, %s27
    %s31 = sphi 0, %s28
    %s32 = sphi 0, %s29
    %s33 = sphi 0, %s30
    %s49 = sphi 0, %s51
    %s52 = sphi 0, %s49
    %s53 = sphi 0, %s52
    %s69 = sphi 0, %s53
    %s77 = sphi 0, %s79
    %s80 = sphi 0, %s77
    %s81 = sphi 0, %s80
    %s97 = sphi 0, %s81
    %s105 = sphi 0, %s107
    %s108 = sphi 0, %s105
    %s109 = sphi 0, %s108
    %s125 = sphi 0, %s109
    %s133 = sphi 0, %s135
    %s136 = sphi 0, %s133
    %s137 = sphi 0, %s136
    %s153 = sphi 0, %s137
  $region4: #{bert_forward.17} parent=0 // loop_header_branch
    %21 = sbr.rel (%p19) target = $region8
  $region5: #{bert_forward.17} parent=0 // loop_body
    %s23 = ssub.s32 %s18, 1
    %s24 = ssub.s32 %s18, 2
    %s34 = sadd.s32 1, %s27
    %p35 = scmp.ge.s32.totalorder %s34, 1
    %s36 = scalar_select %p35, 0, %s34
    %s37 = sadd.s32 1, %s26
    %s38 = scalar_select %p35, %s37, %s26
    %p39 = scmp.ge.s32.totalorder %s38, 1
    %s40 = scalar_select %p39, 0, %s38
    %s41 = sadd.s32 1, %s25
    %s42 = scalar_select %p39, %s41, %s25
    %p43 = scmp.ge.s32.totalorder %s42, 4
    %s44 = scalar_select %p43, 0, %s42
    %s45 = ssub.s32 %s25, %s44
    %s46 = ssub.s32 %s26, %s40
    %s47 = sor.u32 %s45, %s46
    %p48 = scmp.eq.s32.totalorder %s47, 0
    %s50 = sadd.s32 %s49, 1
    %s51 = scalar_select %p48, %s49, %s50
    %p54 = pneg %p48
    %p55 = scmp.eq.s32.totalorder %s18, 3
    %p56 = por %p54, %p55
    %p57 = scmp.ne.s32.totalorder %s49, %s52
    %p58 = scmp.eq.s32.totalorder %s18, 0
    %p59 = por %p57, %p58
    %p60 = scmp.ne.s32.totalorder %s49, %s52
    %p61 = scmp.eq.s32.totalorder %s23, 3
    %p62 = por %p60, %p61
    %p63 = scmp.ne.s32.totalorder %s52, %s53
    %p64 = scmp.eq.s32.totalorder %s23, 0
    %p65 = por %p63, %p64
    %p66 = scmp.ne.s32.totalorder %s52, %s53
    %p67 = scmp.eq.s32.totalorder %s24, 3
    %p68 = por %p66, %p67
    %p70 = scmp.ne.s32.totalorder %s53, %s69
    %p71 = scmp.eq.s32.totalorder %s24, 0
    %p72 = por %p70, %p71
    %s73 = ssub.s32 %s25, %s44
    %s74 = ssub.s32 %s27, %s36
    %s75 = sor.u32 %s73, %s74
    %p76 = scmp.eq.s32.totalorder %s75, 0
    %s78 = sadd.s32 %s77, 1
    %s79 = scalar_select %p76, %s77, %s78
    %p82 = pneg %p76
    %p83 = scmp.eq.s32.totalorder %s18, 3
    %p84 = por %p82, %p83
    %p85 = scmp.ne.s32.totalorder %s77, %s80
    %p86 = scmp.eq.s32.totalorder %s18, 0
    %p87 = por %p85, %p86
    %p88 = scmp.ne.s32.totalorder %s77, %s80
    %p89 = scmp.eq.s32.totalorder %s23, 3
    %p90 = por %p88, %p89
    %p91 = scmp.ne.s32.totalorder %s80, %s81
    %p92 = scmp.eq.s32.totalorder %s23, 0
    %p93 = por %p91, %p92
    %p94 = scmp.ne.s32.totalorder %s80, %s81
    %p95 = scmp.eq.s32.totalorder %s24, 3
    %p96 = por %p94, %p95
    %p98 = scmp.ne.s32.totalorder %s81, %s97
    %p99 = scmp.eq.s32.totalorder %s24, 0
    %p100 = por %p98, %p99
    %s101 = ssub.s32 %s25, %s44
    %s102 = ssub.s32 %s27, %s36
    %s103 = sor.u32 %s101, %s102
    %p104 = scmp.eq.s32.totalorder %s103, 0
    %s106 = sadd.s32 %s105, 1
    %s107 = scalar_select %p104, %s105, %s106
    %p110 = pneg %p104
    %p111 = scmp.eq.s32.totalorder %s18, 3
    %p112 = por %p110, %p111
    %p113 = scmp.ne.s32.totalorder %s105, %s108
    %p114 = scmp.eq.s32.totalorder %s18, 0
    %p115 = por %p113, %p114
    %p116 = scmp.ne.s32.totalorder %s105, %s108
    %p117 = scmp.eq.s32.totalorder %s23, 3
    %p118 = por %p116, %p117
    %p119 = scmp.ne.s32.totalorder %s108, %s109
    %p120 = scmp.eq.s32.totalorder %s23, 0
    %p121 = por %p119, %p120
    %p122 = scmp.ne.s32.totalorder %s108, %s109
    %p123 = scmp.eq.s32.totalorder %s24, 3
    %p124 = por %p122, %p123
    %p126 = scmp.ne.s32.totalorder %s109, %s125
    %p127 = scmp.eq.s32.totalorder %s24, 0
    %p128 = por %p126, %p127
    %s129 = ssub.s32 %s25, %s44
    %s130 = ssub.s32 %s26, %s40
    %s131 = sor.u32 %s129, %s130
    %p132 = scmp.eq.s32.totalorder %s131, 0
    %s134 = sadd.s32 %s133, 1
    %s135 = scalar_select %p132, %s133, %s134
    %p138 = pneg %p132
    %p139 = scmp.eq.s32.totalorder %s18, 3
    %p140 = por %p138, %p139
    %p141 = scmp.ne.s32.totalorder %s133, %s136
    %p142 = scmp.eq.s32.totalorder %s18, 0
    %p143 = por %p141, %p142
    %p144 = scmp.ne.s32.totalorder %s133, %s136
    %p145 = scmp.eq.s32.totalorder %s23, 3
    %p146 = por %p144, %p145
    %p147 = scmp.ne.s32.totalorder %s136, %s137
    %p148 = scmp.eq.s32.totalorder %s23, 0
    %p149 = por %p147, %p148
    %p150 = scmp.ne.s32.totalorder %s136, %s137
    %p151 = scmp.eq.s32.totalorder %s24, 3
    %p152 = por %p150, %p151
    %p154 = scmp.ne.s32.totalorder %s137, %s153
    %p155 = scmp.eq.s32.totalorder %s24, 0
    %p156 = por %p154, %p155
    %p157 = scmp.le.s32.totalorder 1, %s18
    %p158 = scmp.lt.s32.totalorder %s18, 5
    %p159 = pnand %p157, %p158
    %p160 = pneg %p159
    // Predicated region
    $region9: #{bert_forward.17} parent=5 // pred_check
      _
    $region10: #{bert_forward.17} parent=5 // pred_check_branch
      %162 = sbr.rel (%p159) target = $region12
    $region11: #{bert_forward.17} parent=5 // pred_region
      %s163 = ssub.s32 %s18, 1
    $region12: #{bert_forward.17} parent=5 // pred_fallthru
      _
    %p164 = scmp.lt.s32.totalorder %s18, 4
    // Predicated region
    $region13: #{bert_forward.17} parent=5 // pred_check
      %p165 = pneg %p164
    $region14: #{bert_forward.17} parent=5 // pred_check_branch
      %167 = sbr.rel (%p165) target = $region16
    $region15: #{bert_forward.17} parent=5 // pred_region
      // Predicated region
      $region17: #{bert_forward.17} parent=15 // pred_check
        %p168 = pneg %p59
      $region18: #{bert_forward.17} parent=15 // pred_check_branch
        %170 = sbr.rel (%p168) target = $region20
      $region19: #{bert_forward.17} parent=15 // pred_region
        %p171 = scmp.lt.s32.totalorder %s25, 3
        %s172 = scalar_select %p171, %s25, 3
        %p173 = scmp.lt.s32.totalorder %s26, 0
        %s174 = scalar_select %p173, %s26, 0
        %s175 = sadd.s32 %s174, %s172
        %s176 = smul.addr %s175, 4
        %s177 = scalar_lea.vmem %s1, %s176
      $region20: #{bert_forward.17} parent=15 // pred_fallthru
        _
      // Predicated region
      $region21: #{bert_forward.17} parent=15 // pred_check
        %p178 = pneg %p87
      $region22: #{bert_forward.17} parent=15 // pred_check_branch
        %180 = sbr.rel (%p178) target = $region24
      $region23: #{bert_forward.17} parent=15 // pred_region
        %p181 = scmp.lt.s32.totalorder %s25, 3
        %s182 = scalar_select %p181, %s25, 3
        %p183 = scmp.lt.s32.totalorder %s27, 0
        %s184 = scalar_select %p183, %s27, 0
        %s185 = sadd.s32 %s184, %s182
        %s186 = smul.addr %s185, 4
        %s187 = scalar_lea.vmem %s2, %s186
      $region24: #{bert_forward.17} parent=15 // pred_fallthru
        _
      // Predicated region
      $region25: #{bert_forward.17} parent=15 // pred_check
        %p188 = pneg %p115
      $region26: #{bert_forward.17} parent=15 // pred_check_branch
        %190 = sbr.rel (%p188) target = $region28
      $region27: #{bert_forward.17} parent=15 // pred_region
        %p191 = scmp.lt.s32.totalorder %s25, 3
        %s192 = scalar_select %p191, %s25, 3
        %p193 = scmp.lt.s32.totalorder %s27, 0
        %s194 = scalar_select %p193, %s27, 0
        %s195 = sadd.s32 %s194, %s192
        %s196 = smul.addr %s195, 4
        %s197 = scalar_lea.vmem %s3, %s196
      $region28: #{bert_forward.17} parent=15 // pred_fallthru
        _
    $region16: #{bert_forward.17} parent=5 // pred_fallthru
      _
    %p198 = scmp.le.s32.totalorder 1, %s18
    %p199 = scmp.lt.s32.totalorder %s18, 5
    %p200 = pnand %p198, %p199
    %p201 = pneg %p200
    // Predicated region
    $region29: #{bert_forward.17} parent=5 // pred_check
      _
    $region30: #{bert_forward.17} parent=5 // pred_check_branch
      %203 = sbr.rel (%p200) target = $region32
    $region31: #{bert_forward.17} parent=5 // pred_region
      %s204 = ssub.s32 %s18, 1
      %p205 = scmp.lt.s32.totalorder %s28, 3
      %s206 = scalar_select %p205, %s28, 3
      %p207 = scmp.lt.s32.totalorder %s29, 0
      %s208 = scalar_select %p207, %s29, 0
      %s209 = sadd.s32 %s208, %s206
      %s210 = smul.addr %s209, 4
      %s211 = scalar_lea.vmem %s1, %s210
      %p212 = pneg %p65
      %p213 = pneg %p62
      %p214 = scmp.lt.s32.totalorder %s28, 3
      %s215 = scalar_select %p214, %s28, 3
      %p216 = scmp.lt.s32.totalorder %s30, 0
      %s217 = scalar_select %p216, %s30, 0
      %s218 = sadd.s32 %s217, %s215
      %s219 = smul.addr %s218, 4
      %s220 = scalar_lea.vmem %s2, %s219
      %p221 = pneg %p93
      %p222 = pneg %p90
      %p223 = scmp.lt.s32.totalorder %s28, 3
      %s224 = scalar_select %p223, %s28, 3
      %p225 = scmp.lt.s32.totalorder %s30, 0
      %s226 = scalar_select %p225, %s30, 0
      %s227 = sadd.s32 %s226, %s224
      %s228 = smul.addr %s227, 4
      %s229 = scalar_lea.vmem %s3, %s228
      %p230 = pneg %p121
      %p231 = pneg %p118
      %p232 = pneg %p149
      %p233 = pneg %p146
      %p234 = scmp.lt.s32.totalorder %s28, 3
      %s235 = scalar_select %p234, %s28, 3
      %p236 = scmp.lt.s32.totalorder %s29, 0
      %s237 = scalar_select %p236, %s29, 0
      %s238 = sadd.s32 %s237, %s235
      %s239 = smul.addr %s238, 4
      %s240 = scalar_lea.vmem %s4, %s239
      %p241 = scmp.lt.s32.totalorder %s28, 3
      %s242 = scalar_select %p241, %s28, 3
      %p243 = scmp.lt.s32.totalorder %s29, 0
      %s244 = scalar_select %p243, %s29, 0
      %s245 = sadd.s32 %s244, %s242
      %s246 = smul.addr %s245, 4
      %s247 = scalar_lea.vmem %s1, %s246
      %p248 = scmp.lt.s32.totalorder %s28, 3
      %s249 = scalar_select %p248, %s28, 3
      %p250 = scmp.lt.s32.totalorder %s30, 0
      %s251 = scalar_select %p250, %s30, 0
      %s252 = sadd.s32 %s251, %s249
      %s253 = smul.addr %s252, 4
      %s254 = scalar_lea.vmem %s2, %s253
      %p255 = scmp.lt.s32.totalorder %s28, 3
      %s256 = scalar_select %p255, %s28, 3
      %p257 = scmp.lt.s32.totalorder %s30, 0
      %s258 = scalar_select %p257, %s30, 0
      %s259 = sadd.s32 %s258, %s256
      %s260 = smul.addr %s259, 4
      %s261 = scalar_lea.vmem %s3, %s260
      %p262 = scmp.lt.s32.totalorder %s28, 3
      %s263 = scalar_select %p262, %s28, 3
      %p264 = scmp.lt.s32.totalorder %s29, 0
      %s265 = scalar_select %p264, %s29, 0
      %s266 = sadd.s32 %s265, %s263
      %s267 = smul.addr %s266, 4
      %s268 = scalar_lea.vmem %s4, %s267
      %p270 = scmp.eq.s32.totalorder %s30, 0
      // Predicated region
      $region33: #{bert_forward.17} parent=31 // pred_check
        %p271 = pneg %p270
      $region34: #{bert_forward.17} parent=31 // pred_check_branch
        %273 = sbr.rel (%p271) target = $region36
      $region35: #{bert_forward.17} parent=31 // pred_region
        %vm274 = vcmask 7168
        %275 = vst.msk [vmem:[#allocation2] sm:$0xff] %vm274, -inf
        %276 = vst.msk [vmem:[#allocation3] sm:$0xff] %vm274, 0.0
        %vm277 = vcmask 130048
        %278 = vst.msk [vmem:[#allocation4] sm:$0xff] %vm277, 0.0
      $region36: #{bert_forward.17} parent=31 // pred_fallthru
        _
      %v279 = vld [vmem:[%s247] sm:$0xf]
      %v280 = vld [vmem:[%s254] sm:$0xf]
      %vm281 = vcmask 130048
      %v283 = vsel %vm281, %v279, 0
      %v286 = vsel %vm281, %v280, 0
      %288 = vmatpush.bf16.xpose.msra.mxu0 0
      %289 = vmatpush.bf16.xpose.msra.mxu0 0
      %290 = vmatpush.bf16.xpose.msra.mxu0 0
      %291 = vmatpush.bf16.xpose.msra.mxu0 0
      %292 = vmatpush.bf16.xpose.msra.mxu0 0
      %293 = vmatpush.bf16.xpose.msra.mxu0 0
      %294 = vmatpush.bf16.xpose.msra.mxu0 0
      %295 = vmatpush.bf16.xpose.msra.mxu0 %v286
      %296 = vmatmul.bf16.gmra.mxu0 %v283
      %v297 = vpop.f32.mrf.mxu0
      %v298 = vadd.f32 0.0, %v297
      %v299 = vpop.f32.mrf.mxu0
      %300 = vdwg.mxu0
      %v301 = vmul.f32 %v298, 0.25
      %s302 = smul.u32 %s30, 8
      %v303 = vlaneseq
      %v304 = vand.u32 %v303, 127
      %v305 = vstv %s302
      %v306 = vadd.s32 %v305, %v304
      %s307 = sld [smem:[#allocation6 + %s28]]
      %v308 = vstv %s307
      %vm309 = vcmp.lt.s32.totalorder %v306, %v308
      %v310 = vsel %vm309, %v301, -1000000.0
      %v311 = vld [vmem:[#allocation2] sm:$0xff]
      %vm312 = vcmask 64512
      %v313 = vsel %vm312, %v310, -inf
      %314 = vmax.xlane.f32.xlu0 %v313
      %v315 = vpop.xlane.xlu0 %314
      %v316 = vmax.f32 %v311, %v315
      %v317 = vsub.f32 %v311, %v316
      %v318 = vmul.f32 %v317, 1.442695
      %v319 = vpow.pop %v318
      %321 = vset.pattern.permute.xlu0 0
      %322 = vperm.xlu0 %321, %v316
      %v323 = vpop.permute.xlu0 %322
      %v325 = vsub.f32 %v310, %v323
      %v326 = vmul.f32 %v325, 1.442695
      %v327 = vpow.pop %v326
      %v328 = vld [vmem:[#allocation3] sm:$0xff]
      %v329 = vmul.f32 %v319, %v328
      %v330 = vsel %vm312, %v327, 0.0
      %331 = vadd.xlane.f32.xlu0 %v330
      %v332 = vpop.xlane.xlu0 %331
      %v333 = vadd.f32 %v329, %v332
      %vm334 = vcmask 7168
      %335 = vst.msk [vmem:[#allocation3] sm:$0xff] %vm334, %v333
      %v336 = vld [vmem:[#allocation4] sm:$0xff]
      %338 = vset.pattern.permute.xlu0 0
      %339 = vperm.xlu0 %338, %v319
      %v340 = vpop.permute.xlu0 %339
      %v342 = vmul.f32 %v340, %v336
      %v343 = vpack.c.bf16 %v327, %v327
      %v344 = vld [vmem:[%s261] sm:$0xf]
      %v346 = vsel %vm312, %v343, 0
      %vm348 = vcmask 1043456
      %v350 = vsel %vm348, %v344, 0
      %352 = vmatpush.bf16.msra.mxu0 0
      %353 = vmatpush.bf16.msra.mxu0 0
      %354 = vmatpush.bf16.msra.mxu0 0
      %355 = vmatpush.bf16.msra.mxu0 0
      %356 = vmatpush.bf16.msra.mxu0 0
      %357 = vmatpush.bf16.msra.mxu0 0
      %358 = vmatpush.bf16.msra.mxu0 0
      %359 = vmatpush.bf16.msra.mxu0 %v350
      %360 = vmatmul.bf16.gmra.mxu0 %v346
      %v361 = vpop.f32.mrf.mxu0
      %v362 = vadd.f32 0.0, %v361
      %v363 = vpop.f32.mrf.mxu0
      %364 = vdwg.mxu0
      %v365 = vadd.f32 %v342, %v362
      %366 = vst.msk [vmem:[#allocation4] sm:$0xff] %vm281, %v365
      %367 = vst.msk [vmem:[#allocation2] sm:$0xff] %vm334, %v316
      // Predicated region
      $region37: #{bert_forward.17} parent=31 // pred_check
        %p368 = pneg %p270
      $region38: #{bert_forward.17} parent=31 // pred_check_branch
        %370 = sbr.rel (%p368) target = $region40
      $region39: #{bert_forward.17} parent=31 // pred_region
        %v371 = vld [vmem:[#allocation4] sm:$0xff]
        %v372 = vld [vmem:[#allocation3] sm:$0xff]
        %v373 = vrcp.pop %v372
        %375 = vset.pattern.permute.xlu0 0
        %376 = vperm.xlu0 %375, %v373
        %v377 = vpop.permute.xlu0 %376
        %v379 = vmul.f32 %v371, %v377
        %v380 = vpack.c.bf16 %v379, %v379
        %vm381 = vcmask 125952
        %382 = vst.msk [vmem:[%s268] sm:$0xf] %vm381, %v380
      $region40: #{bert_forward.17} parent=31 // pred_fallthru
        _
      %p383 = scmp.lt.s32.totalorder %s28, 3
      %s384 = scalar_select %p383, %s28, 3
      %p385 = scmp.lt.s32.totalorder %s29, 0
      %s386 = scalar_select %p385, %s29, 0
      %s387 = sadd.s32 %s386, %s384
      %s388 = smul.addr %s387, 4
      %s389 = scalar_lea.vmem %s4, %s388
      // Predicated region
      $region41: #{bert_forward.17} parent=31 // pred_check
        %p390 = pneg %p146
      $region42: #{bert_forward.17} parent=31 // pred_check_branch
        %392 = sbr.rel (%p390) target = $region44
      $region43: #{bert_forward.17} parent=31 // pred_region
        _
      $region44: #{bert_forward.17} parent=31 // pred_fallthru
        _
    $region32: #{bert_forward.17} parent=5 // pred_fallthru
      _
    %p393 = scmp.le.s32.totalorder 2, %s18
    // Predicated region
    $region45: #{bert_forward.17} parent=5 // pred_check
      %p394 = pneg %p393
    $region46: #{bert_forward.17} parent=5 // pred_check_branch
      %396 = sbr.rel (%p394) target = $region48
    $region47: #{bert_forward.17} parent=5 // pred_region
      %s397 = ssub.s32 %s18, 2
      // Predicated region
      $region49: #{bert_forward.17} parent=47 // pred_check
        %p398 = pneg %p152
      $region50: #{bert_forward.17} parent=47 // pred_check_branch
        %400 = sbr.rel (%p398) target = $region52
      $region51: #{bert_forward.17} parent=47 // pred_region
        %p401 = scmp.lt.s32.totalorder %s31, 3
        %s402 = scalar_select %p401, %s31, 3
        %p403 = scmp.lt.s32.totalorder %s32, 0
        %s404 = scalar_select %p403, %s32, 0
        %s405 = sadd.s32 %s404, %s402
        %s406 = smul.addr %s405, 4
        %s407 = scalar_lea.vmem %s4, %s406
      $region52: #{bert_forward.17} parent=47 // pred_fallthru
        _
    $region48: #{bert_forward.17} parent=5 // pred_fallthru
      _
  $region6: #{bert_forward.17} parent=0 // loop_footer
    %s22 = sadd.s32 1, %s18
  $region7: #{bert_forward.17} parent=0 // loop_footer_branch
    %17 = sbr.rel target = $region3
  $region8: #{bert_forward.17} parent=0 // loop_exit
    _

// kernel: bert_forward.15
$region0: #{bert_forward.15}
  #allocation0 [shape = 'u32[]', space=smem, size = 0x4, offset = 0x4, fixed_abs, tag = 'smem constant byte address 0x4 - core index']
  #allocation1 [shape = 'u32[72,128]{1,0:T(1,128)}', space=vmem, size = 0x9000, scoped, tag = 'internal scratch']
  %s0 = inlined_call_operand.vmem [shape: bf16[16,32], index: 0, kind: input, shape index: {}]
  %s1 = inlined_call_operand.vmem [shape: bf16[16,32], index: 1, kind: input, shape index: {}]
  %s2 = inlined_call_operand.vmem [shape: bf16[16,32], index: 2, kind: input, shape index: {}]
  %s3 = inlined_call_operand.vmem [shape: f32[1,32], index: 3, kind: input, shape index: {}]
  %s4 = inlined_call_operand.vmem [shape: f32[1,32], index: 4, kind: input, shape index: {}]
  %s5 = inlined_call_operand.vmem [shape: bf16[16,32], index: 5, kind: output, shape index: {}]
  %s6 = sld [smem:[#allocation0]]
  $region30: #{bert_forward.15} parent=0
    _
  %s8 = ssub.s32 1, %s6
  %s9 = scalar_select 0, %s8, %s6
  // Predicated region
  $region2: #{bert_forward.15} parent=0 // pred_check
    _
  $region3: #{bert_forward.15} parent=0 // pred_check_branch
    %11 = sbr.rel (0) target = $region5
  $region4: #{bert_forward.15} parent=0 // pred_region
    _
  $region5: #{bert_forward.15} parent=0 // pred_fallthru
    _
  // Predicated region
  $region6: #{bert_forward.15} parent=0 // pred_check
    _
  $region7: #{bert_forward.15} parent=0 // pred_check_branch
    %13 = sbr.rel (0) target = $region9
  $region8: #{bert_forward.15} parent=0 // pred_region
    _
  $region9: #{bert_forward.15} parent=0 // pred_fallthru
    _
  // Predicated region
  $region10: #{bert_forward.15} parent=0 // pred_check
    _
  $region11: #{bert_forward.15} parent=0 // pred_check_branch
    %15 = sbr.rel (0) target = $region13
  $region12: #{bert_forward.15} parent=0 // pred_region
    _
  $region13: #{bert_forward.15} parent=0 // pred_fallthru
    _
  // Predicated region
  $region14: #{bert_forward.15} parent=0 // pred_check
    _
  $region15: #{bert_forward.15} parent=0 // pred_check_branch
    %17 = sbr.rel (0) target = $region17
  $region16: #{bert_forward.15} parent=0 // pred_region
    _
  $region17: #{bert_forward.15} parent=0 // pred_fallthru
    _
  // Predicated region
  $region18: #{bert_forward.15} parent=0 // pred_check
    _
  $region19: #{bert_forward.15} parent=0 // pred_check_branch
    %19 = sbr.rel (0) target = $region21
  $region20: #{bert_forward.15} parent=0 // pred_region
    _
  $region21: #{bert_forward.15} parent=0 // pred_fallthru
    _
  %v20 = vld [vmem:[%s3] sm:$0x1]
  %v21 = vld [vmem:[%s4] sm:$0x1]
  %v22 = vld [vmem:[%s0] sm:$0xf]
  %v23 = vld [vmem:[%s0 + $0x4] sm:$0xf]
  %v24 = vunpack.c.l.bf16 %v22
  %v25 = vunpack.c.l.bf16 %v23
  %v26 = vld [vmem:[%s1] sm:$0xf]
  %v27 = vld [vmem:[%s1 + $0x4] sm:$0xf]
  %v28 = vunpack.c.l.bf16 %v26
  %v29 = vunpack.c.l.bf16 %v27
  %v30 = vadd.f32 %v24, %v28
  %v31 = vadd.f32 %v25, %v29
  %v32 = vld [vmem:[%s2] sm:$0xf]
  %v33 = vld [vmem:[%s2 + $0x4] sm:$0xf]
  %v34 = vunpack.c.l.bf16 %v32
  %v35 = vunpack.c.l.bf16 %v33
  %v36 = vadd.f32 %v30, %v34
  %v37 = vadd.f32 %v31, %v35
  %vm38 = vcmask 261120
  %v39 = vsel %vm38, %v36, 0.0
  %40 = vadd.xlane.f32.xlu0 %v39
  %v41 = vpop.xlane.xlu0 %40
  %v42 = vsel %vm38, %v37, 0.0
  %43 = vadd.xlane.f32.xlu0 %v42
  %v44 = vpop.xlane.xlu0 %43
  %v45 = vrcp.pop 32.0
  %v46 = vmul.f32 32.0, %v45
  %v47 = vsub.f32 1.0, %v46
  %v48 = vmul.f32 %v45, %v47
  %v49 = vadd.f32 %v45, %v48
  %vm50 = vweird.f32 %v45
  %v51 = vsel %vm50, %v45, %v49
  %v52 = vmul.f32 %v41, %v51
  %v53 = vmul.f32 %v44, %v51
  %v54 = vsub.f32 %v36, %v52
  %v55 = vsub.f32 %v37, %v53
  %v56 = vmul.f32 %v54, %v54
  %v57 = vmul.f32 %v55, %v55
  %v58 = vsel %vm38, %v56, 0.0
  %59 = vadd.xlane.f32.xlu0 %v58
  %v60 = vpop.xlane.xlu0 %59
  %v61 = vsel %vm38, %v57, 0.0
  %62 = vadd.xlane.f32.xlu0 %v61
  %v63 = vpop.xlane.xlu0 %62
  %v64 = vmul.f32 %v60, %v51
  %v65 = vmul.f32 %v63, %v51
  %v66 = vadd.f32 %v64, 1e-12
  %v67 = vadd.f32 %v65, 1e-12
  %v68 = vrsqrt.pop %v66
  %v69 = vmul.f32 %v68, %v66
  %v70 = vmul.f32 %v69, %v68
  %v71 = vmul.f32 0.5, %v70
  %v72 = vsub.f32 1.5, %v71
  %v73 = vmul.f32 %v68, %v72
  %vm74 = vweird.f32 %v66
  %vm75 = vweird.f32 %v68
  %vm76 = vmor %vm74, %vm75
  %v77 = vsel %vm76, %v68, %v73
  %v78 = vrsqrt.pop %v67
  %v79 = vmul.f32 %v78, %v67
  %v80 = vmul.f32 %v79, %v78
  %v81 = vmul.f32 0.5, %v80
  %v82 = vsub.f32 1.5, %v81
  %v83 = vmul.f32 %v78, %v82
  %vm84 = vweird.f32 %v67
  %vm85 = vweird.f32 %v78
  %vm86 = vmor %vm84, %vm85
  %v87 = vsel %vm86, %v78, %v83
  %v88 = vmul.f32 %v54, %v77
  %v89 = vmul.f32 %v55, %v87
  %v91 = vperm.slane %v20, 0
  %v93 = vmul.f32 %v88, %v91
  %v94 = vmul.f32 %v89, %v91
  %v96 = vperm.slane %v21, 0
  %v98 = vadd.f32 %v93, %v96
  %v99 = vadd.f32 %v94, %v96
  %v100 = vpack.c.bf16 %v98, %v98
  %v101 = vpack.c.bf16 %v99, %v99
  %vm102 = vcmask 257024
  %103 = vst.msk [vmem:[%s5] sm:$0xf] %vm102, %v100
  %104 = vst.msk [vmem:[%s5 + $0x4] sm:$0xf] %vm102, %v101
  // Predicated region
  $region22: #{bert_forward.15} parent=0 // pred_check
    _
  $region23: #{bert_forward.15} parent=0 // pred_check_branch
    %106 = sbr.rel (0) target = $region25
  $region24: #{bert_forward.15} parent=0 // pred_region
    _
  $region25: #{bert_forward.15} parent=0 // pred_fallthru
    _
  // Predicated region
  $region26: #{bert_forward.15} parent=0 // pred_check
    _
  $region27: #{bert_forward.15} parent=0 // pred_check_branch
    %108 = sbr.rel (0) target = $region29
  $region28: #{bert_forward.15} parent=0 // pred_region
    _
  $region29: #{bert_forward.15} parent=0 // pred_fallthru
    _

// kernel: bert_forward.18
$region0: #{bert_forward.18}
  #allocation0 [shape = 'u32[]', space=smem, size = 0x4, offset = 0x4, fixed_abs, tag = 'smem constant byte address 0x4 - core index']
  #allocation1 [shape = 'u32[72,128]{1,0:T(1,128)}', space=vmem, size = 0x9000, scoped, tag = 'internal scratch']
  #allocation2 [shape = 'f32[16,32]{1,0:T(8,128)}', space=vmem, size = 0x2000, scoped, tag = 'scratch operand']
  %s0 = inlined_call_operand.vmem [shape: bf16[16,32], index: 0, kind: input, shape index: {}]
  %s1 = inlined_call_operand.vmem [shape: bf16[32,32], index: 1, kind: input, shape index: {}]
  %s2 = inlined_call_operand.vmem [shape: f32[1,32], index: 2, kind: input, shape index: {}]
  %s3 = inlined_call_operand.vmem [shape: bf16[16,32], index: 3, kind: input, shape index: {}]
  %s4 = inlined_call_operand.vmem [shape: f32[1,32], index: 4, kind: input, shape index: {}]
  %s5 = inlined_call_operand.vmem [shape: f32[1,32], index: 5, kind: input, shape index: {}]
  %s6 = inlined_call_operand.vmem [shape: bf16[16,32], index: 6, kind: output, shape index: {}]
  %s7 = sld [smem:[#allocation0]]
  $region42: #{bert_forward.18} parent=0
    _
  %s9 = ssub.s32 1, %s7
  %s10 = scalar_select 0, %s9, %s7
  // Predicated region
  $region2: #{bert_forward.18} parent=0 // pred_check
    _
  $region3: #{bert_forward.18} parent=0 // pred_check_branch
    %12 = sbr.rel (0) target = $region5
  $region4: #{bert_forward.18} parent=0 // pred_region
    _
  $region5: #{bert_forward.18} parent=0 // pred_fallthru
    _
  // Predicated region
  $region6: #{bert_forward.18} parent=0 // pred_check
    _
  $region7: #{bert_forward.18} parent=0 // pred_check_branch
    %14 = sbr.rel (0) target = $region9
  $region8: #{bert_forward.18} parent=0 // pred_region
    _
  $region9: #{bert_forward.18} parent=0 // pred_fallthru
    _
  // Predicated region
  $region10: #{bert_forward.18} parent=0 // pred_check
    _
  $region11: #{bert_forward.18} parent=0 // pred_check_branch
    %16 = sbr.rel (0) target = $region13
  $region12: #{bert_forward.18} parent=0 // pred_region
    _
  $region13: #{bert_forward.18} parent=0 // pred_fallthru
    _
  // Predicated region
  $region14: #{bert_forward.18} parent=0 // pred_check
    _
  $region15: #{bert_forward.18} parent=0 // pred_check_branch
    %18 = sbr.rel (0) target = $region17
  $region16: #{bert_forward.18} parent=0 // pred_region
    _
  $region17: #{bert_forward.18} parent=0 // pred_fallthru
    _
  // Predicated region
  $region18: #{bert_forward.18} parent=0 // pred_check
    _
  $region19: #{bert_forward.18} parent=0 // pred_check_branch
    %20 = sbr.rel (0) target = $region21
  $region20: #{bert_forward.18} parent=0 // pred_region
    _
  $region21: #{bert_forward.18} parent=0 // pred_fallthru
    _
  // Predicated region
  $region22: #{bert_forward.18} parent=0 // pred_check
    _
  $region23: #{bert_forward.18} parent=0 // pred_check_branch
    %22 = sbr.rel (0) target = $region25
  $region24: #{bert_forward.18} parent=0 // pred_region
    _
  $region25: #{bert_forward.18} parent=0 // pred_fallthru
    _
  %p24 = scmp.eq.s32.totalorder 0, 0
  // Predicated region
  $region26: #{bert_forward.18} parent=0 // pred_check
    %p25 = pneg %p24
  $region27: #{bert_forward.18} parent=0 // pred_check_branch
    %27 = sbr.rel (%p25) target = $region29
  $region28: #{bert_forward.18} parent=0 // pred_region
    %vm28 = vcmask 261120
    %29 = vst.msk [vmem:[#allocation2] sm:$0xff] %vm28, 0.0
    %30 = vst.msk [vmem:[#allocation2 + $0x8] sm:$0xff] %vm28, 0.0
  $region29: #{bert_forward.18} parent=0 // pred_fallthru
    _
  %v31 = vld [vmem:[#allocation2] sm:$0xff]
  %v32 = vld [vmem:[#allocation2 + $0x8] sm:$0xff]
  %v33 = vld [vmem:[%s0] sm:$0xf]
  %v34 = vld [vmem:[%s0 + $0x4] sm:$0xf]
  %v35 = vld [vmem:[%s1] sm:$0xf]
  %v36 = vld [vmem:[%s1 + $0x4] sm:$0xf]
  %v37 = vld [vmem:[%s1 + $0x8] sm:$0xf]
  %v38 = vld [vmem:[%s1 + $0xc] sm:$0xf]
  %v41 = vunpack.c.l.b16 %v33
  %v42 = vunpack.c.l.b16 %v34
  %v43 = vpack.c.b16 %v42, %v41
  %v48 = vunpack.c.l.b16 %v35
  %v49 = vunpack.c.l.b16 %v36
  %v50 = vunpack.c.l.b16 %v37
  %v51 = vunpack.c.l.b16 %v38
  %v52 = vpack.c.b16 %v49, %v48
  %v53 = vpack.c.b16 %v51, %v50
  %vm56 = vcmask 261120
  %v58 = vsel %vm56, %v43, 0
  %60 = vmatpush.bf16.msra.mxu0 0
  %61 = vmatpush.bf16.msra.mxu0 0
  %62 = vmatpush.bf16.msra.mxu0 0
  %63 = vmatpush.bf16.msra.mxu0 0
  %64 = vmatpush.bf16.msra.mxu0 0
  %65 = vmatpush.bf16.msra.mxu0 0
  %66 = vmatpush.bf16.msra.mxu0 %v53
  %67 = vmatpush.bf16.msra.mxu0 %v52
  %68 = vmatmul.bf16.gmra.mxu0 %v58
  %v69 = vpop.f32.mrf.mxu0
  %v70 = vadd.f32 0.0, %v69
  %v71 = vpop.f32.mrf.mxu0
  %v72 = vadd.f32 0.0, %v71
  %73 = vdwg.mxu0
  %v74 = vadd.f32 %v31, %v70
  %v75 = vadd.f32 %v32, %v72
  %76 = vst.msk [vmem:[#allocation2] sm:$0xff] %vm56, %v74
  %77 = vst.msk [vmem:[#allocation2 + $0x8] sm:$0xff] %vm56, %v75
  // Predicated region
  $region30: #{bert_forward.18} parent=0 // pred_check
    %p78 = pneg %p24
  $region31: #{bert_forward.18} parent=0 // pred_check_branch
    %80 = sbr.rel (%p78) target = $region33
  $region32: #{bert_forward.18} parent=0 // pred_region
    %v81 = vld [vmem:[#allocation2] sm:$0xff]
    %v82 = vld [vmem:[#allocation2 + $0x8] sm:$0xff]
    %v83 = vld [vmem:[%s2] sm:$0x1]
    %v85 = vperm.slane %v83, 0
    %v87 = vadd.f32 %v81, %v85
    %v88 = vadd.f32 %v82, %v85
    %v89 = vld [vmem:[%s3] sm:$0xf]
    %v90 = vld [vmem:[%s3 + $0x4] sm:$0xf]
    %v91 = vunpack.c.l.bf16 %v89
    %v92 = vunpack.c.l.bf16 %v90
    %v93 = vadd.f32 %v87, %v91
    %v94 = vadd.f32 %v88, %v92
    %v95 = vld [vmem:[%s4] sm:$0x1]
    %v96 = vld [vmem:[%s5] sm:$0x1]
    %v97 = vsel %vm56, %v93, 0.0
    %98 = vadd.xlane.f32.xlu0 %v97
    %v99 = vpop.xlane.xlu0 %98
    %v100 = vsel %vm56, %v94, 0.0
    %101 = vadd.xlane.f32.xlu0 %v100
    %v102 = vpop.xlane.xlu0 %101
    %v103 = vrcp.pop 32.0
    %v104 = vmul.f32 32.0, %v103
    %v105 = vsub.f32 1.0, %v104
    %v106 = vmul.f32 %v103, %v105
    %v107 = vadd.f32 %v103, %v106
    %vm108 = vweird.f32 %v103
    %v109 = vsel %vm108, %v103, %v107
    %v110 = vmul.f32 %v99, %v109
    %v111 = vmul.f32 %v102, %v109
    %v112 = vsub.f32 %v93, %v110
    %v113 = vsub.f32 %v94, %v111
    %v114 = vmul.f32 %v112, %v112
    %v115 = vmul.f32 %v113, %v113
    %v116 = vsel %vm56, %v114, 0.0
    %117 = vadd.xlane.f32.xlu0 %v116
    %v118 = vpop.xlane.xlu0 %117
    %v119 = vsel %vm56, %v115, 0.0
    %120 = vadd.xlane.f32.xlu0 %v119
    %v121 = vpop.xlane.xlu0 %120
    %v122 = vmul.f32 %v118, %v109
    %v123 = vmul.f32 %v121, %v109
    %v124 = vadd.f32 %v122, 1e-12
    %v125 = vadd.f32 %v123, 1e-12
    %v126 = vrsqrt.pop %v124
    %v127 = vmul.f32 %v126, %v124
    %v128 = vmul.f32 %v127, %v126
    %v129 = vmul.f32 0.5, %v128
    %v130 = vsub.f32 1.5, %v129
    %v131 = vmul.f32 %v126, %v130
    %vm132 = vweird.f32 %v124
    %vm133 = vweird.f32 %v126
    %vm134 = vmor %vm132, %vm133
    %v135 = vsel %vm134, %v126, %v131
    %v136 = vrsqrt.pop %v125
    %v137 = vmul.f32 %v136, %v125
    %v138 = vmul.f32 %v137, %v136
    %v139 = vmul.f32 0.5, %v138
    %v140 = vsub.f32 1.5, %v139
    %v141 = vmul.f32 %v136, %v140
    %vm142 = vweird.f32 %v125
    %vm143 = vweird.f32 %v136
    %vm144 = vmor %vm142, %vm143
    %v145 = vsel %vm144, %v136, %v141
    %v146 = vmul.f32 %v112, %v135
    %v147 = vmul.f32 %v113, %v145
    %v149 = vperm.slane %v95, 0
    %v151 = vmul.f32 %v146, %v149
    %v152 = vmul.f32 %v147, %v149
    %v154 = vperm.slane %v96, 0
    %v156 = vadd.f32 %v151, %v154
    %v157 = vadd.f32 %v152, %v154
    %v158 = vpack.c.bf16 %v156, %v156
    %v159 = vpack.c.bf16 %v157, %v157
    %vm160 = vcmask 257024
    %161 = vst.msk [vmem:[%s6] sm:$0xf] %vm160, %v158
    %162 = vst.msk [vmem:[%s6 + $0x4] sm:$0xf] %vm160, %v159
  $region33: #{bert_forward.18} parent=0 // pred_fallthru
    _
  // Predicated region
  $region34: #{bert_forward.18} parent=0 // pred_check
    _
  $region35: #{bert_forward.18} parent=0 // pred_check_branch
    %164 = sbr.rel (0) target = $region37
  $region36: #{bert_forward.18} parent=0 // pred_region
    _
  $region37: #{bert_forward.18} parent=0 // pred_fallthru
    _
  // Predicated region
  $region38: #{bert_forward.18} parent=0 // pred_check
    _
  $region39: #{bert_forward.18} parent=0 // pred_check_branch
    %166 = sbr.rel (0) target = $region41
  $region40: #{bert_forward.18} parent=0 // pred_region
    _
  $region41: #{bert_forward.18} parent=0 // pred_fallthru
    _

// kernel: bert_forward.19
$region0: #{bert_forward.19}
  #allocation0 [shape = 'u32[]', space=smem, size = 0x4, offset = 0x4, fixed_abs, tag = 'smem constant byte address 0x4 - core index']
  #allocation1 [shape = 'u32[72,128]{1,0:T(1,128)}', space=vmem, size = 0x9000, scoped, tag = 'internal scratch']
  #allocation2 [shape = 'f32[16,64]{1,0:T(8,128)}', space=vmem, size = 0x2000, scoped, tag = 'scratch operand']
  %s0 = inlined_call_operand.vmem [shape: bf16[16,32], index: 0, kind: input, shape index: {}]
  %s1 = inlined_call_operand.vmem [shape: bf16[32,64], index: 1, kind: input, shape index: {}]
  %s2 = inlined_call_operand.vmem [shape: f32[1,64], index: 2, kind: input, shape index: {}]
  %s3 = inlined_call_operand.vmem [shape: bf16[16,64], index: 3, kind: output, shape index: {}]
  %s4 = sld [smem:[#allocation0]]
  $region30: #{bert_forward.19} parent=0
    _
  %s6 = ssub.s32 1, %s4
  %s7 = scalar_select 0, %s6, %s4
  // Predicated region
  $region2: #{bert_forward.19} parent=0 // pred_check
    _
  $region3: #{bert_forward.19} parent=0 // pred_check_branch
    %9 = sbr.rel (0) target = $region5
  $region4: #{bert_forward.19} parent=0 // pred_region
    _
  $region5: #{bert_forward.19} parent=0 // pred_fallthru
    _
  // Predicated region
  $region6: #{bert_forward.19} parent=0 // pred_check
    _
  $region7: #{bert_forward.19} parent=0 // pred_check_branch
    %11 = sbr.rel (0) target = $region9
  $region8: #{bert_forward.19} parent=0 // pred_region
    _
  $region9: #{bert_forward.19} parent=0 // pred_fallthru
    _
  // Predicated region
  $region10: #{bert_forward.19} parent=0 // pred_check
    _
  $region11: #{bert_forward.19} parent=0 // pred_check_branch
    %13 = sbr.rel (0) target = $region13
  $region12: #{bert_forward.19} parent=0 // pred_region
    _
  $region13: #{bert_forward.19} parent=0 // pred_fallthru
    _
  %p15 = scmp.eq.s32.totalorder 0, 0
  // Predicated region
  $region14: #{bert_forward.19} parent=0 // pred_check
    %p16 = pneg %p15
  $region15: #{bert_forward.19} parent=0 // pred_check_branch
    %18 = sbr.rel (%p16) target = $region17
  $region16: #{bert_forward.19} parent=0 // pred_region
    %vm19 = vcmask 523264
    %20 = vst.msk [vmem:[#allocation2] sm:$0xff] %vm19, 0.0
    %21 = vst.msk [vmem:[#allocation2 + $0x8] sm:$0xff] %vm19, 0.0
  $region17: #{bert_forward.19} parent=0 // pred_fallthru
    _
  %v22 = vld [vmem:[#allocation2] sm:$0xff]
  %v23 = vld [vmem:[#allocation2 + $0x8] sm:$0xff]
  %v24 = vld [vmem:[%s0] sm:$0xf]
  %v25 = vld [vmem:[%s0 + $0x4] sm:$0xf]
  %v26 = vld [vmem:[%s1] sm:$0xf]
  %v27 = vld [vmem:[%s1 + $0x4] sm:$0xf]
  %v28 = vld [vmem:[%s1 + $0x8] sm:$0xf]
  %v29 = vld [vmem:[%s1 + $0xc] sm:$0xf]
  %v32 = vunpack.c.l.b16 %v24
  %v33 = vunpack.c.l.b16 %v25
  %v34 = vpack.c.b16 %v33, %v32
  %v39 = vunpack.c.l.b16 %v26
  %v40 = vunpack.c.l.b16 %v27
  %v41 = vunpack.c.l.b16 %v28
  %v42 = vunpack.c.l.b16 %v29
  %v43 = vpack.c.b16 %v40, %v39
  %v44 = vpack.c.b16 %v42, %v41
  %vm47 = vcmask 261120
  %v49 = vsel %vm47, %v34, 0
  %51 = vmatpush.bf16.msra.mxu0 0
  %52 = vmatpush.bf16.msra.mxu0 0
  %53 = vmatpush.bf16.msra.mxu0 0
  %54 = vmatpush.bf16.msra.mxu0 0
  %55 = vmatpush.bf16.msra.mxu0 0
  %56 = vmatpush.bf16.msra.mxu0 0
  %57 = vmatpush.bf16.msra.mxu0 %v44
  %58 = vmatpush.bf16.msra.mxu0 %v43
  %59 = vmatmul.bf16.gmra.mxu0 %v49
  %v60 = vpop.f32.mrf.mxu0
  %v61 = vadd.f32 0.0, %v60
  %v62 = vpop.f32.mrf.mxu0
  %v63 = vadd.f32 0.0, %v62
  %64 = vdwg.mxu0
  %v65 = vadd.f32 %v22, %v61
  %v66 = vadd.f32 %v23, %v63
  %vm67 = vcmask 523264
  %68 = vst.msk [vmem:[#allocation2] sm:$0xff] %vm67, %v65
  %69 = vst.msk [vmem:[#allocation2 + $0x8] sm:$0xff] %vm67, %v66
  // Predicated region
  $region18: #{bert_forward.19} parent=0 // pred_check
    %p70 = pneg %p15
  $region19: #{bert_forward.19} parent=0 // pred_check_branch
    %72 = sbr.rel (%p70) target = $region21
  $region20: #{bert_forward.19} parent=0 // pred_region
    %v73 = vld [vmem:[#allocation2] sm:$0xff]
    %v74 = vld [vmem:[#allocation2 + $0x8] sm:$0xff]
    %v75 = vld [vmem:[%s2] sm:$0x1]
    %v77 = vperm.slane %v75, 0
    %v79 = vadd.f32 %v73, %v77
    %v80 = vadd.f32 %v74, %v77
    %v81 = vmax.f32 %v79, 0.0
    %v82 = vmax.f32 %v80, 0.0
    %v83 = vpack.c.bf16 %v81, %v81
    %v84 = vpack.c.bf16 %v82, %v82
    %vm85 = vcmask 519168
    %86 = vst.msk [vmem:[%s3] sm:$0xf] %vm85, %v83
    %87 = vst.msk [vmem:[%s3 + $0x4] sm:$0xf] %vm85, %v84
  $region21: #{bert_forward.19} parent=0 // pred_fallthru
    _
  // Predicated region
  $region22: #{bert_forward.19} parent=0 // pred_check
    _
  $region23: #{bert_forward.19} parent=0 // pred_check_branch
    %89 = sbr.rel (0) target = $region25
  $region24: #{bert_forward.19} parent=0 // pred_region
    _
  $region25: #{bert_forward.19} parent=0 // pred_fallthru
    _
  // Predicated region
  $region26: #{bert_forward.19} parent=0 // pred_check
    _
  $region27: #{bert_forward.19} parent=0 // pred_check_branch
    %91 = sbr.rel (0) target = $region29
  $region28: #{bert_forward.19} parent=0 // pred_region
    _
  $region29: #{bert_forward.19} parent=0 // pred_fallthru
    _

// kernel: bert_forward.28
$region0: #{bert_forward.28}
  #allocation0 [shape = 'u32[]', space=smem, size = 0x4, offset = 0x4, fixed_abs, tag = 'smem constant byte address 0x4 - core index']
  #allocation1 [shape = 'u32[72,128]{1,0:T(1,128)}', space=vmem, size = 0x9000, scoped, tag = 'internal scratch']
  #allocation2 [shape = 'f32[16,128]{1,0:T(8,128)}', space=vmem, size = 0x2000, scoped, tag = 'scratch operand']
  %s0 = inlined_call_operand.vmem [shape: bf16[16,32], index: 0, kind: input, shape index: {}]
  %s1 = inlined_call_operand.vmem [shape: bf16[128,32], index: 1, kind: input, shape index: {}]
  %s2 = inlined_call_operand.vmem [shape: f32[1,128], index: 2, kind: input, shape index: {}]
  %s3 = inlined_call_operand.hbm [shape: f32[16,128], index: 3, kind: output, shape index: {}]
  %s4 = sld [smem:[#allocation0]]
  $region30: #{bert_forward.28} parent=0
    _
  %s6 = ssub.s32 1, %s4
  %s7 = scalar_select 0, %s6, %s4
  $region1: #{bert_forward.28} parent=0
    #allocation3 [shape = 'u8[8192]{0}', space=vmem, size = 0x2000, scoped, tag = 'output window, operand 0, single buffered']
    #allocation4 [shape = 's32[1]{0}', space=sflag, size = 0x4, scoped, tag = 'scoped memory for bert_forward.28']
    %8 = vsyncpa [#allocation4], 0
    // Predicated region
    $region2: #{bert_forward.28} parent=1 // pred_check
      _
    $region3: #{bert_forward.28} parent=1 // pred_check_branch
      %10 = sbr.rel (0) target = $region5
    $region4: #{bert_forward.28} parent=1 // pred_region
      _
    $region5: #{bert_forward.28} parent=1 // pred_fallthru
      _
    // Predicated region
    $region6: #{bert_forward.28} parent=1 // pred_check
      _
    $region7: #{bert_forward.28} parent=1 // pred_check_branch
      %12 = sbr.rel (0) target = $region9
    $region8: #{bert_forward.28} parent=1 // pred_region
      _
    $region9: #{bert_forward.28} parent=1 // pred_fallthru
      _
    // Predicated region
    $region10: #{bert_forward.28} parent=1 // pred_check
      _
    $region11: #{bert_forward.28} parent=1 // pred_check_branch
      %14 = sbr.rel (0) target = $region13
    $region12: #{bert_forward.28} parent=1 // pred_region
      _
    $region13: #{bert_forward.28} parent=1 // pred_fallthru
      _
    %p15 = scmp.eq.s32.totalorder 0, 0
    // Predicated region
    $region14: #{bert_forward.28} parent=1 // pred_check
      %p16 = pneg %p15
    $region15: #{bert_forward.28} parent=1 // pred_check_branch
      %18 = sbr.rel (%p16) target = $region17
    $region16: #{bert_forward.28} parent=1 // pred_region
      %19 = vst [vmem:[#allocation2] sm:$0xff] 0.0
      %20 = vst [vmem:[#allocation2 + $0x8] sm:$0xff] 0.0
    $region17: #{bert_forward.28} parent=1 // pred_fallthru
      _
    %v21 = vld [vmem:[#allocation2] sm:$0xff]
    %v22 = vld [vmem:[#allocation2 + $0x8] sm:$0xff]
    %v23 = vld [vmem:[%s0] sm:$0xf]
    %v24 = vld [vmem:[%s0 + $0x4] sm:$0xf]
    %v25 = vld [vmem:[%s1] sm:$0xf]
    %v26 = vld [vmem:[%s1 + $0x4] sm:$0xf]
    %v27 = vld [vmem:[%s1 + $0x8] sm:$0xf]
    %v28 = vld [vmem:[%s1 + $0xc] sm:$0xf]
    %v29 = vld [vmem:[%s1 + $0x10] sm:$0xf]
    %v30 = vld [vmem:[%s1 + $0x14] sm:$0xf]
    %v31 = vld [vmem:[%s1 + $0x18] sm:$0xf]
    %v32 = vld [vmem:[%s1 + $0x1c] sm:$0xf]
    %v33 = vld [vmem:[%s1 + $0x20] sm:$0xf]
    %v34 = vld [vmem:[%s1 + $0x24] sm:$0xf]
    %v35 = vld [vmem:[%s1 + $0x28] sm:$0xf]
    %v36 = vld [vmem:[%s1 + $0x2c] sm:$0xf]
    %v37 = vld [vmem:[%s1 + $0x30] sm:$0xf]
    %v38 = vld [vmem:[%s1 + $0x34] sm:$0xf]
    %v39 = vld [vmem:[%s1 + $0x38] sm:$0xf]
    %v40 = vld [vmem:[%s1 + $0x3c] sm:$0xf]
    %v43 = vunpack.c.l.b16 %v23
    %v44 = vunpack.c.l.b16 %v24
    %v45 = vpack.c.b16 %v44, %v43
    %v62 = vunpack.c.l.b16 %v25
    %v63 = vunpack.c.l.b16 %v26
    %v64 = vunpack.c.l.b16 %v27
    %v65 = vunpack.c.l.b16 %v28
    %v66 = vunpack.c.l.b16 %v29
    %v67 = vunpack.c.l.b16 %v30
    %v68 = vunpack.c.l.b16 %v31
    %v69 = vunpack.c.l.b16 %v32
    %v70 = vunpack.c.l.b16 %v33
    %v71 = vunpack.c.l.b16 %v34
    %v72 = vunpack.c.l.b16 %v35
    %v73 = vunpack.c.l.b16 %v36
    %v74 = vunpack.c.l.b16 %v37
    %v75 = vunpack.c.l.b16 %v38
    %v76 = vunpack.c.l.b16 %v39
    %v77 = vunpack.c.l.b16 %v40
    %v78 = vpack.c.b16 %v63, %v62
    %v79 = vpack.c.b16 %v65, %v64
    %v80 = vpack.c.b16 %v67, %v66
    %v81 = vpack.c.b16 %v69, %v68
    %v82 = vpack.c.b16 %v71, %v70
    %v83 = vpack.c.b16 %v73, %v72
    %v84 = vpack.c.b16 %v75, %v74
    %v85 = vpack.c.b16 %v77, %v76
    %vm86 = vcmask 261120
    %v88 = vsel %vm86, %v45, 0
    %v91 = vsel %vm86, %v78, 0
    %v94 = vsel %vm86, %v79, 0
    %v97 = vsel %vm86, %v80, 0
    %v100 = vsel %vm86, %v81, 0
    %v103 = vsel %vm86, %v82, 0
    %v106 = vsel %vm86, %v83, 0
    %v109 = vsel %vm86, %v84, 0
    %v112 = vsel %vm86, %v85, 0
    %114 = vmatpush.bf16.xpose.msra.mxu0 %v112
    %115 = vmatpush.bf16.xpose.msra.mxu0 %v109
    %116 = vmatpush.bf16.xpose.msra.mxu0 %v106
    %117 = vmatpush.bf16.xpose.msra.mxu0 %v103
    %118 = vmatpush.bf16.xpose.msra.mxu0 %v100
    %119 = vmatpush.bf16.xpose.msra.mxu0 %v97
    %120 = vmatpush.bf16.xpose.msra.mxu0 %v94
    %121 = vmatpush.bf16.xpose.msra.mxu0 %v91
    %122 = vmatmul.bf16.gmra.mxu0 %v88
    %v123 = vpop.f32.mrf.mxu0
    %v124 = vadd.f32 0.0, %v123
    %v125 = vpop.f32.mrf.mxu0
    %v126 = vadd.f32 0.0, %v125
    %127 = vdwg.mxu0
    %v128 = vadd.f32 %v21, %v124
    %v129 = vadd.f32 %v22, %v126
    %130 = vst [vmem:[#allocation2] sm:$0xff] %v128
    %131 = vst [vmem:[#allocation2 + $0x8] sm:$0xff] %v129
    // Predicated region
    $region18: #{bert_forward.28} parent=1 // pred_check
      %p132 = pneg %p15
    $region19: #{bert_forward.28} parent=1 // pred_check_branch
      %134 = sbr.rel (%p132) target = $region21
    $region20: #{bert_forward.28} parent=1 // pred_region
      %v135 = vld [vmem:[#allocation2] sm:$0xff]
      %v136 = vld [vmem:[#allocation2 + $0x8] sm:$0xff]
      %v137 = vld [vmem:[%s2] sm:$0x1]
      %v139 = vperm.slane %v137, 0
      %v141 = vadd.f32 %v135, %v139
      %v142 = vadd.f32 %v136, %v139
      %143 = vst [vmem:[#allocation3] sm:$0xff] %v141
      %144 = vst [vmem:[#allocation3 + $0x8] sm:$0xff] %v142
    $region21: #{bert_forward.28} parent=1 // pred_fallthru
      _
    // Predicated region
    $region22: #{bert_forward.28} parent=1 // pred_check
      _
    $region23: #{bert_forward.28} parent=1 // pred_check_branch
      %146 = sbr.rel (0) target = $region25
    $region24: #{bert_forward.28} parent=1 // pred_region
      %148 = vsyncadd [#allocation4], 0
      %s149 = sshll.u32 [#allocation3], 4
      %s150 = int_to_ptr.vmem [resolvable:$true] %s149
      %s151 = sshll.u32 %s3, 4
      %s152 = int_to_ptr.hbm [resolvable:$true] %s151
      %157 = dma.vmem_to_hbm [thread:$0]  %s150, 256, %s152, [#allocation4], 128, 128, 8
    $region25: #{bert_forward.28} parent=1 // pred_fallthru
      _
    // Predicated region
    $region26: #{bert_forward.28} parent=1 // pred_check
      _
    $region27: #{bert_forward.28} parent=1 // pred_check_branch
      %159 = sbr.rel (0) target = $region29
    $region28: #{bert_forward.28} parent=1 // pred_region
      %161 = dma.done [#allocation4], 256
    $region29: #{bert_forward.28} parent=1 // pred_fallthru
      _
    %162 = vsyncpa [#allocation4], 1

// kernel: bert_forward.20
$region0: #{bert_forward.20}
  #allocation0 [shape = 'u32[]', space=smem, size = 0x4, offset = 0x4, fixed_abs, tag = 'smem constant byte address 0x4 - core index']
  #allocation1 [shape = 'u32[72,128]{1,0:T(1,128)}', space=vmem, size = 0x9000, scoped, tag = 'internal scratch']
  #allocation2 [shape = 'f32[16,32]{1,0:T(8,128)}', space=vmem, size = 0x2000, scoped, tag = 'scratch operand']
  %s0 = inlined_call_operand.vmem [shape: bf16[16,64], index: 0, kind: input, shape index: {}]
  %s1 = inlined_call_operand.vmem [shape: bf16[64,32], index: 1, kind: input, shape index: {}]
  %s2 = inlined_call_operand.vmem [shape: f32[1,32], index: 2, kind: input, shape index: {}]
  %s3 = inlined_call_operand.vmem [shape: bf16[16,32], index: 3, kind: input, shape index: {}]
  %s4 = inlined_call_operand.vmem [shape: f32[1,32], index: 4, kind: input, shape index: {}]
  %s5 = inlined_call_operand.vmem [shape: f32[1,32], index: 5, kind: input, shape index: {}]
  %s6 = inlined_call_operand.vmem [shape: bf16[16,32], index: 6, kind: output, shape index: {}]
  %s7 = sld [smem:[#allocation0]]
  $region42: #{bert_forward.20} parent=0
    _
  %s9 = ssub.s32 1, %s7
  %s10 = scalar_select 0, %s9, %s7
  // Predicated region
  $region2: #{bert_forward.20} parent=0 // pred_check
    _
  $region3: #{bert_forward.20} parent=0 // pred_check_branch
    %12 = sbr.rel (0) target = $region5
  $region4: #{bert_forward.20} parent=0 // pred_region
    _
  $region5: #{bert_forward.20} parent=0 // pred_fallthru
    _
  // Predicated region
  $region6: #{bert_forward.20} parent=0 // pred_check
    _
  $region7: #{bert_forward.20} parent=0 // pred_check_branch
    %14 = sbr.rel (0) target = $region9
  $region8: #{bert_forward.20} parent=0 // pred_region
    _
  $region9: #{bert_forward.20} parent=0 // pred_fallthru
    _
  // Predicated region
  $region10: #{bert_forward.20} parent=0 // pred_check
    _
  $region11: #{bert_forward.20} parent=0 // pred_check_branch
    %16 = sbr.rel (0) target = $region13
  $region12: #{bert_forward.20} parent=0 // pred_region
    _
  $region13: #{bert_forward.20} parent=0 // pred_fallthru
    _
  // Predicated region
  $region14: #{bert_forward.20} parent=0 // pred_check
    _
  $region15: #{bert_forward.20} parent=0 // pred_check_branch
    %18 = sbr.rel (0) target = $region17
  $region16: #{bert_forward.20} parent=0 // pred_region
    _
  $region17: #{bert_forward.20} parent=0 // pred_fallthru
    _
  // Predicated region
  $region18: #{bert_forward.20} parent=0 // pred_check
    _
  $region19: #{bert_forward.20} parent=0 // pred_check_branch
    %20 = sbr.rel (0) target = $region21
  $region20: #{bert_forward.20} parent=0 // pred_region
    _
  $region21: #{bert_forward.20} parent=0 // pred_fallthru
    _
  // Predicated region
  $region22: #{bert_forward.20} parent=0 // pred_check
    _
  $region23: #{bert_forward.20} parent=0 // pred_check_branch
    %22 = sbr.rel (0) target = $region25
  $region24: #{bert_forward.20} parent=0 // pred_region
    _
  $region25: #{bert_forward.20} parent=0 // pred_fallthru
    _
  %p24 = scmp.eq.s32.totalorder 0, 0
  // Predicated region
  $region26: #{bert_forward.20} parent=0 // pred_check
    %p25 = pneg %p24
  $region27: #{bert_forward.20} parent=0 // pred_check_branch
    %27 = sbr.rel (%p25) target = $region29
  $region28: #{bert_forward.20} parent=0 // pred_region
    %vm28 = vcmask 261120
    %29 = vst.msk [vmem:[#allocation2] sm:$0xff] %vm28, 0.0
    %30 = vst.msk [vmem:[#allocation2 + $0x8] sm:$0xff] %vm28, 0.0
  $region29: #{bert_forward.20} parent=0 // pred_fallthru
    _
  %v31 = vld [vmem:[#allocation2] sm:$0xff]
  %v32 = vld [vmem:[#allocation2 + $0x8] sm:$0xff]
  %v33 = vld [vmem:[%s0] sm:$0xf]
  %v34 = vld [vmem:[%s0 + $0x4] sm:$0xf]
  %v35 = vld [vmem:[%s1] sm:$0xf]
  %v36 = vld [vmem:[%s1 + $0x4] sm:$0xf]
  %v37 = vld [vmem:[%s1 + $0x8] sm:$0xf]
  %v38 = vld [vmem:[%s1 + $0xc] sm:$0xf]
  %v39 = vld [vmem:[%s1 + $0x10] sm:$0xf]
  %v40 = vld [vmem:[%s1 + $0x14] sm:$0xf]
  %v41 = vld [vmem:[%s1 + $0x18] sm:$0xf]
  %v42 = vld [vmem:[%s1 + $0x1c] sm:$0xf]
  %v45 = vunpack.c.l.b16 %v33
  %v46 = vunpack.c.l.b16 %v34
  %v47 = vpack.c.b16 %v46, %v45
  %v56 = vunpack.c.l.b16 %v35
  %v57 = vunpack.c.l.b16 %v36
  %v58 = vunpack.c.l.b16 %v37
  %v59 = vunpack.c.l.b16 %v38
  %v60 = vunpack.c.l.b16 %v39
  %v61 = vunpack.c.l.b16 %v40
  %v62 = vunpack.c.l.b16 %v41
  %v63 = vunpack.c.l.b16 %v42
  %v64 = vpack.c.b16 %v57, %v56
  %v65 = vpack.c.b16 %v59, %v58
  %v66 = vpack.c.b16 %v61, %v60
  %v67 = vpack.c.b16 %v63, %v62
  %vm72 = vcmask 523264
  %v74 = vsel %vm72, %v47, 0
  %76 = vmatpush.bf16.msra.mxu0 0
  %77 = vmatpush.bf16.msra.mxu0 0
  %78 = vmatpush.bf16.msra.mxu0 0
  %79 = vmatpush.bf16.msra.mxu0 0
  %80 = vmatpush.bf16.msra.mxu0 %v67
  %81 = vmatpush.bf16.msra.mxu0 %v66
  %82 = vmatpush.bf16.msra.mxu0 %v65
  %83 = vmatpush.bf16.msra.mxu0 %v64
  %84 = vmatmul.bf16.gmra.mxu0 %v74
  %v85 = vpop.f32.mrf.mxu0
  %v86 = vadd.f32 0.0, %v85
  %v87 = vpop.f32.mrf.mxu0
  %v88 = vadd.f32 0.0, %v87
  %89 = vdwg.mxu0
  %v90 = vadd.f32 %v31, %v86
  %v91 = vadd.f32 %v32, %v88
  %vm92 = vcmask 261120
  %93 = vst.msk [vmem:[#allocation2] sm:$0xff] %vm92, %v90
  %94 = vst.msk [vmem:[#allocation2 + $0x8] sm:$0xff] %vm92, %v91
  // Predicated region
  $region30: #{bert_forward.20} parent=0 // pred_check
    %p95 = pneg %p24
  $region31: #{bert_forward.20} parent=0 // pred_check_branch
    %97 = sbr.rel (%p95) target = $region33
  $region32: #{bert_forward.20} parent=0 // pred_region
    %v98 = vld [vmem:[#allocation2] sm:$0xff]
    %v99 = vld [vmem:[#allocation2 + $0x8] sm:$0xff]
    %v100 = vld [vmem:[%s2] sm:$0x1]
    %v102 = vperm.slane %v100, 0
    %v104 = vadd.f32 %v98, %v102
    %v105 = vadd.f32 %v99, %v102
    %v106 = vld [vmem:[%s3] sm:$0xf]
    %v107 = vld [vmem:[%s3 + $0x4] sm:$0xf]
    %v108 = vunpack.c.l.bf16 %v106
    %v109 = vunpack.c.l.bf16 %v107
    %v110 = vadd.f32 %v104, %v108
    %v111 = vadd.f32 %v105, %v109
    %v112 = vld [vmem:[%s4] sm:$0x1]
    %v113 = vld [vmem:[%s5] sm:$0x1]
    %v114 = vsel %vm92, %v110, 0.0
    %115 = vadd.xlane.f32.xlu0 %v114
    %v116 = vpop.xlane.xlu0 %115
    %v117 = vsel %vm92, %v111, 0.0
    %118 = vadd.xlane.f32.xlu0 %v117
    %v119 = vpop.xlane.xlu0 %118
    %v120 = vrcp.pop 32.0
    %v121 = vmul.f32 32.0, %v120
    %v122 = vsub.f32 1.0, %v121
    %v123 = vmul.f32 %v120, %v122
    %v124 = vadd.f32 %v120, %v123
    %vm125 = vweird.f32 %v120
    %v126 = vsel %vm125, %v120, %v124
    %v127 = vmul.f32 %v116, %v126
    %v128 = vmul.f32 %v119, %v126
    %v129 = vsub.f32 %v110, %v127
    %v130 = vsub.f32 %v111, %v128
    %v131 = vmul.f32 %v129, %v129
    %v132 = vmul.f32 %v130, %v130
    %v133 = vsel %vm92, %v131, 0.0
    %134 = vadd.xlane.f32.xlu0 %v133
    %v135 = vpop.xlane.xlu0 %134
    %v136 = vsel %vm92, %v132, 0.0
    %137 = vadd.xlane.f32.xlu0 %v136
    %v138 = vpop.xlane.xlu0 %137
    %v139 = vmul.f32 %v135, %v126
    %v140 = vmul.f32 %v138, %v126
    %v141 = vadd.f32 %v139, 1e-12
    %v142 = vadd.f32 %v140, 1e-12
    %v143 = vrsqrt.pop %v141
    %v144 = vmul.f32 %v143, %v141
    %v145 = vmul.f32 %v144, %v143
    %v146 = vmul.f32 0.5, %v145
    %v147 = vsub.f32 1.5, %v146
    %v148 = vmul.f32 %v143, %v147
    %vm149 = vweird.f32 %v141
    %vm150 = vweird.f32 %v143
    %vm151 = vmor %vm149, %vm150
    %v152 = vsel %vm151, %v143, %v148
    %v153 = vrsqrt.pop %v142
    %v154 = vmul.f32 %v153, %v142
    %v155 = vmul.f32 %v154, %v153
    %v156 = vmul.f32 0.5, %v155
    %v157 = vsub.f32 1.5, %v156
    %v158 = vmul.f32 %v153, %v157
    %vm159 = vweird.f32 %v142
    %vm160 = vweird.f32 %v153
    %vm161 = vmor %vm159, %vm160
    %v162 = vsel %vm161, %v153, %v158
    %v163 = vmul.f32 %v129, %v152
    %v164 = vmul.f32 %v130, %v162
    %v166 = vperm.slane %v112, 0
    %v168 = vmul.f32 %v163, %v166
    %v169 = vmul.f32 %v164, %v166
    %v171 = vperm.slane %v113, 0
    %v173 = vadd.f32 %v168, %v171
    %v174 = vadd.f32 %v169, %v171
    %v175 = vpack.c.bf16 %v173, %v173
    %v176 = vpack.c.bf16 %v174, %v174
    %vm177 = vcmask 257024
    %178 = vst.msk [vmem:[%s6] sm:$0xf] %vm177, %v175
    %179 = vst.msk [vmem:[%s6 + $0x4] sm:$0xf] %vm177, %v176
  $region33: #{bert_forward.20} parent=0 // pred_fallthru
    _
  // Predicated region
  $region34: #{bert_forward.20} parent=0 // pred_check
    _
  $region35: #{bert_forward.20} parent=0 // pred_check_branch
    %181 = sbr.rel (0) target = $region37
  $region36: #{bert_forward.20} parent=0 // pred_region
    _
  $region37: #{bert_forward.20} parent=0 // pred_fallthru
    _
  // Predicated region
  $region38: #{bert_forward.20} parent=0 // pred_check
    _
  $region39: #{bert_forward.20} parent=0 // pred_check_branch
    %183 = sbr.rel (0) target = $region41
  $region40: #{bert_forward.20} parent=0 // pred_region
    _
  $region41: #{bert_forward.20} parent=0 // pred_fallthru
    _

// kernel: bert_forward.27
$region0: #{bert_forward.27}
  #allocation0 [shape = 'u32[]', space=smem, size = 0x4, offset = 0x4, fixed_abs, tag = 'smem constant byte address 0x4 - core index']
  #allocation1 [shape = 'u32[72,128]{1,0:T(1,128)}', space=vmem, size = 0x9000, scoped, tag = 'internal scratch']
  #allocation2 [shape = 'f32[16,32]{1,0:T(8,128)}', space=vmem, size = 0x2000, scoped, tag = 'scratch operand']
  %s0 = inlined_call_operand.vmem [shape: bf16[16,32], index: 0, kind: input, shape index: {}]
  %s1 = inlined_call_operand.vmem [shape: bf16[32,32], index: 1, kind: input, shape index: {}]
  %s2 = inlined_call_operand.vmem [shape: f32[1,32], index: 2, kind: input, shape index: {}]
  %s3 = inlined_call_operand.vmem [shape: f32[1,32], index: 3, kind: input, shape index: {}]
  %s4 = inlined_call_operand.vmem [shape: f32[1,32], index: 4, kind: input, shape index: {}]
  %s5 = inlined_call_operand.vmem [shape: bf16[16,32], index: 5, kind: output, shape index: {}]
  %s6 = sld [smem:[#allocation0]]
  $region38: #{bert_forward.27} parent=0
    _
  %s8 = ssub.s32 1, %s6
  %s9 = scalar_select 0, %s8, %s6
  // Predicated region
  $region2: #{bert_forward.27} parent=0 // pred_check
    _
  $region3: #{bert_forward.27} parent=0 // pred_check_branch
    %11 = sbr.rel (0) target = $region5
  $region4: #{bert_forward.27} parent=0 // pred_region
    _
  $region5: #{bert_forward.27} parent=0 // pred_fallthru
    _
  // Predicated region
  $region6: #{bert_forward.27} parent=0 // pred_check
    _
  $region7: #{bert_forward.27} parent=0 // pred_check_branch
    %13 = sbr.rel (0) target = $region9
  $region8: #{bert_forward.27} parent=0 // pred_region
    _
  $region9: #{bert_forward.27} parent=0 // pred_fallthru
    _
  // Predicated region
  $region10: #{bert_forward.27} parent=0 // pred_check
    _
  $region11: #{bert_forward.27} parent=0 // pred_check_branch
    %15 = sbr.rel (0) target = $region13
  $region12: #{bert_forward.27} parent=0 // pred_region
    _
  $region13: #{bert_forward.27} parent=0 // pred_fallthru
    _
  // Predicated region
  $region14: #{bert_forward.27} parent=0 // pred_check
    _
  $region15: #{bert_forward.27} parent=0 // pred_check_branch
    %17 = sbr.rel (0) target = $region17
  $region16: #{bert_forward.27} parent=0 // pred_region
    _
  $region17: #{bert_forward.27} parent=0 // pred_fallthru
    _
  // Predicated region
  $region18: #{bert_forward.27} parent=0 // pred_check
    _
  $region19: #{bert_forward.27} parent=0 // pred_check_branch
    %19 = sbr.rel (0) target = $region21
  $region20: #{bert_forward.27} parent=0 // pred_region
    _
  $region21: #{bert_forward.27} parent=0 // pred_fallthru
    _
  %p21 = scmp.eq.s32.totalorder 0, 0
  // Predicated region
  $region22: #{bert_forward.27} parent=0 // pred_check
    %p22 = pneg %p21
  $region23: #{bert_forward.27} parent=0 // pred_check_branch
    %24 = sbr.rel (%p22) target = $region25
  $region24: #{bert_forward.27} parent=0 // pred_region
    %vm25 = vcmask 261120
    %26 = vst.msk [vmem:[#allocation2] sm:$0xff] %vm25, 0.0
    %27 = vst.msk [vmem:[#allocation2 + $0x8] sm:$0xff] %vm25, 0.0
  $region25: #{bert_forward.27} parent=0 // pred_fallthru
    _
  %v28 = vld [vmem:[#allocation2] sm:$0xff]
  %v29 = vld [vmem:[#allocation2 + $0x8] sm:$0xff]
  %v30 = vld [vmem:[%s0] sm:$0xf]
  %v31 = vld [vmem:[%s0 + $0x4] sm:$0xf]
  %v32 = vld [vmem:[%s1] sm:$0xf]
  %v33 = vld [vmem:[%s1 + $0x4] sm:$0xf]
  %v34 = vld [vmem:[%s1 + $0x8] sm:$0xf]
  %v35 = vld [vmem:[%s1 + $0xc] sm:$0xf]
  %v38 = vunpack.c.l.b16 %v30
  %v39 = vunpack.c.l.b16 %v31
  %v40 = vpack.c.b16 %v39, %v38
  %v45 = vunpack.c.l.b16 %v32
  %v46 = vunpack.c.l.b16 %v33
  %v47 = vunpack.c.l.b16 %v34
  %v48 = vunpack.c.l.b16 %v35
  %v49 = vpack.c.b16 %v46, %v45
  %v50 = vpack.c.b16 %v48, %v47
  %vm53 = vcmask 261120
  %v55 = vsel %vm53, %v40, 0
  %57 = vmatpush.bf16.msra.mxu0 0
  %58 = vmatpush.bf16.msra.mxu0 0
  %59 = vmatpush.bf16.msra.mxu0 0
  %60 = vmatpush.bf16.msra.mxu0 0
  %61 = vmatpush.bf16.msra.mxu0 0
  %62 = vmatpush.bf16.msra.mxu0 0
  %63 = vmatpush.bf16.msra.mxu0 %v50
  %64 = vmatpush.bf16.msra.mxu0 %v49
  %65 = vmatmul.bf16.gmra.mxu0 %v55
  %v66 = vpop.f32.mrf.mxu0
  %v67 = vadd.f32 0.0, %v66
  %v68 = vpop.f32.mrf.mxu0
  %v69 = vadd.f32 0.0, %v68
  %70 = vdwg.mxu0
  %v71 = vadd.f32 %v28, %v67
  %v72 = vadd.f32 %v29, %v69
  %73 = vst.msk [vmem:[#allocation2] sm:$0xff] %vm53, %v71
  %74 = vst.msk [vmem:[#allocation2 + $0x8] sm:$0xff] %vm53, %v72
  // Predicated region
  $region26: #{bert_forward.27} parent=0 // pred_check
    %p75 = pneg %p21
  $region27: #{bert_forward.27} parent=0 // pred_check_branch
    %77 = sbr.rel (%p75) target = $region29
  $region28: #{bert_forward.27} parent=0 // pred_region
    %v78 = vld [vmem:[#allocation2] sm:$0xff]
    %v79 = vld [vmem:[#allocation2 + $0x8] sm:$0xff]
    %v80 = vld [vmem:[%s2] sm:$0x1]
    %v82 = vperm.slane %v80, 0
    %v84 = vadd.f32 %v78, %v82
    %v85 = vadd.f32 %v79, %v82
    %v86 = vmul.f32 %v84, 0.5
    %v87 = vmul.f32 %v85, 0.5
    %v88 = vmul.f32 %v84, 0.70710677
    %v89 = vmul.f32 %v85, 0.70710677
    %v90 = vmul.f32 %v88, %v88
    %v91 = vmin.f32 16.0, %v90
    %v92 = vmul.f32 %v91, 2.1237322e-06
    %v93 = vadd.f32 %v92, 0.00028619796
    %v94 = vmul.f32 %v91, %v93
    %v95 = vadd.f32 %v94, 0.0036580483
    %v96 = vmul.f32 %v91, %v95
    %v97 = vadd.f32 %v96, 0.05243302
    %v98 = vmul.f32 %v91, %v97
    %v99 = vadd.f32 %v98, 0.18741608
    %v100 = vmul.f32 %v91, %v99
    %v101 = vadd.f32 %v100, 1.1283791
    %v102 = vmul.f32 %v88, %v101
    %v103 = vmul.f32 %v91, 3.8918573e-05
    %v104 = vadd.f32 %v103, 0.001143296
    %v105 = vmul.f32 %v91, %v104
    %v106 = vadd.f32 %v105, 0.014752088
    %v107 = vmul.f32 %v91, %v106
    %v108 = vadd.f32 %v107, 0.112945676
    %v109 = vmul.f32 %v91, %v108
    %v110 = vadd.f32 %v109, 0.4994258
    %v111 = vmul.f32 %v91, %v110
    %v112 = vadd.f32 %v111, 1.0
    %v113 = vrcp.pop %v112
    %v114 = vmul.f32 %v112, %v113
    %v115 = vsub.f32 1.0, %v114
    %v116 = vmul.f32 %v113, %v115
    %v117 = vadd.f32 %v113, %v116
    %vm118 = vweird.f32 %v112
    %vm119 = vweird.f32 %v113
    %vm120 = vmor %vm118, %vm119
    %v121 = vsel %vm120, %v113, %v117
    %v122 = vand.u32 2147483647, %v112
    %vm123 = vcmp.eq.f32.partialorder %v122, 8.507059e+37
    %v124 = vand.u32 %v112, 2147483648
    %v125 = vor.u32 1.1754944e-38, %v124
    %v126 = vsel %vm123, %v125, %v121
    %v127 = vmul.f32 %v102, %v126
    %v128 = vmin.f32 %v127, 1.0
    %v129 = vmax.f32 %v128, -1.0
    %v130 = vmul.f32 %v89, %v89
    %v131 = vmin.f32 16.0, %v130
    %v132 = vmul.f32 %v131, 2.1237322e-06
    %v133 = vadd.f32 %v132, 0.00028619796
    %v134 = vmul.f32 %v131, %v133
    %v135 = vadd.f32 %v134, 0.0036580483
    %v136 = vmul.f32 %v131, %v135
    %v137 = vadd.f32 %v136, 0.05243302
    %v138 = vmul.f32 %v131, %v137
    %v139 = vadd.f32 %v138, 0.18741608
    %v140 = vmul.f32 %v131, %v139
    %v141 = vadd.f32 %v140, 1.1283791
    %v142 = vmul.f32 %v89, %v141
    %v143 = vmul.f32 %v131, 3.8918573e-05
    %v144 = vadd.f32 %v143, 0.001143296
    %v145 = vmul.f32 %v131, %v144
    %v146 = vadd.f32 %v145, 0.014752088
    %v147 = vmul.f32 %v131, %v146
    %v148 = vadd.f32 %v147, 0.112945676
    %v149 = vmul.f32 %v131, %v148
    %v150 = vadd.f32 %v149, 0.4994258
    %v151 = vmul.f32 %v131, %v150
    %v152 = vadd.f32 %v151, 1.0
    %v153 = vrcp.pop %v152
    %v154 = vmul.f32 %v152, %v153
    %v155 = vsub.f32 1.0, %v154
    %v156 = vmul.f32 %v153, %v155
    %v157 = vadd.f32 %v153, %v156
    %vm158 = vweird.f32 %v152
    %vm159 = vweird.f32 %v153
    %vm160 = vmor %vm158, %vm159
    %v161 = vsel %vm160, %v153, %v157
    %v162 = vand.u32 2147483647, %v152
    %vm163 = vcmp.eq.f32.partialorder %v162, 8.507059e+37
    %v164 = vand.u32 %v152, 2147483648
    %v165 = vor.u32 1.1754944e-38, %v164
    %v166 = vsel %vm163, %v165, %v161
    %v167 = vmul.f32 %v142, %v166
    %v168 = vmin.f32 %v167, 1.0
    %v169 = vmax.f32 %v168, -1.0
    %v170 = vadd.f32 %v129, 1.0
    %v171 = vadd.f32 %v169, 1.0
    %v172 = vmul.f32 %v86, %v170
    %v173 = vmul.f32 %v87, %v171
    %v174 = vld [vmem:[%s3] sm:$0x1]
    %v175 = vld [vmem:[%s4] sm:$0x1]
    %v176 = vsel %vm53, %v172, 0.0
    %177 = vadd.xlane.f32.xlu0 %v176
    %v178 = vpop.xlane.xlu0 %177
    %v179 = vsel %vm53, %v173, 0.0
    %180 = vadd.xlane.f32.xlu0 %v179
    %v181 = vpop.xlane.xlu0 %180
    %v182 = vrcp.pop 32.0
    %v183 = vmul.f32 32.0, %v182
    %v184 = vsub.f32 1.0, %v183
    %v185 = vmul.f32 %v182, %v184
    %v186 = vadd.f32 %v182, %v185
    %vm187 = vweird.f32 %v182
    %v188 = vsel %vm187, %v182, %v186
    %v189 = vmul.f32 %v178, %v188
    %v190 = vmul.f32 %v181, %v188
    %v191 = vsub.f32 %v172, %v189
    %v192 = vsub.f32 %v173, %v190
    %v193 = vmul.f32 %v191, %v191
    %v194 = vmul.f32 %v192, %v192
    %v195 = vsel %vm53, %v193, 0.0
    %196 = vadd.xlane.f32.xlu0 %v195
    %v197 = vpop.xlane.xlu0 %196
    %v198 = vsel %vm53, %v194, 0.0
    %199 = vadd.xlane.f32.xlu0 %v198
    %v200 = vpop.xlane.xlu0 %199
    %v201 = vmul.f32 %v197, %v188
    %v202 = vmul.f32 %v200, %v188
    %v203 = vadd.f32 %v201, 1e-12
    %v204 = vadd.f32 %v202, 1e-12
    %v205 = vrsqrt.pop %v203
    %v206 = vmul.f32 %v205, %v203
    %v207 = vmul.f32 %v206, %v205
    %v208 = vmul.f32 0.5, %v207
    %v209 = vsub.f32 1.5, %v208
    %v210 = vmul.f32 %v205, %v209
    %vm211 = vweird.f32 %v203
    %vm212 = vweird.f32 %v205
    %vm213 = vmor %vm211, %vm212
    %v214 = vsel %vm213, %v205, %v210
    %v215 = vrsqrt.pop %v204
    %v216 = vmul.f32 %v215, %v204
    %v217 = vmul.f32 %v216, %v215
    %v218 = vmul.f32 0.5, %v217
    %v219 = vsub.f32 1.5, %v218
    %v220 = vmul.f32 %v215, %v219
    %vm221 = vweird.f32 %v204
    %vm222 = vweird.f32 %v215
    %vm223 = vmor %vm221, %vm222
    %v224 = vsel %vm223, %v215, %v220
    %v225 = vmul.f32 %v191, %v214
    %v226 = vmul.f32 %v192, %v224
    %v228 = vperm.slane %v174, 0
    %v230 = vmul.f32 %v225, %v228
    %v231 = vmul.f32 %v226, %v228
    %v233 = vperm.slane %v175, 0
    %v235 = vadd.f32 %v230, %v233
    %v236 = vadd.f32 %v231, %v233
    %v237 = vpack.c.bf16 %v235, %v235
    %v238 = vpack.c.bf16 %v236, %v236
    %vm239 = vcmask 257024
    %240 = vst.msk [vmem:[%s5] sm:$0xf] %vm239, %v237
    %241 = vst.msk [vmem:[%s5 + $0x4] sm:$0xf] %vm239, %v238
  $region29: #{bert_forward.27} parent=0 // pred_fallthru
    _
  // Predicated region
  $region30: #{bert_forward.27} parent=0 // pred_check
    _
  $region31: #{bert_forward.27} parent=0 // pred_check_branch
    %243 = sbr.rel (0) target = $region33
  $region32: #{bert_forward.27} parent=0 // pred_region
    _
  $region33: #{bert_forward.27} parent=0 // pred_fallthru
    _
  // Predicated region
  $region34: #{bert_forward.27} parent=0 // pred_check
    _
  $region35: #{bert_forward.27} parent=0 // pred_check_branch
    %245 = sbr.rel (0) target = $region37
  $region36: #{bert_forward.27} parent=0 // pred_region
    _
  $region37: #{bert_forward.27} parent=0 // pred_fallthru
    _

// kernel: bert_forward.29
$region0: #{bert_forward.29}
  #allocation0 [shape = 'u32[]', space=smem, size = 0x4, offset = 0x4, fixed_abs, tag = 'smem constant byte address 0x4 - core index']
  #allocation1 [shape = 'u32[72,128]{1,0:T(1,128)}', space=vmem, size = 0x9000, scoped, tag = 'internal scratch']
  #allocation2 [shape = 'f32[2,2]{1,0:T(2,128)}', space=vmem, size = 0x400, scoped, tag = 'scratch operand']
  %s0 = inlined_call_operand.vmem [shape: bf16[2,32], index: 0, kind: input, shape index: {}]
  %s1 = inlined_call_operand.vmem [shape: bf16[32,2], index: 1, kind: input, shape index: {}]
  %s2 = inlined_call_operand.vmem [shape: f32[1,2], index: 2, kind: input, shape index: {}]
  %s3 = inlined_call_operand.hbm [shape: f32[2,2], index: 3, kind: output, shape index: {}]
  %s4 = sld [smem:[#allocation0]]
  $region30: #{bert_forward.29} parent=0
    _
  %s6 = ssub.s32 1, %s4
  %s7 = scalar_select 0, %s6, %s4
  $region1: #{bert_forward.29} parent=0
    #allocation3 [shape = 'u8[1024]{0}', space=vmem, size = 0x400, scoped, tag = 'output window, operand 0, single buffered']
    #allocation4 [shape = 's32[1]{0}', space=sflag, size = 0x4, scoped, tag = 'scoped memory for bert_forward.29']
    %8 = vsyncpa [#allocation4], 0
    // Predicated region
    $region2: #{bert_forward.29} parent=1 // pred_check
      _
    $region3: #{bert_forward.29} parent=1 // pred_check_branch
      %10 = sbr.rel (0) target = $region5
    $region4: #{bert_forward.29} parent=1 // pred_region
      _
    $region5: #{bert_forward.29} parent=1 // pred_fallthru
      _
    // Predicated region
    $region6: #{bert_forward.29} parent=1 // pred_check
      _
    $region7: #{bert_forward.29} parent=1 // pred_check_branch
      %12 = sbr.rel (0) target = $region9
    $region8: #{bert_forward.29} parent=1 // pred_region
      _
    $region9: #{bert_forward.29} parent=1 // pred_fallthru
      _
    // Predicated region
    $region10: #{bert_forward.29} parent=1 // pred_check
      _
    $region11: #{bert_forward.29} parent=1 // pred_check_branch
      %14 = sbr.rel (0) target = $region13
    $region12: #{bert_forward.29} parent=1 // pred_region
      _
    $region13: #{bert_forward.29} parent=1 // pred_fallthru
      _
    %p16 = scmp.eq.s32.totalorder 0, 0
    // Predicated region
    $region14: #{bert_forward.29} parent=1 // pred_check
      %p17 = pneg %p16
    $region15: #{bert_forward.29} parent=1 // pred_check_branch
      %19 = sbr.rel (%p17) target = $region17
    $region16: #{bert_forward.29} parent=1 // pred_region
      %vm20 = vcmask 9216
      %21 = vst.msk [vmem:[#allocation2] sm:$0x3] %vm20, 0.0
    $region17: #{bert_forward.29} parent=1 // pred_fallthru
      _
    %v22 = vld [vmem:[#allocation2] sm:$0x3]
    %v23 = vld [vmem:[%s0] sm:$0x1]
    %v24 = vld [vmem:[%s1] sm:$0xf]
    %v25 = vld [vmem:[%s1 + $0x4] sm:$0xf]
    %v26 = vld [vmem:[%s1 + $0x8] sm:$0xf]
    %v27 = vld [vmem:[%s1 + $0xc] sm:$0xf]
    %v32 = vunpack.c.l.b16 %v24
    %v33 = vunpack.c.l.b16 %v25
    %v34 = vunpack.c.l.b16 %v26
    %v35 = vunpack.c.l.b16 %v27
    %v36 = vpack.c.b16 %v33, %v32
    %v37 = vpack.c.b16 %v35, %v34
    %vm40 = vcmask 261120
    %v42 = vsel %vm40, %v23, 0
    %44 = vmatpush.bf16.msra.mxu0 0
    %45 = vmatpush.bf16.msra.mxu0 0
    %46 = vmatpush.bf16.msra.mxu0 0
    %47 = vmatpush.bf16.msra.mxu0 0
    %48 = vmatpush.bf16.msra.mxu0 0
    %49 = vmatpush.bf16.msra.mxu0 0
    %50 = vmatpush.bf16.msra.mxu0 %v37
    %51 = vmatpush.bf16.msra.mxu0 %v36
    %52 = vmatmul.bf16.gmra.mxu0 %v42
    %v53 = vpop.f32.mrf.mxu0
    %v54 = vadd.f32 0.0, %v53
    %v55 = vpop.f32.mrf.mxu0
    %56 = vdwg.mxu0
    %v57 = vadd.f32 %v22, %v54
    %vm58 = vcmask 9216
    %59 = vst.msk [vmem:[#allocation2] sm:$0x3] %vm58, %v57
    // Predicated region
    $region18: #{bert_forward.29} parent=1 // pred_check
      %p60 = pneg %p16
    $region19: #{bert_forward.29} parent=1 // pred_check_branch
      %62 = sbr.rel (%p60) target = $region21
    $region20: #{bert_forward.29} parent=1 // pred_region
      %v63 = vld [vmem:[#allocation2] sm:$0x3]
      %v64 = vld [vmem:[%s2] sm:$0x1]
      %v66 = vperm.slane %v64, 0
      %v68 = vadd.f32 %v63, %v66
      %69 = vst.msk [vmem:[#allocation3] sm:$0x3] %vm58, %v68
    $region21: #{bert_forward.29} parent=1 // pred_fallthru
      _
    // Predicated region
    $region22: #{bert_forward.29} parent=1 // pred_check
      _
    $region23: #{bert_forward.29} parent=1 // pred_check_branch
      %71 = sbr.rel (0) target = $region25
    $region24: #{bert_forward.29} parent=1 // pred_region
      %73 = vsyncadd [#allocation4], 0
      %s75 = sshll.u32 [#allocation3], 4
      %s76 = int_to_ptr.vmem [resolvable:$true] %s75
      %s77 = sshll.u32 %s3, 4
      %s78 = int_to_ptr.hbm [resolvable:$true] %s77
      %80 = dma.vmem_to_hbm [thread:$0]  %s76, 32, %s78, [#allocation4]
    $region25: #{bert_forward.29} parent=1 // pred_fallthru
      _
    // Predicated region
    $region26: #{bert_forward.29} parent=1 // pred_check
      _
    $region27: #{bert_forward.29} parent=1 // pred_check_branch
      %82 = sbr.rel (0) target = $region29
    $region28: #{bert_forward.29} parent=1 // pred_region
      %84 = dma.done [#allocation4], 32
    $region29: #{bert_forward.29} parent=1 // pred_fallthru
      _
    %85 = vsyncpa [#allocation4], 1

// kernel: bert_forward.26
$region0: #{bert_forward.26}
  #allocation0 [shape = 'u32[]', space=smem, size = 0x4, offset = 0x4, fixed_abs, tag = 'smem constant byte address 0x4 - core index']
  #allocation1 [shape = 'u32[72,128]{1,0:T(1,128)}', space=vmem, size = 0x9000, scoped, tag = 'internal scratch']
  #allocation2 [shape = 'f32[2,32]{1,0:T(2,128)}', space=vmem, size = 0x400, scoped, tag = 'scratch operand']
  %s0 = inlined_call_operand.vmem [shape: bf16[2,32], index: 0, kind: input, shape index: {}]
  %s1 = inlined_call_operand.vmem [shape: bf16[32,32], index: 1, kind: input, shape index: {}]
  %s2 = inlined_call_operand.vmem [shape: f32[1,32], index: 2, kind: input, shape index: {}]
  %s3 = inlined_call_operand.vmem [shape: bf16[2,32], index: 3, kind: output, shape index: {}]
  %s4 = sld [smem:[#allocation0]]
  $region30: #{bert_forward.26} parent=0
    _
  %s6 = ssub.s32 1, %s4
  %s7 = scalar_select 0, %s6, %s4
  // Predicated region
  $region2: #{bert_forward.26} parent=0 // pred_check
    _
  $region3: #{bert_forward.26} parent=0 // pred_check_branch
    %9 = sbr.rel (0) target = $region5
  $region4: #{bert_forward.26} parent=0 // pred_region
    _
  $region5: #{bert_forward.26} parent=0 // pred_fallthru
    _
  // Predicated region
  $region6: #{bert_forward.26} parent=0 // pred_check
    _
  $region7: #{bert_forward.26} parent=0 // pred_check_branch
    %11 = sbr.rel (0) target = $region9
  $region8: #{bert_forward.26} parent=0 // pred_region
    _
  $region9: #{bert_forward.26} parent=0 // pred_fallthru
    _
  // Predicated region
  $region10: #{bert_forward.26} parent=0 // pred_check
    _
  $region11: #{bert_forward.26} parent=0 // pred_check_branch
    %13 = sbr.rel (0) target = $region13
  $region12: #{bert_forward.26} parent=0 // pred_region
    _
  $region13: #{bert_forward.26} parent=0 // pred_fallthru
    _
  %p15 = scmp.eq.s32.totalorder 0, 0
  // Predicated region
  $region14: #{bert_forward.26} parent=0 // pred_check
    %p16 = pneg %p15
  $region15: #{bert_forward.26} parent=0 // pred_check_branch
    %18 = sbr.rel (%p16) target = $region17
  $region16: #{bert_forward.26} parent=0 // pred_region
    %vm19 = vcmask 254976
    %20 = vst.msk [vmem:[#allocation2] sm:$0x3] %vm19, 0.0
  $region17: #{bert_forward.26} parent=0 // pred_fallthru
    _
  %v21 = vld [vmem:[#allocation2] sm:$0x3]
  %v22 = vld [vmem:[%s0] sm:$0x1]
  %v23 = vld [vmem:[%s1] sm:$0xf]
  %v24 = vld [vmem:[%s1 + $0x4] sm:$0xf]
  %v25 = vld [vmem:[%s1 + $0x8] sm:$0xf]
  %v26 = vld [vmem:[%s1 + $0xc] sm:$0xf]
  %v31 = vunpack.c.l.b16 %v23
  %v32 = vunpack.c.l.b16 %v24
  %v33 = vunpack.c.l.b16 %v25
  %v34 = vunpack.c.l.b16 %v26
  %v35 = vpack.c.b16 %v32, %v31
  %v36 = vpack.c.b16 %v34, %v33
  %vm39 = vcmask 261120
  %v41 = vsel %vm39, %v22, 0
  %43 = vmatpush.bf16.msra.mxu0 0
  %44 = vmatpush.bf16.msra.mxu0 0
  %45 = vmatpush.bf16.msra.mxu0 0
  %46 = vmatpush.bf16.msra.mxu0 0
  %47 = vmatpush.bf16.msra.mxu0 0
  %48 = vmatpush.bf16.msra.mxu0 0
  %49 = vmatpush.bf16.msra.mxu0 %v36
  %50 = vmatpush.bf16.msra.mxu0 %v35
  %51 = vmatmul.bf16.gmra.mxu0 %v41
  %v52 = vpop.f32.mrf.mxu0
  %v53 = vadd.f32 0.0, %v52
  %v54 = vpop.f32.mrf.mxu0
  %55 = vdwg.mxu0
  %v56 = vadd.f32 %v21, %v53
  %vm57 = vcmask 254976
  %58 = vst.msk [vmem:[#allocation2] sm:$0x3] %vm57, %v56
  // Predicated region
  $region18: #{bert_forward.26} parent=0 // pred_check
    %p59 = pneg %p15
  $region19: #{bert_forward.26} parent=0 // pred_check_branch
    %61 = sbr.rel (%p59) target = $region21
  $region20: #{bert_forward.26} parent=0 // pred_region
    %v62 = vld [vmem:[#allocation2] sm:$0x3]
    %v63 = vld [vmem:[%s2] sm:$0x1]
    %v65 = vperm.slane %v63, 0
    %v67 = vadd.f32 %v62, %v65
    %v68 = vtanh.pop %v67
    %v69 = vpack.c.bf16 %v68, %v68
    %vm70 = vcmask 253952
    %71 = vst.msk [vmem:[%s3] sm:$0x1] %vm70, %v69
  $region21: #{bert_forward.26} parent=0 // pred_fallthru
    _
  // Predicated region
  $region22: #{bert_forward.26} parent=0 // pred_check
    _
  $region23: #{bert_forward.26} parent=0 // pred_check_branch
    %73 = sbr.rel (0) target = $region25
  $region24: #{bert_forward.26} parent=0 // pred_region
    _
  $region25: #{bert_forward.26} parent=0 // pred_fallthru
    _
  // Predicated region
  $region26: #{bert_forward.26} parent=0 // pred_check
    _
  $region27: #{bert_forward.26} parent=0 // pred_check_branch
    %75 = sbr.rel (0) target = $region29
  $region28: #{bert_forward.26} parent=0 // pred_region
    _
  $region29: #{bert_forward.26} parent=0 // pred_fallthru
    _

</llo_original>
